<compile_context>
chip_gen: v5e
topology: v5e:2x2
jax: 0.10.0
libtpu: 0.0.40
codegen_flags: <defaults>
</compile_context>

<pallas_src>
import functools

import jax
import jax.numpy as jnp
from jax.experimental import pallas as pl
from jax.experimental.pallas import tpu as pltpu

# Above the 16 MiB (v5e) / 32 MiB (v6e, v7x) scoped defaults, below v7x's
# 64 MiB physical VMEM -- safe on all three generations.
_VMEM_LIMIT = 48 * 1024 * 1024


# ----------------------------------------------------------------------------
# small helpers
# ----------------------------------------------------------------------------
def _round_up(x, m):
    return ((x + m - 1) // m) * m


def _pick_row_tile(M, cap=256):
    """Row tile for matmul-style kernels: as big as possible while keeping
    8-row sublane alignment. cap tunable per generation (v6e: 512, v7x: 128-256)."""
    Mp = _round_up(M, 8)
    if Mp <= cap:
        return Mp, Mp          # single tile, no extra pad
    return cap, _round_up(Mp, cap)


def _ln(x, g, b):
    mu = jnp.mean(x, axis=-1, keepdims=True)
    xc = x - mu
    var = jnp.mean(xc * xc, axis=-1, keepdims=True)
    return xc * jax.lax.rsqrt(var + 1e-5) * g + b


def _erf_f32(x):
    # f32 erf rational approximation (matches jax.nn.gelu(approximate=False)
    # numerics in f32) -- only mul/add/clip/div, guaranteed to lower on Mosaic.
    xc = jnp.clip(x, -4.0, 4.0)
    x2 = xc * xc
    alpha = (0.00022905065861350646, 0.0034082910107109506, 0.050955695062380861,
             0.18520832239976145, 1.128379143519084)
    beta = (-1.1791602954361697e-7, 2.3547966471313185e-5, 0.0010179625278914885,
            0.014070470171167667, 0.11098505178285362, 0.49746925110067538, 1.0)
    p = jnp.float32(alpha[0])
    for c in alpha[1:]:
        p = p * x2 + jnp.float32(c)
    q = jnp.float32(beta[0])
    for c in beta[1:]:
        q = q * x2 + jnp.float32(c)
    return (xc * p) / q


def _gelu_exact(x):
    # F.gelu default (erf-based).
    return 0.5 * x * (1.0 + _erf_f32(x * jnp.float32(0.7071067811865476)))


# ----------------------------------------------------------------------------
# Pallas kernels
# ----------------------------------------------------------------------------
def _linear_kernel(x_ref, w_ref, b_ref, o_ref):
    # Weights arrive pre-cast to bf16 (done once at init, not per grid step).
    x = x_ref[...].astype(jnp.bfloat16)
    o_ref[...] = jnp.dot(x, w_ref[...], preferred_element_type=jnp.float32) + b_ref[...]


def linear(x2d, w_bf16, b=None, tm_cap=256):
    """y = x2d @ w + b. bf16 MXU operands, f32 accumulation, big row tiles."""
    M, K = x2d.shape
    N = w_bf16.shape[1]
    if b is None:
        b2 = jnp.zeros((1, N), jnp.float32)
    else:
        b2 = b.reshape(1, N).astype(jnp.float32)
    tm, Mp = _pick_row_tile(M, tm_cap)
    xp = x2d if Mp == M else jnp.pad(x2d, ((0, Mp - M), (0, 0)))
    out = pl.pallas_call(
        _linear_kernel,
        out_shape=jax.ShapeDtypeStruct((Mp, N), jnp.float32),
        grid=(Mp // tm,),
        in_specs=[
            pl.BlockSpec((tm, K), lambda i: (i, 0)),
            pl.BlockSpec((K, N), lambda i: (0, 0)),
            pl.BlockSpec((1, N), lambda i: (0, 0)),
        ],
        out_specs=pl.BlockSpec((tm, N), lambda i: (i, 0)),
        compiler_params=pltpu.CompilerParams(
            dimension_semantics=("parallel",),
            vmem_limit_bytes=_VMEM_LIMIT),
    )(xp, w_bf16, b2)
    return out if Mp == M else out[:M]


def token_embedding(x_enc, emb_w_bf16):
    # Circular Conv1d(k=3, no bias) as ONE fused K=3C matmul:
    #   h[l] = [x[l-1] | x[l] | x[l+1]] @ [W0; W1; W2]
    # The circular rolls happen on the tiny (B, L, C) input in the wrapper
    # (C is a handful of channels -> negligible HBM traffic); the old L x L
    # permutation matmuls and their VMEM blocks are gone.
    B, L, C = x_enc.shape
    D = emb_w_bf16.shape[-1]
    x3 = jnp.concatenate(
        [jnp.roll(x_enc, 1, axis=1), x_enc, jnp.roll(x_enc, -1, axis=1)], axis=-1)
    h = linear(x3.reshape(B * L, 3 * C), emb_w_bf16)
    return h.reshape(B, L, D)


def _lsh_chunk_attn_kernel(bq_ref, bkt_ref, bv_ref, qt_ref, kt_ref,
                           bo_ref, lse_ref, *, scale):
    # Blocks of chunks: bq (tg, W, dh); bkt (tg, dh, X) pre-transposed keys;
    # bv (tg, X, dh); qt (tg, W); kt (tg, X).
    tg, W, dh = bq_ref.shape
    bq = bq_ref[...].astype(jnp.bfloat16)
    bkt = bkt_ref[...]
    # F.normalize(qk, dim=-1, eps=1e-12) -> keys (dh is axis 1 in this layout)
    nrm2 = jnp.sum(bkt * bkt, axis=1, keepdims=True)
    bk = (bkt * jax.lax.rsqrt(jnp.maximum(nrm2, 1e-24))).astype(jnp.bfloat16)
    # dots[g, i, j] = <bq[g, i], bk[g, :, j]> * scale (batched MXU matmul,
    # standard (W,dh)x(dh,X) contraction: no in-kernel RHS transpose).
    dots = jnp.einsum("gid,gdj->gij", bq, bk,
                      preferred_element_type=jnp.float32) * scale
    # mask attention to self (TOKEN_SELF_ATTN_VALUE = -5e4 in reformer-pytorch)
    qt = qt_ref[...]
    kt = kt_ref[...]
    self_mask = qt[:, :, None] == kt[:, None, :]
    dots = jnp.where(self_mask, jnp.float32(-5e4), dots)
    # softmax + logsumexp, reusing the exponentials (single exp per element)
    m = jnp.max(dots, axis=-1, keepdims=True)
    e = jnp.exp(dots - m)
    s = jnp.sum(e, axis=-1, keepdims=True)
    p = e * pl.reciprocal(s, approx=True)
    bo = jnp.einsum("gij,gjd->gid", p.astype(jnp.bfloat16),
                    bv_ref[...].astype(jnp.bfloat16),
                    preferred_element_type=jnp.float32)
    # lane-dense store: (tg, W*dh) instead of a last dim of dh (<128 lanes)
    bo_ref[...] = bo.reshape(tg, W * dh)
    lse_ref[...] = (m + jnp.log(s))[..., 0]


def lsh_chunk_attention(bq, bk_raw, bv, bq_t, bkv_t, scale, tg_cap=32):
    BH, C, W, dh = bq.shape
    X = bk_raw.shape[2]
    G = BH * C                      # fold batch*heads and chunks into one axis
    bqf = bq.reshape(G, W, dh)
    # keys pre-transposed once here (wrapper plumbing, not in-kernel XLU work)
    bktf = jnp.swapaxes(bk_raw.reshape(G, X, dh), 1, 2)   # (G, dh, X)
    bvf = bv.reshape(G, X, dh)
    qtf = bq_t.reshape(G, W)
    ktf = bkv_t.reshape(G, X)

    # Pad the group axis to a multiple of the tile instead of a divisor search
    # (avoids degenerate tiny grids when G is odd/prime). Padded groups are
    # self-consistent (all-masked softmax, finite) and dropped afterwards.
    tg = min(tg_cap, _round_up(G, 8))
    G_pad = _round_up(G, tg)
    if G_pad != G:
        pn = G_pad - G
        bqf = jnp.pad(bqf, ((0, pn), (0, 0), (0, 0)))
        bktf = jnp.pad(bktf, ((0, pn), (0, 0), (0, 0)))
        bvf = jnp.pad(bvf, ((0, pn), (0, 0), (0, 0)))
        qtf = jnp.pad(qtf, ((0, pn), (0, 0)))
        ktf = jnp.pad(ktf, ((0, pn), (0, 0)))

    kernel = functools.partial(_lsh_chunk_attn_kernel, scale=scale)
    bo, lse = pl.pallas_call(
        kernel,
        out_shape=(
            jax.ShapeDtypeStruct((G_pad, W * dh), jnp.float32),
            jax.ShapeDtypeStruct((G_pad, W), jnp.float32),
        ),
        grid=(G_pad // tg,),
        in_specs=[
            pl.BlockSpec((tg, W, dh), lambda i: (i, 0, 0)),
            pl.BlockSpec((tg, dh, X), lambda i: (i, 0, 0)),
            pl.BlockSpec((tg, X, dh), lambda i: (i, 0, 0)),
            pl.BlockSpec((tg, W), lambda i: (i, 0)),
            pl.BlockSpec((tg, X), lambda i: (i, 0)),
        ],
        out_specs=(
            pl.BlockSpec((tg, W * dh), lambda i: (i, 0)),
            pl.BlockSpec((tg, W), lambda i: (i, 0)),
        ),
        compiler_params=pltpu.CompilerParams(
            dimension_semantics=("parallel",),
            vmem_limit_bytes=_VMEM_LIMIT),
    )(bqf, bktf, bvf, qtf, ktf)
    bo = bo[:G].reshape(BH, C, W, dh)
    lse = lse[:G].reshape(BH, C, W)
    return bo, lse


def _encoder_tail_kernel(a_ref, x_ref, wo_ref, bo_ref, g1_ref, bn1_ref,
                         w1_ref, bf1_ref, w2_ref, bf2_ref, g2_ref, bn2_ref,
                         o_ref):
    # out-proj + residual + norm1 + FFN(gelu) + residual + norm2, all in VMEM.
    a = a_ref[...].astype(jnp.bfloat16)
    o = jnp.dot(a, wo_ref[...], preferred_element_type=jnp.float32) + bo_ref[...]
    xr = x_ref[...] + o                               # dropout = identity
    x2 = _ln(xr, g1_ref[...], bn1_ref[...])
    h = jnp.dot(x2.astype(jnp.bfloat16), w1_ref[...],
                preferred_element_type=jnp.float32) + bf1_ref[...]
    h = _gelu_exact(h)
    y = jnp.dot(h.astype(jnp.bfloat16), w2_ref[...],
                preferred_element_type=jnp.float32) + bf2_ref[...]
    o_ref[...] = _ln(x2 + y, g2_ref[...], bn2_ref[...])


def encoder_tail(attn2d, x2d, p, tm_cap=256):
    M, D = x2d.shape
    F = p["w1"].shape[1]
    tm, Mp = _pick_row_tile(M, tm_cap)
    a = attn2d if Mp == M else jnp.pad(attn2d, ((0, Mp - M), (0, 0)))
    xx = x2d if Mp == M else jnp.pad(x2d, ((0, Mp - M), (0, 0)))
    rep2 = lambda i: (0, 0)
    out = pl.pallas_call(
        _encoder_tail_kernel,
        out_shape=jax.ShapeDtypeStruct((Mp, D), jnp.float32),
        grid=(Mp // tm,),
        in_specs=[
            pl.BlockSpec((tm, D), lambda i: (i, 0)),
            pl.BlockSpec((tm, D), lambda i: (i, 0)),
            pl.BlockSpec((D, D), rep2),
            pl.BlockSpec((1, D), rep2),
            pl.BlockSpec((1, D), rep2),
            pl.BlockSpec((1, D), rep2),
            pl.BlockSpec((D, F), rep2),
            pl.BlockSpec((1, F), rep2),
            pl.BlockSpec((F, D), rep2),
            pl.BlockSpec((1, D), rep2),
            pl.BlockSpec((1, D), rep2),
            pl.BlockSpec((1, D), rep2),
        ],
        out_specs=pl.BlockSpec((tm, D), lambda i: (i, 0)),
        compiler_params=pltpu.CompilerParams(
            dimension_semantics=("parallel",),
            vmem_limit_bytes=_VMEM_LIMIT),
    )(a, xx, p["wo"], p["bo"].reshape(1, D), p["ln1_g"], p["ln1_b"],
      p["w1"], p["b1"].reshape(1, F), p["w2"], p["b2"].reshape(1, D),
      p["ln2_g"], p["ln2_b"])
    return out if Mp == M else out[:M]


def _final_norm_mean_kernel(x_ref, g_ref, b_ref, o_ref):
    x = x_ref[0]                                          # (L, D)
    y = _ln(x, g_ref[...], b_ref[...])
    o_ref[0] = jnp.mean(y, axis=0, keepdims=True)


def final_norm_mean(x, g, b):
    B, L, D = x.shape
    out = pl.pallas_call(
        _final_norm_mean_kernel,
        out_shape=jax.ShapeDtypeStruct((B, 1, D), jnp.float32),
        grid=(B,),
        in_specs=[
            pl.BlockSpec((1, L, D), lambda i: (i, 0, 0)),
            pl.BlockSpec((1, D), lambda i: (0, 0)),
            pl.BlockSpec((1, D), lambda i: (0, 0)),
        ],
        out_specs=pl.BlockSpec((1, 1, D), lambda i: (i, 0, 0)),
        compiler_params=pltpu.CompilerParams(dimension_semantics=("parallel",)),
    )(x, g, b)
    return out.reshape(B, D)


# ----------------------------------------------------------------------------
# LSH self-attention (reformer-pytorch semantics), chunked attend in Pallas
# ----------------------------------------------------------------------------
def lsh_attention(qk, v, *, bucket_size, n_hashes, rot):
    # qk, v: (B*H, L, dh); shared-QK LSH attention, attend_across_buckets=True,
    # allow_duplicate_attention=True, causal=False, attn dropout 0.
    BH, L, dh = qk.shape
    n_buckets = L // bucket_size

    # hash_vectors: random rotations shared over batch*heads
    rot_b = jnp.broadcast_to(rot, (BH,) + rot.shape[1:])
    rotated = jnp.einsum("btf,bfhi->bhti", qk, rot_b)
    rotated = jnp.concatenate([rotated, -rotated], axis=-1)   # (BH, n_hashes, L, n_buckets)
    buckets = jnp.argmax(rotated, axis=-1).astype(jnp.int32)
    offsets = (jnp.arange(n_hashes, dtype=jnp.int32) * n_buckets).reshape(1, n_hashes, 1)
    buckets = (buckets + offsets).reshape(BH, n_hashes * L)

    total = n_hashes * L
    ticker = jnp.broadcast_to(jnp.arange(total, dtype=jnp.int32), (BH, total))
    buckets_and_t = L * buckets + (ticker % L)
    # TODO(synk): the sort/unsort gathers could be folded into the Pallas
    # pipeline via PrefetchScalarGridSpec + pl.Element row-gather index_maps
    # instead of JAX gathers (saves two HBM passes over the sorted tensors).
    sticker = jnp.argsort(buckets_and_t, axis=-1).astype(jnp.int32)
    undo_sort = jnp.argsort(sticker, axis=-1).astype(jnp.int32)
    st = (sticker % L).astype(jnp.int32)

    sqk = jnp.take_along_axis(qk, st[:, :, None], axis=1)
    sv = jnp.take_along_axis(v, st[:, :, None], axis=1)

    n_chunks = n_hashes * n_buckets
    W = bucket_size
    bq_t = st.reshape(BH, n_chunks, W)
    bq = sqk.reshape(BH, n_chunks, W, dh)
    bv = sv.reshape(BH, n_chunks, W, dh)

    def look_one_back(t):
        t_extra = jnp.concatenate([t[:, -1:], t[:, :-1]], axis=1)
        return jnp.concatenate([t, t_extra], axis=2)

    bk_raw = look_one_back(bq)           # keys = normalize(qk); normalized in-kernel
    bv2 = look_one_back(bv)
    bkv_t = look_one_back(bq_t)

    bo, lse = lsh_chunk_attention(bq, bk_raw, bv2, bq_t, bkv_t,
                                  scale=float(dh) ** -0.5)

    so = bo.reshape(BH, total, dh)
    slog = lse.reshape(BH, total)
    o = jnp.take_along_axis(so, undo_sort[:, :, None], axis=1)
    logits = jnp.take_along_axis(slog, undo_sort, axis=1)
    o = o.reshape(BH, n_hashes, L, dh)
    logits = logits.reshape(BH, n_hashes, L, 1)
    mlog = jnp.max(logits, axis=1, keepdims=True)
    lse_h = mlog + jnp.log(jnp.sum(jnp.exp(logits - mlog), axis=1, keepdims=True))
    probs = jnp.exp(logits - lse_h)
    return jnp.sum(o * probs, axis=1)                         # (BH, L, dh)


# ----------------------------------------------------------------------------
# Encoder layer + full model forward
# ----------------------------------------------------------------------------
def encoder_layer(x, p, *, n_heads, bucket_size, n_hashes):
    B, L, D = x.shape
    dh = D // n_heads

    # --- ReformerLayer: fit_length (pad to multiple of 2*bucket_size) + LSH attn
    mult = bucket_size * 2
    pad = (-L) % mult
    xq = x if pad == 0 else jnp.concatenate([x, jnp.zeros((B, pad, D), x.dtype)], axis=1)
    Lp = L + pad

    # fused [toqk | tov] projection (both bias-free in reformer-pytorch)
    qkv = linear(xq.reshape(B * Lp, D), p["wqkv"])
    # TODO(synk): the head-split transposes could be folded into the attention
    # BlockSpec index_maps (head-major emission) to save two HBM passes.
    qk = qkv[:, :D].reshape(B, Lp, n_heads, dh).transpose(0, 2, 1, 3).reshape(B * n_heads, Lp, dh)
    v = qkv[:, D:].reshape(B, Lp, n_heads, dh).transpose(0, 2, 1, 3).reshape(B * n_heads, Lp, dh)

    o = lsh_attention(qk, v, bucket_size=bucket_size, n_hashes=n_hashes, rot=p["rot"])
    o = o.reshape(B, n_heads, Lp, dh).transpose(0, 2, 1, 3).reshape(B, Lp, D)[:, :L, :]

    # --- fused tail: out-proj + residual + norm1 + FFN(gelu) + residual + norm2
    out = encoder_tail(o.reshape(B * L, D), x.reshape(B * L, D), p)
    return out.reshape(B, L, D)


def reformer_forward(params, x_enc, *, n_heads, bucket_size, n_hashes):
    # DataEmbedding_wo_pos (x_mark=None): circular Conv1d(k=3, no bias), fused matmul.
    h = token_embedding(x_enc, params["emb_w"])
    # embedding dropout = identity (inference)
    for lp in params["layers"]:
        h = encoder_layer(h, lp, n_heads=n_heads, bucket_size=bucket_size,
                          n_hashes=n_hashes)
    # final LayerNorm fused with torch.mean(enc_out, dim=1)
    return final_norm_mean(h, params["norm_g"], params["norm_b"])


# ----------------------------------------------------------------------------
# Deterministic parameter init (matmul weights stored in bf16 once, here;
# loading real torch weights would cast them once at conversion time too)
# ----------------------------------------------------------------------------
def init_params(key, *, c_in, d_model, n_heads, e_layers, d_ff, seq_len,
                bucket_size, n_hashes):
    dh = d_model // n_heads
    Lp = _round_up(seq_len, 2 * bucket_size)      # fit_length padding
    n_buckets = Lp // bucket_size

    def nrm(k, shape, scale=0.02):
        return scale * jax.random.normal(k, shape, dtype=jnp.float32)

    ks = iter(jax.random.split(key, 1 + e_layers * 5))
    # taps[k] is the Conv1d tap applied to x[l-1+k] (circular); stack to (3C, D).
    taps = nrm(next(ks), (3, c_in, d_model))
    params = {
        "emb_w": taps.reshape(3 * c_in, d_model).astype(jnp.bfloat16),
        "norm_g": jnp.ones((1, d_model), jnp.float32),
        "norm_b": jnp.zeros((1, d_model), jnp.float32),
        "layers": [],
    }
    for _ in range(e_layers):
        lp = {
            "wqkv": nrm(next(ks), (d_model, 2 * d_model)).astype(jnp.bfloat16),
            "wo": nrm(next(ks), (d_model, d_model)).astype(jnp.bfloat16),
            "bo": jnp.zeros((d_model,), jnp.float32),
            # TODO(synk): torch samples fresh LSH random rotations every forward;
            # here they are drawn once at init for determinism.
            "rot": jax.random.normal(next(ks), (1, dh, n_hashes, n_buckets // 2), jnp.float32),
            "ln1_g": jnp.ones((1, d_model), jnp.float32),
            "ln1_b": jnp.zeros((1, d_model), jnp.float32),
            "w1": nrm(next(ks), (d_model, d_ff)).astype(jnp.bfloat16),
            "b1": jnp.zeros((d_ff,), jnp.float32),
            "w2": nrm(next(ks), (d_ff, d_model)).astype(jnp.bfloat16),
            "b2": jnp.zeros((d_model,), jnp.float32),
            "ln2_g": jnp.ones((1, d_model), jnp.float32),
            "ln2_b": jnp.zeros((1, d_model), jnp.float32),
        }
        params["layers"].append(lp)
    return params


# ----------------------------------------------------------------------------
if __name__ == "__main__":
    B, L, C_IN = 2, 16, 4
    D_MODEL, N_HEADS, E_LAYERS, D_FF = 32, 4, 2, 512
    BUCKET_SIZE, N_HASHES = 4, 4

    key = jax.random.PRNGKey(0)
    k_param, k_x = jax.random.split(key)
    params = init_params(
        k_param, c_in=C_IN, d_model=D_MODEL, n_heads=N_HEADS, e_layers=E_LAYERS,
        d_ff=D_FF, seq_len=L, bucket_size=BUCKET_SIZE, n_hashes=N_HASHES,
    )
    x_enc = jax.random.normal(k_x, (B, L, C_IN), jnp.float32)

    fwd = jax.jit(functools.partial(
        reformer_forward, n_heads=N_HEADS, bucket_size=BUCKET_SIZE, n_hashes=N_HASHES))
    out = jax.block_until_ready(fwd(params, x_enc))
    assert out.shape == (B, D_MODEL), out.shape
    assert bool(jnp.all(jnp.isfinite(out)))
    print("KERNEL_OK")
</pallas_src>

<mosaic_0001>
module attributes {stable_mosaic.version = 11 : i64} {
  func.func @_linear_kernel(%arg0: i32, %arg1: memref<32x12xf32, #tpu.memory_space<vmem>>, %arg2: memref<12x32xbf16, #tpu.memory_space<vmem>>, %arg3: memref<1x32xf32, #tpu.memory_space<vmem>>, %arg4: memref<32x32xf32, #tpu.memory_space<vmem>>) attributes {dimension_semantics = [#tpu.dimension_semantics<parallel>], iteration_bounds = array<i64: 1>, scalar_prefetch = 0 : i64, scratch_operands = 0 : i64, tpu.core_type = #tpu.core_type<tc>, window_params = [{transform_indices = @transform_0, window_bounds = array<i64: 32, 12>}, {pipeline_mode = #tpu.pipeline_mode<synchronous>, transform_indices = @transform_1, window_bounds = array<i64: 12, 32>}, {pipeline_mode = #tpu.pipeline_mode<synchronous>, transform_indices = @transform_2, window_bounds = array<i64: 1, 32>}, {transform_indices = @transform_3, window_bounds = array<i64: 32, 32>}]} {
    %c0 = arith.constant 0 : index
    %c0_0 = arith.constant 0 : index
    %0 = vector.load %arg1[%c0, %c0_0] : memref<32x12xf32, #tpu.memory_space<vmem>>, vector<32x12xf32>
    %1 = arith.truncf %0 : vector<32x12xf32> to vector<32x12xbf16>
    %c0_1 = arith.constant 0 : index
    %c0_2 = arith.constant 0 : index
    %2 = vector.load %arg2[%c0_1, %c0_2] : memref<12x32xbf16, #tpu.memory_space<vmem>>, vector<12x32xbf16>
    %cst = arith.constant dense<0.000000e+00> : vector<32x32xf32>
    %3 = tpu.matmul %1, %2, %cst {dimension_numbers = #tpu.dot_dimension_numbers<[1], [0], [0], [1], [0, 0, 1, 1], [], []>} : vector<32x12xbf16>, vector<12x32xbf16>, vector<32x32xf32> -> vector<32x32xf32>
    %c0_3 = arith.constant 0 : index
    %c0_4 = arith.constant 0 : index
    %4 = vector.load %arg3[%c0_3, %c0_4] : memref<1x32xf32, #tpu.memory_space<vmem>>, vector<1x32xf32>
    %5 = vector.broadcast %4 : vector<1x32xf32> to vector<32x32xf32>
    %6 = arith.addf %3, %5 : vector<32x32xf32>
    %c0_5 = arith.constant 0 : index
    %c0_6 = arith.constant 0 : index
    %7 = vector.load %arg4[%c0_5, %c0_6] : memref<32x32xf32, #tpu.memory_space<vmem>>, vector<32x32xf32>
    tpu.vector_store %arg4[%c0_5, %c0_6], %6 {strides = array<i32>} : memref<32x32xf32, #tpu.memory_space<vmem>>, vector<32x32xf32>,
    return
  }
  func.func @transform_0(%arg0: i32) -> (i32, i32) {
    %c0_i32 = arith.constant 0 : i32
    %c0_i32_0 = arith.constant 0 : i32
    return %arg0, %c0_i32 : i32, i32
  }
  func.func @transform_1(%arg0: i32) -> (i32, i32) {
    %c0_i32 = arith.constant 0 : i32
    %c0_i32_0 = arith.constant 0 : i32
    %c0_i32_1 = arith.constant 0 : i32
    return %c0_i32, %c0_i32_0 : i32, i32
  }
  func.func @transform_2(%arg0: i32) -> (i32, i32) {
    %c0_i32 = arith.constant 0 : i32
    %c0_i32_0 = arith.constant 0 : i32
    %c0_i32_1 = arith.constant 0 : i32
    return %c0_i32, %c0_i32_0 : i32, i32
  }
  func.func @transform_3(%arg0: i32) -> (i32, i32) {
    %c0_i32 = arith.constant 0 : i32
    %c0_i32_0 = arith.constant 0 : i32
    return %arg0, %c0_i32 : i32, i32
  }
}

module attributes {stable_mosaic.version = 11 : i64} {
  func.func @_linear_kernel(%arg0: i32, %arg1: memref<32x32xf32, #tpu.memory_space<vmem>>, %arg2: memref<32x64xbf16, #tpu.memory_space<vmem>>, %arg3: memref<1x64xf32, #tpu.memory_space<vmem>>, %arg4: memref<32x64xf32, #tpu.memory_space<vmem>>) attributes {dimension_semantics = [#tpu.dimension_semantics<parallel>], iteration_bounds = array<i64: 1>, scalar_prefetch = 0 : i64, scratch_operands = 0 : i64, tpu.core_type = #tpu.core_type<tc>, window_params = [{transform_indices = @transform_0, window_bounds = array<i64: 32, 32>}, {pipeline_mode = #tpu.pipeline_mode<synchronous>, transform_indices = @transform_1, window_bounds = array<i64: 32, 64>}, {pipeline_mode = #tpu.pipeline_mode<synchronous>, transform_indices = @transform_2, window_bounds = array<i64: 1, 64>}, {transform_indices = @transform_3, window_bounds = array<i64: 32, 64>}]} {
    %c0 = arith.constant 0 : index
    %c0_0 = arith.constant 0 : index
    %0 = vector.load %arg1[%c0, %c0_0] : memref<32x32xf32, #tpu.memory_space<vmem>>, vector<32x32xf32>
    %1 = arith.truncf %0 : vector<32x32xf32> to vector<32x32xbf16>
    %c0_1 = arith.constant 0 : index
    %c0_2 = arith.constant 0 : index
    %2 = vector.load %arg2[%c0_1, %c0_2] : memref<32x64xbf16, #tpu.memory_space<vmem>>, vector<32x64xbf16>
    %cst = arith.constant dense<0.000000e+00> : vector<32x64xf32>
    %3 = tpu.matmul %1, %2, %cst {dimension_numbers = #tpu.dot_dimension_numbers<[1], [0], [0], [1], [0, 0, 1, 1], [], []>} : vector<32x32xbf16>, vector<32x64xbf16>, vector<32x64xf32> -> vector<32x64xf32>
    %c0_3 = arith.constant 0 : index
    %c0_4 = arith.constant 0 : index
    %4 = vector.load %arg3[%c0_3, %c0_4] : memref<1x64xf32, #tpu.memory_space<vmem>>, vector<1x64xf32>
    %5 = vector.broadcast %4 : vector<1x64xf32> to vector<32x64xf32>
    %6 = arith.addf %3, %5 : vector<32x64xf32>
    %c0_5 = arith.constant 0 : index
    %c0_6 = arith.constant 0 : index
    %7 = vector.load %arg4[%c0_5, %c0_6] : memref<32x64xf32, #tpu.memory_space<vmem>>, vector<32x64xf32>
    tpu.vector_store %arg4[%c0_5, %c0_6], %6 {strides = array<i32>} : memref<32x64xf32, #tpu.memory_space<vmem>>, vector<32x64xf32>,
    return
  }
  func.func @transform_0(%arg0: i32) -> (i32, i32) {
    %c0_i32 = arith.constant 0 : i32
    %c0_i32_0 = arith.constant 0 : i32
    return %arg0, %c0_i32 : i32, i32
  }
  func.func @transform_1(%arg0: i32) -> (i32, i32) {
    %c0_i32 = arith.constant 0 : i32
    %c0_i32_0 = arith.constant 0 : i32
    %c0_i32_1 = arith.constant 0 : i32
    return %c0_i32, %c0_i32_0 : i32, i32
  }
  func.func @transform_2(%arg0: i32) -> (i32, i32) {
    %c0_i32 = arith.constant 0 : i32
    %c0_i32_0 = arith.constant 0 : i32
    %c0_i32_1 = arith.constant 0 : i32
    return %c0_i32, %c0_i32_0 : i32, i32
  }
  func.func @transform_3(%arg0: i32) -> (i32, i32) {
    %c0_i32 = arith.constant 0 : i32
    %c0_i32_0 = arith.constant 0 : i32
    return %arg0, %c0_i32 : i32, i32
  }
}

module attributes {stable_mosaic.version = 11 : i64} {
  func.func @_lsh_chunk_attn_kernel(%arg0: i32, %arg1: memref<32x4x8xf32, #tpu.memory_space<vmem>>, %arg2: memref<32x8x8xf32, #tpu.memory_space<vmem>>, %arg3: memref<32x8x8xf32, #tpu.memory_space<vmem>>, %arg4: memref<32x4xi32, #tpu.memory_space<vmem>>, %arg5: memref<32x8xi32, #tpu.memory_space<vmem>>, %arg6: memref<32x32xf32, #tpu.memory_space<vmem>>, %arg7: memref<32x4xf32, #tpu.memory_space<vmem>>) attributes {dimension_semantics = [#tpu.dimension_semantics<parallel>], iteration_bounds = array<i64: 4>, scalar_prefetch = 0 : i64, scratch_operands = 0 : i64, tpu.core_type = #tpu.core_type<tc>, window_params = [{transform_indices = @transform_0, window_bounds = array<i64: 32, 4, 8>}, {transform_indices = @transform_1, window_bounds = array<i64: 32, 8, 8>}, {transform_indices = @transform_2, window_bounds = array<i64: 32, 8, 8>}, {transform_indices = @transform_3, window_bounds = array<i64: 32, 4>}, {transform_indices = @transform_4, window_bounds = array<i64: 32, 8>}, {transform_indices = @transform_5, window_bounds = array<i64: 32, 32>}, {transform_indices = @transform_6, window_bounds = array<i64: 32, 4>}]} {
    %c0 = arith.constant 0 : index
    %c0_0 = arith.constant 0 : index
    %c0_1 = arith.constant 0 : index
    %0 = vector.load %arg1[%c0, %c0_0, %c0_1] : memref<32x4x8xf32, #tpu.memory_space<vmem>>, vector<32x4x8xf32>
    %1 = arith.truncf %0 : vector<32x4x8xf32> to vector<32x4x8xbf16>
    %c0_2 = arith.constant 0 : index
    %c0_3 = arith.constant 0 : index
    %c0_4 = arith.constant 0 : index
    %2 = vector.load %arg2[%c0_2, %c0_3, %c0_4] : memref<32x8x8xf32, #tpu.memory_space<vmem>>, vector<32x8x8xf32>
    %3 = arith.mulf %2, %2 : vector<32x8x8xf32>
    %cst = arith.constant dense<0.000000e+00> : vector<32x8xf32>
    %4 = vector.multi_reduction <add>, %3, %cst [1] : vector<32x8x8xf32> to vector<32x8xf32>
    %5 = vector.shape_cast %4 : vector<32x8xf32> to vector<32x1x8xf32>
    %cst_5 = arith.constant 1.000000e-24 : f32
    %6 = vector.broadcast %cst_5 : f32 to vector<32x1x8xf32>
    %7 = arith.maximumf %5, %6 : vector<32x1x8xf32>
    %8 = math.rsqrt %7 : vector<32x1x8xf32>
    %9 = vector.broadcast %8 : vector<32x1x8xf32> to vector<32x8x8xf32>
    %10 = arith.mulf %2, %9 : vector<32x8x8xf32>
    %11 = arith.truncf %10 : vector<32x8x8xf32> to vector<32x8x8xbf16>
    "tpu.trace_start"() <{level = 10 : i32, message = "gid,gdj->gij"}> : () -> ()
    %cst_6 = arith.constant dense<0.000000e+00> : vector<32x4x8xf32>
    %12 = tpu.matmul %1, %11, %cst_6 {dimension_numbers = #tpu.dot_dimension_numbers<[2], [1], [1], [2], [0, 0, 0, 1, 1, 2], [0], [0]>} : vector<32x4x8xbf16>, vector<32x8x8xbf16>, vector<32x4x8xf32> -> vector<32x4x8xf32>
    "tpu.trace_stop"() : () -> ()
    %cst_7 = arith.constant 0.353553385 : f32
    %13 = vector.broadcast %cst_7 : f32 to vector<32x4x8xf32>
    %14 = arith.mulf %12, %13 : vector<32x4x8xf32>
    %c0_8 = arith.constant 0 : index
    %c0_9 = arith.constant 0 : index
    %15 = vector.load %arg4[%c0_8, %c0_9] : memref<32x4xi32, #tpu.memory_space<vmem>>, vector<32x4xi32>
    %c0_10 = arith.constant 0 : index
    %c0_11 = arith.constant 0 : index
    %16 = vector.load %arg5[%c0_10, %c0_11] : memref<32x8xi32, #tpu.memory_space<vmem>>, vector<32x8xi32>
    %17 = vector.shape_cast %15 : vector<32x4xi32> to vector<32x4x1xi32>
    %18 = vector.shape_cast %16 : vector<32x8xi32> to vector<32x1x8xi32>
    %19 = vector.broadcast %17 : vector<32x4x1xi32> to vector<32x4x8xi32>
    %20 = vector.broadcast %18 : vector<32x1x8xi32> to vector<32x4x8xi32>
    %21 = arith.cmpi eq, %19, %20 : vector<32x4x8xi32>
    %cst_12 = arith.constant -5.000000e+04 : f32
    %22 = vector.broadcast %cst_12 : f32 to vector<32x4x8xf32>
    %23 = arith.select %21, %22, %14 : vector<32x4x8xi1>, vector<32x4x8xf32>
    %cst_13 = arith.constant dense<0xFF800000> : vector<32x4xf32>
    %24 = vector.multi_reduction <maximumf>, %23, %cst_13 [2] : vector<32x4x8xf32> to vector<32x4xf32>
    %25 = vector.shape_cast %24 : vector<32x4xf32> to vector<32x4x1xf32>
    %26 = vector.broadcast %25 : vector<32x4x1xf32> to vector<32x4x8xf32>
    %27 = arith.subf %23, %26 : vector<32x4x8xf32>
    %28 = math.exp %27 : vector<32x4x8xf32>
    %cst_14 = arith.constant dense<0.000000e+00> : vector<32x4xf32>
    %29 = vector.multi_reduction <add>, %28, %cst_14 [2] : vector<32x4x8xf32> to vector<32x4xf32>
    %30 = vector.shape_cast %29 : vector<32x4xf32> to vector<32x4x1xf32>
    %31 = tpu.reciprocal %30 {approx = true} : vector<32x4x1xf32> -> vector<32x4x1xf32>
    %32 = vector.broadcast %31 : vector<32x4x1xf32> to vector<32x4x8xf32>
    %33 = arith.mulf %28, %32 : vector<32x4x8xf32>
    %34 = arith.truncf %33 : vector<32x4x8xf32> to vector<32x4x8xbf16>
    %c0_15 = arith.constant 0 : index
    %c0_16 = arith.constant 0 : index
    %c0_17 = arith.constant 0 : index
    %35 = vector.load %arg3[%c0_15, %c0_16, %c0_17] : memref<32x8x8xf32, #tpu.memory_space<vmem>>, vector<32x8x8xf32>
    %36 = arith.truncf %35 : vector<32x8x8xf32> to vector<32x8x8xbf16>
    "tpu.trace_start"() <{level = 10 : i32, message = "gij,gjd->gid"}> : () -> ()
    %cst_18 = arith.constant dense<0.000000e+00> : vector<32x4x8xf32>
    %37 = tpu.matmul %34, %36, %cst_18 {dimension_numbers = #tpu.dot_dimension_numbers<[2], [1], [1], [2], [0, 0, 0, 1, 1, 2], [0], [0]>} : vector<32x4x8xbf16>, vector<32x8x8xbf16>, vector<32x4x8xf32> -> vector<32x4x8xf32>
    "tpu.trace_stop"() : () -> ()
    %38 = vector.shape_cast %37 : vector<32x4x8xf32> to vector<32x32xf32>
    %c0_19 = arith.constant 0 : index
    %c0_20 = arith.constant 0 : index
    %39 = vector.load %arg6[%c0_19, %c0_20] : memref<32x32xf32, #tpu.memory_space<vmem>>, vector<32x32xf32>
    tpu.vector_store %arg6[%c0_19, %c0_20], %38 {strides = array<i32>} : memref<32x32xf32, #tpu.memory_space<vmem>>, vector<32x32xf32>,
    %40 = math.log %30 : vector<32x4x1xf32>
    %41 = arith.addf %25, %40 : vector<32x4x1xf32>
    %42 = vector.shape_cast %41 : vector<32x4x1xf32> to vector<32x4xf32>
    %c0_21 = arith.constant 0 : index
    %c0_22 = arith.constant 0 : index
    %43 = vector.load %arg7[%c0_21, %c0_22] : memref<32x4xf32, #tpu.memory_space<vmem>>, vector<32x4xf32>
    tpu.vector_store %arg7[%c0_21, %c0_22], %42 {strides = array<i32>} : memref<32x4xf32, #tpu.memory_space<vmem>>, vector<32x4xf32>,
    return
  }
  func.func @transform_0(%arg0: i32) -> (i32, i32, i32) {
    %c0_i32 = arith.constant 0 : i32
    %c0_i32_0 = arith.constant 0 : i32
    %c0_i32_1 = arith.constant 0 : i32
    return %arg0, %c0_i32, %c0_i32_0 : i32, i32, i32
  }
  func.func @transform_1(%arg0: i32) -> (i32, i32, i32) {
    %c0_i32 = arith.constant 0 : i32
    %c0_i32_0 = arith.constant 0 : i32
    %c0_i32_1 = arith.constant 0 : i32
    return %arg0, %c0_i32, %c0_i32_0 : i32, i32, i32
  }
  func.func @transform_2(%arg0: i32) -> (i32, i32, i32) {
    %c0_i32 = arith.constant 0 : i32
    %c0_i32_0 = arith.constant 0 : i32
    %c0_i32_1 = arith.constant 0 : i32
    return %arg0, %c0_i32, %c0_i32_0 : i32, i32, i32
  }
  func.func @transform_3(%arg0: i32) -> (i32, i32) {
    %c0_i32 = arith.constant 0 : i32
    %c0_i32_0 = arith.constant 0 : i32
    return %arg0, %c0_i32 : i32, i32
  }
  func.func @transform_4(%arg0: i32) -> (i32, i32) {
    %c0_i32 = arith.constant 0 : i32
    %c0_i32_0 = arith.constant 0 : i32
    return %arg0, %c0_i32 : i32, i32
  }
  func.func @transform_5(%arg0: i32) -> (i32, i32) {
    %c0_i32 = arith.constant 0 : i32
    %c0_i32_0 = arith.constant 0 : i32
    return %arg0, %c0_i32 : i32, i32
  }
  func.func @transform_6(%arg0: i32) -> (i32, i32) {
    %c0_i32 = arith.constant 0 : i32
    %c0_i32_0 = arith.constant 0 : i32
    return %arg0, %c0_i32 : i32, i32
  }
}

module attributes {stable_mosaic.version = 11 : i64} {
  func.func @_encoder_tail_kernel(%arg0: i32, %arg1: memref<32x32xf32, #tpu.memory_space<vmem>>, %arg2: memref<32x32xf32, #tpu.memory_space<vmem>>, %arg3: memref<32x32xbf16, #tpu.memory_space<vmem>>, %arg4: memref<1x32xf32, #tpu.memory_space<vmem>>, %arg5: memref<1x32xf32, #tpu.memory_space<vmem>>, %arg6: memref<1x32xf32, #tpu.memory_space<vmem>>, %arg7: memref<32x512xbf16, #tpu.memory_space<vmem>>, %arg8: memref<1x512xf32, #tpu.memory_space<vmem>>, %arg9: memref<512x32xbf16, #tpu.memory_space<vmem>>, %arg10: memref<1x32xf32, #tpu.memory_space<vmem>>, %arg11: memref<1x32xf32, #tpu.memory_space<vmem>>, %arg12: memref<1x32xf32, #tpu.memory_space<vmem>>, %arg13: memref<32x32xf32, #tpu.memory_space<vmem>>) attributes {dimension_semantics = [#tpu.dimension_semantics<parallel>], iteration_bounds = array<i64: 1>, scalar_prefetch = 0 : i64, scratch_operands = 0 : i64, tpu.core_type = #tpu.core_type<tc>, window_params = [{transform_indices = @transform_0, window_bounds = array<i64: 32, 32>}, {transform_indices = @transform_1, window_bounds = array<i64: 32, 32>}, {pipeline_mode = #tpu.pipeline_mode<synchronous>, transform_indices = @transform_2, window_bounds = array<i64: 32, 32>}, {pipeline_mode = #tpu.pipeline_mode<synchronous>, transform_indices = @transform_3, window_bounds = array<i64: 1, 32>}, {pipeline_mode = #tpu.pipeline_mode<synchronous>, transform_indices = @transform_4, window_bounds = array<i64: 1, 32>}, {pipeline_mode = #tpu.pipeline_mode<synchronous>, transform_indices = @transform_5, window_bounds = array<i64: 1, 32>}, {pipeline_mode = #tpu.pipeline_mode<synchronous>, transform_indices = @transform_6, window_bounds = array<i64: 32, 512>}, {pipeline_mode = #tpu.pipeline_mode<synchronous>, transform_indices = @transform_7, window_bounds = array<i64: 1, 512>}, {pipeline_mode = #tpu.pipeline_mode<synchronous>, transform_indices = @transform_8, window_bounds = array<i64: 512, 32>}, {pipeline_mode = #tpu.pipeline_mode<synchronous>, transform_indices = @transform_9, window_bounds = array<i64: 1, 32>}, {pipeline_mode = #tpu.pipeline_mode<synchronous>, transform_indices = @transform_10, window_bounds = array<i64: 1, 32>}, {pipeline_mode = #tpu.pipeline_mode<synchronous>, transform_indices = @transform_11, window_bounds = array<i64: 1, 32>}, {transform_indices = @transform_12, window_bounds = array<i64: 32, 32>}]} {
    %c0 = arith.constant 0 : index
    %c0_0 = arith.constant 0 : index
    %0 = vector.load %arg1[%c0, %c0_0] : memref<32x32xf32, #tpu.memory_space<vmem>>, vector<32x32xf32>
    %1 = arith.truncf %0 : vector<32x32xf32> to vector<32x32xbf16>
    %c0_1 = arith.constant 0 : index
    %c0_2 = arith.constant 0 : index
    %2 = vector.load %arg3[%c0_1, %c0_2] : memref<32x32xbf16, #tpu.memory_space<vmem>>, vector<32x32xbf16>
    %cst = arith.constant dense<0.000000e+00> : vector<32x32xf32>
    %3 = tpu.matmul %1, %2, %cst {dimension_numbers = #tpu.dot_dimension_numbers<[1], [0], [0], [1], [0, 0, 1, 1], [], []>} : vector<32x32xbf16>, vector<32x32xbf16>, vector<32x32xf32> -> vector<32x32xf32>
    %c0_3 = arith.constant 0 : index
    %c0_4 = arith.constant 0 : index
    %4 = vector.load %arg4[%c0_3, %c0_4] : memref<1x32xf32, #tpu.memory_space<vmem>>, vector<1x32xf32>
    %5 = vector.broadcast %4 : vector<1x32xf32> to vector<32x32xf32>
    %6 = arith.addf %3, %5 : vector<32x32xf32>
    %c0_5 = arith.constant 0 : index
    %c0_6 = arith.constant 0 : index
    %7 = vector.load %arg2[%c0_5, %c0_6] : memref<32x32xf32, #tpu.memory_space<vmem>>, vector<32x32xf32>
    %8 = arith.addf %7, %6 : vector<32x32xf32>
    %c0_7 = arith.constant 0 : index
    %c0_8 = arith.constant 0 : index
    %9 = vector.load %arg5[%c0_7, %c0_8] : memref<1x32xf32, #tpu.memory_space<vmem>>, vector<1x32xf32>
    %c0_9 = arith.constant 0 : index
    %c0_10 = arith.constant 0 : index
    %10 = vector.load %arg6[%c0_9, %c0_10] : memref<1x32xf32, #tpu.memory_space<vmem>>, vector<1x32xf32>
    %cst_11 = arith.constant dense<0.000000e+00> : vector<32xf32>
    %11 = vector.multi_reduction <add>, %8, %cst_11 [1] : vector<32x32xf32> to vector<32xf32>
    %12 = vector.shape_cast %11 : vector<32xf32> to vector<32x1xf32>
    %cst_12 = arith.constant 3.200000e+01 : f32
    %13 = vector.broadcast %cst_12 : f32 to vector<32x1xf32>
    %14 = arith.divf %12, %13 : vector<32x1xf32>
    %15 = vector.broadcast %14 : vector<32x1xf32> to vector<32x32xf32>
    %16 = arith.subf %8, %15 : vector<32x32xf32>
    %17 = arith.mulf %16, %16 : vector<32x32xf32>
    %cst_13 = arith.constant dense<0.000000e+00> : vector<32xf32>
    %18 = vector.multi_reduction <add>, %17, %cst_13 [1] : vector<32x32xf32> to vector<32xf32>
    %19 = vector.shape_cast %18 : vector<32xf32> to vector<32x1xf32>
    %cst_14 = arith.constant 3.200000e+01 : f32
    %20 = vector.broadcast %cst_14 : f32 to vector<32x1xf32>
    %21 = arith.divf %19, %20 : vector<32x1xf32>
    %cst_15 = arith.constant 9.99999974E-6 : f32
    %22 = vector.broadcast %cst_15 : f32 to vector<32x1xf32>
    %23 = arith.addf %21, %22 : vector<32x1xf32>
    %24 = math.rsqrt %23 : vector<32x1xf32>
    %25 = vector.broadcast %24 : vector<32x1xf32> to vector<32x32xf32>
    %26 = arith.mulf %16, %25 : vector<32x32xf32>
    %27 = vector.broadcast %9 : vector<1x32xf32> to vector<32x32xf32>
    %28 = arith.mulf %26, %27 : vector<32x32xf32>
    %29 = vector.broadcast %10 : vector<1x32xf32> to vector<32x32xf32>
    %30 = arith.addf %28, %29 : vector<32x32xf32>
    %31 = arith.truncf %30 : vector<32x32xf32> to vector<32x32xbf16>
    %c0_16 = arith.constant 0 : index
    %c0_17 = arith.constant 0 : index
    %32 = vector.load %arg7[%c0_16, %c0_17] : memref<32x512xbf16, #tpu.memory_space<vmem>>, vector<32x512xbf16>
    %cst_18 = arith.constant dense<0.000000e+00> : vector<32x512xf32>
    %33 = tpu.matmul %31, %32, %cst_18 {dimension_numbers = #tpu.dot_dimension_numbers<[1], [0], [0], [1], [0, 0, 1, 1], [], []>} : vector<32x32xbf16>, vector<32x512xbf16>, vector<32x512xf32> -> vector<32x512xf32>
    %c0_19 = arith.constant 0 : index
    %c0_20 = arith.constant 0 : index
    %34 = vector.load %arg8[%c0_19, %c0_20] : memref<1x512xf32, #tpu.memory_space<vmem>>, vector<1x512xf32>
    %35 = vector.broadcast %34 : vector<1x512xf32> to vector<32x512xf32>
    %36 = arith.addf %33, %35 : vector<32x512xf32>
    %cst_21 = arith.constant 5.000000e-01 : f32
    %37 = vector.broadcast %cst_21 : f32 to vector<32x512xf32>
    %38 = arith.mulf %37, %36 : vector<32x512xf32>
    %cst_22 = arith.constant 0.707106769 : f32
    %39 = vector.broadcast %cst_22 : f32 to vector<32x512xf32>
    %40 = arith.mulf %36, %39 : vector<32x512xf32>
    %cst_23 = arith.constant -4.000000e+00 : f32
    %cst_24 = arith.constant 4.000000e+00 : f32
    %41 = vector.broadcast %cst_23 : f32 to vector<32x512xf32>
    %42 = arith.maximumf %41, %40 : vector<32x512xf32>
    %43 = vector.broadcast %cst_24 : f32 to vector<32x512xf32>
    %44 = arith.minimumf %43, %42 : vector<32x512xf32>
    %45 = arith.mulf %44, %44 : vector<32x512xf32>
    %cst_25 = arith.constant 2.29050653E-4 : f32
    %46 = vector.broadcast %cst_25 : f32 to vector<32x512xf32>
    %47 = arith.mulf %46, %45 : vector<32x512xf32>
    %cst_26 = arith.constant 0.00340829091 : f32
    %48 = vector.broadcast %cst_26 : f32 to vector<32x512xf32>
    %49 = arith.addf %47, %48 : vector<32x512xf32>
    %50 = arith.mulf %49, %45 : vector<32x512xf32>
    %cst_27 = arith.constant 0.0509556942 : f32
    %51 = vector.broadcast %cst_27 : f32 to vector<32x512xf32>
    %52 = arith.addf %50, %51 : vector<32x512xf32>
    %53 = arith.mulf %52, %45 : vector<32x512xf32>
    %cst_28 = arith.constant 0.185208321 : f32
    %54 = vector.broadcast %cst_28 : f32 to vector<32x512xf32>
    %55 = arith.addf %53, %54 : vector<32x512xf32>
    %56 = arith.mulf %55, %45 : vector<32x512xf32>
    %cst_29 = arith.constant 1.12837911 : f32
    %57 = vector.broadcast %cst_29 : f32 to vector<32x512xf32>
    %58 = arith.addf %56, %57 : vector<32x512xf32>
    %cst_30 = arith.constant -1.17916031E-7 : f32
    %59 = vector.broadcast %cst_30 : f32 to vector<32x512xf32>
    %60 = arith.mulf %59, %45 : vector<32x512xf32>
    %cst_31 = arith.constant 2.35479656E-5 : f32
    %61 = vector.broadcast %cst_31 : f32 to vector<32x512xf32>
    %62 = arith.addf %60, %61 : vector<32x512xf32>
    %63 = arith.mulf %62, %45 : vector<32x512xf32>
    %cst_32 = arith.constant 0.00101796258 : f32
    %64 = vector.broadcast %cst_32 : f32 to vector<32x512xf32>
    %65 = arith.addf %63, %64 : vector<32x512xf32>
    %66 = arith.mulf %65, %45 : vector<32x512xf32>
    %cst_33 = arith.constant 0.0140704699 : f32
    %67 = vector.broadcast %cst_33 : f32 to vector<32x512xf32>
    %68 = arith.addf %66, %67 : vector<32x512xf32>
    %69 = arith.mulf %68, %45 : vector<32x512xf32>
    %cst_34 = arith.constant 0.110985048 : f32
    %70 = vector.broadcast %cst_34 : f32 to vector<32x512xf32>
    %71 = arith.addf %69, %70 : vector<32x512xf32>
    %72 = arith.mulf %71, %45 : vector<32x512xf32>
    %cst_35 = arith.constant 0.497469246 : f32
    %73 = vector.broadcast %cst_35 : f32 to vector<32x512xf32>
    %74 = arith.addf %72, %73 : vector<32x512xf32>
    %75 = arith.mulf %74, %45 : vector<32x512xf32>
    %cst_36 = arith.constant 1.000000e+00 : f32
    %76 = vector.broadcast %cst_36 : f32 to vector<32x512xf32>
    %77 = arith.addf %75, %76 : vector<32x512xf32>
    %78 = arith.mulf %44, %58 : vector<32x512xf32>
    %79 = arith.divf %78, %77 : vector<32x512xf32>
    %cst_37 = arith.constant 1.000000e+00 : f32
    %80 = vector.broadcast %cst_37 : f32 to vector<32x512xf32>
    %81 = arith.addf %80, %79 : vector<32x512xf32>
    %82 = arith.mulf %38, %81 : vector<32x512xf32>
    %83 = arith.truncf %82 : vector<32x512xf32> to vector<32x512xbf16>
    %c0_38 = arith.constant 0 : index
    %c0_39 = arith.constant 0 : index
    %84 = vector.load %arg9[%c0_38, %c0_39] : memref<512x32xbf16, #tpu.memory_space<vmem>>, vector<512x32xbf16>
    %cst_40 = arith.constant dense<0.000000e+00> : vector<32x32xf32>
    %85 = tpu.matmul %83, %84, %cst_40 {dimension_numbers = #tpu.dot_dimension_numbers<[1], [0], [0], [1], [0, 0, 1, 1], [], []>} : vector<32x512xbf16>, vector<512x32xbf16>, vector<32x32xf32> -> vector<32x32xf32>
    %c0_41 = arith.constant 0 : index
    %c0_42 = arith.constant 0 : index
    %86 = vector.load %arg10[%c0_41, %c0_42] : memref<1x32xf32, #tpu.memory_space<vmem>>, vector<1x32xf32>
    %87 = vector.broadcast %86 : vector<1x32xf32> to vector<32x32xf32>
    %88 = arith.addf %85, %87 : vector<32x32xf32>
    %89 = arith.addf %30, %88 : vector<32x32xf32>
    %c0_43 = arith.constant 0 : index
    %c0_44 = arith.constant 0 : index
    %90 = vector.load %arg11[%c0_43, %c0_44] : memref<1x32xf32, #tpu.memory_space<vmem>>, vector<1x32xf32>
    %c0_45 = arith.constant 0 : index
    %c0_46 = arith.constant 0 : index
    %91 = vector.load %arg12[%c0_45, %c0_46] : memref<1x32xf32, #tpu.memory_space<vmem>>, vector<1x32xf32>
    %cst_47 = arith.constant dense<0.000000e+00> : vector<32xf32>
    %92 = vector.multi_reduction <add>, %89, %cst_47 [1] : vector<32x32xf32> to vector<32xf32>
    %93 = vector.shape_cast %92 : vector<32xf32> to vector<32x1xf32>
    %cst_48 = arith.constant 3.200000e+01 : f32
    %94 = vector.broadcast %cst_48 : f32 to vector<32x1xf32>
    %95 = arith.divf %93, %94 : vector<32x1xf32>
    %96 = vector.broadcast %95 : vector<32x1xf32> to vector<32x32xf32>
    %97 = arith.subf %89, %96 : vector<32x32xf32>
    %98 = arith.mulf %97, %97 : vector<32x32xf32>
    %cst_49 = arith.constant dense<0.000000e+00> : vector<32xf32>
    %99 = vector.multi_reduction <add>, %98, %cst_49 [1] : vector<32x32xf32> to vector<32xf32>
    %100 = vector.shape_cast %99 : vector<32xf32> to vector<32x1xf32>
    %cst_50 = arith.constant 3.200000e+01 : f32
    %101 = vector.broadcast %cst_50 : f32 to vector<32x1xf32>
    %102 = arith.divf %100, %101 : vector<32x1xf32>
    %cst_51 = arith.constant 9.99999974E-6 : f32
    %103 = vector.broadcast %cst_51 : f32 to vector<32x1xf32>
    %104 = arith.addf %102, %103 : vector<32x1xf32>
    %105 = math.rsqrt %104 : vector<32x1xf32>
    %106 = vector.broadcast %105 : vector<32x1xf32> to vector<32x32xf32>
    %107 = arith.mulf %97, %106 : vector<32x32xf32>
    %108 = vector.broadcast %90 : vector<1x32xf32> to vector<32x32xf32>
    %109 = arith.mulf %107, %108 : vector<32x32xf32>
    %110 = vector.broadcast %91 : vector<1x32xf32> to vector<32x32xf32>
    %111 = arith.addf %109, %110 : vector<32x32xf32>
    %c0_52 = arith.constant 0 : index
    %c0_53 = arith.constant 0 : index
    %112 = vector.load %arg13[%c0_52, %c0_53] : memref<32x32xf32, #tpu.memory_space<vmem>>, vector<32x32xf32>
    tpu.vector_store %arg13[%c0_52, %c0_53], %111 {strides = array<i32>} : memref<32x32xf32, #tpu.memory_space<vmem>>, vector<32x32xf32>,
    return
  }
  func.func @transform_0(%arg0: i32) -> (i32, i32) {
    %c0_i32 = arith.constant 0 : i32
    %c0_i32_0 = arith.constant 0 : i32
    return %arg0, %c0_i32 : i32, i32
  }
  func.func @transform_1(%arg0: i32) -> (i32, i32) {
    %c0_i32 = arith.constant 0 : i32
    %c0_i32_0 = arith.constant 0 : i32
    return %arg0, %c0_i32 : i32, i32
  }
  func.func @transform_2(%arg0: i32) -> (i32, i32) {
    %c0_i32 = arith.constant 0 : i32
    %c0_i32_0 = arith.constant 0 : i32
    %c0_i32_1 = arith.constant 0 : i32
    return %c0_i32, %c0_i32_0 : i32, i32
  }
  func.func @transform_3(%arg0: i32) -> (i32, i32) {
    %c0_i32 = arith.constant 0 : i32
    %c0_i32_0 = arith.constant 0 : i32
    %c0_i32_1 = arith.constant 0 : i32
    return %c0_i32, %c0_i32_0 : i32, i32
  }
  func.func @transform_4(%arg0: i32) -> (i32, i32) {
    %c0_i32 = arith.constant 0 : i32
    %c0_i32_0 = arith.constant 0 : i32
    %c0_i32_1 = arith.constant 0 : i32
    return %c0_i32, %c0_i32_0 : i32, i32
  }
  func.func @transform_5(%arg0: i32) -> (i32, i32) {
    %c0_i32 = arith.constant 0 : i32
    %c0_i32_0 = arith.constant 0 : i32
    %c0_i32_1 = arith.constant 0 : i32
    return %c0_i32, %c0_i32_0 : i32, i32
  }
  func.func @transform_6(%arg0: i32) -> (i32, i32) {
    %c0_i32 = arith.constant 0 : i32
    %c0_i32_0 = arith.constant 0 : i32
    %c0_i32_1 = arith.constant 0 : i32
    return %c0_i32, %c0_i32_0 : i32, i32
  }
  func.func @transform_7(%arg0: i32) -> (i32, i32) {
    %c0_i32 = arith.constant 0 : i32
    %c0_i32_0 = arith.constant 0 : i32
    %c0_i32_1 = arith.constant 0 : i32
    return %c0_i32, %c0_i32_0 : i32, i32
  }
  func.func @transform_8(%arg0: i32) -> (i32, i32) {
    %c0_i32 = arith.constant 0 : i32
    %c0_i32_0 = arith.constant 0 : i32
    %c0_i32_1 = arith.constant 0 : i32
    return %c0_i32, %c0_i32_0 : i32, i32
  }
  func.func @transform_9(%arg0: i32) -> (i32, i32) {
    %c0_i32 = arith.constant 0 : i32
    %c0_i32_0 = arith.constant 0 : i32
    %c0_i32_1 = arith.constant 0 : i32
    return %c0_i32, %c0_i32_0 : i32, i32
  }
  func.func @transform_10(%arg0: i32) -> (i32, i32) {
    %c0_i32 = arith.constant 0 : i32
    %c0_i32_0 = arith.constant 0 : i32
    %c0_i32_1 = arith.constant 0 : i32
    return %c0_i32, %c0_i32_0 : i32, i32
  }
  func.func @transform_11(%arg0: i32) -> (i32, i32) {
    %c0_i32 = arith.constant 0 : i32
    %c0_i32_0 = arith.constant 0 : i32
    %c0_i32_1 = arith.constant 0 : i32
    return %c0_i32, %c0_i32_0 : i32, i32
  }
  func.func @transform_12(%arg0: i32) -> (i32, i32) {
    %c0_i32 = arith.constant 0 : i32
    %c0_i32_0 = arith.constant 0 : i32
    return %arg0, %c0_i32 : i32, i32
  }
}

module attributes {stable_mosaic.version = 11 : i64} {
  func.func @_final_norm_mean_kernel(%arg0: i32, %arg1: memref<1x16x32xf32, #tpu.memory_space<vmem>>, %arg2: memref<1x32xf32, #tpu.memory_space<vmem>>, %arg3: memref<1x32xf32, #tpu.memory_space<vmem>>, %arg4: memref<1x1x32xf32, #tpu.memory_space<vmem>>) attributes {dimension_semantics = [#tpu.dimension_semantics<parallel>], iteration_bounds = array<i64: 2>, scalar_prefetch = 0 : i64, scratch_operands = 0 : i64, tpu.core_type = #tpu.core_type<tc>, window_params = [{transform_indices = @transform_0, window_bounds = array<i64: 1, 16, 32>}, {pipeline_mode = #tpu.pipeline_mode<synchronous>, transform_indices = @transform_1, window_bounds = array<i64: 1, 32>}, {pipeline_mode = #tpu.pipeline_mode<synchronous>, transform_indices = @transform_2, window_bounds = array<i64: 1, 32>}, {transform_indices = @transform_3, window_bounds = array<i64: 1, 1, 32>}]} {
    %c0 = arith.constant 0 : index
    %c0_0 = arith.constant 0 : index
    %c0_1 = arith.constant 0 : index
    %0 = vector.load %arg1[%c0, %c0_0, %c0_1] : memref<1x16x32xf32, #tpu.memory_space<vmem>>, vector<1x16x32xf32>
    %1 = vector.shape_cast %0 : vector<1x16x32xf32> to vector<16x32xf32>
    %c0_2 = arith.constant 0 : index
    %c0_3 = arith.constant 0 : index
    %2 = vector.load %arg2[%c0_2, %c0_3] : memref<1x32xf32, #tpu.memory_space<vmem>>, vector<1x32xf32>
    %c0_4 = arith.constant 0 : index
    %c0_5 = arith.constant 0 : index
    %3 = vector.load %arg3[%c0_4, %c0_5] : memref<1x32xf32, #tpu.memory_space<vmem>>, vector<1x32xf32>
    %cst = arith.constant dense<0.000000e+00> : vector<16xf32>
    %4 = vector.multi_reduction <add>, %1, %cst [1] : vector<16x32xf32> to vector<16xf32>
    %5 = vector.shape_cast %4 : vector<16xf32> to vector<16x1xf32>
    %cst_6 = arith.constant 3.200000e+01 : f32
    %6 = vector.broadcast %cst_6 : f32 to vector<16x1xf32>
    %7 = arith.divf %5, %6 : vector<16x1xf32>
    %8 = vector.broadcast %7 : vector<16x1xf32> to vector<16x32xf32>
    %9 = arith.subf %1, %8 : vector<16x32xf32>
    %10 = arith.mulf %9, %9 : vector<16x32xf32>
    %cst_7 = arith.constant dense<0.000000e+00> : vector<16xf32>
    %11 = vector.multi_reduction <add>, %10, %cst_7 [1] : vector<16x32xf32> to vector<16xf32>
    %12 = vector.shape_cast %11 : vector<16xf32> to vector<16x1xf32>
    %cst_8 = arith.constant 3.200000e+01 : f32
    %13 = vector.broadcast %cst_8 : f32 to vector<16x1xf32>
    %14 = arith.divf %12, %13 : vector<16x1xf32>
    %cst_9 = arith.constant 9.99999974E-6 : f32
    %15 = vector.broadcast %cst_9 : f32 to vector<16x1xf32>
    %16 = arith.addf %14, %15 : vector<16x1xf32>
    %17 = math.rsqrt %16 : vector<16x1xf32>
    %18 = vector.broadcast %17 : vector<16x1xf32> to vector<16x32xf32>
    %19 = arith.mulf %9, %18 : vector<16x32xf32>
    %20 = vector.broadcast %2 : vector<1x32xf32> to vector<16x32xf32>
    %21 = arith.mulf %19, %20 : vector<16x32xf32>
    %22 = vector.broadcast %3 : vector<1x32xf32> to vector<16x32xf32>
    %23 = arith.addf %21, %22 : vector<16x32xf32>
    %cst_10 = arith.constant dense<0.000000e+00> : vector<32xf32>
    %24 = vector.multi_reduction <add>, %23, %cst_10 [0] : vector<16x32xf32> to vector<32xf32>
    %25 = vector.shape_cast %24 : vector<32xf32> to vector<1x32xf32>
    %cst_11 = arith.constant 1.600000e+01 : f32
    %26 = vector.broadcast %cst_11 : f32 to vector<1x32xf32>
    %27 = arith.divf %25, %26 : vector<1x32xf32>
    %c0_12 = arith.constant 0 : index
    %c0_13 = arith.constant 0 : index
    %c0_14 = arith.constant 0 : index
    %28 = vector.load %arg4[%c0_12, %c0_13, %c0_14] : memref<1x1x32xf32, #tpu.memory_space<vmem>>, vector<1x1x32xf32>
    %29 = vector.shape_cast %28 : vector<1x1x32xf32> to vector<1x32xf32>
    %30 = vector.shape_cast %27 : vector<1x32xf32> to vector<1x1x32xf32>
    tpu.vector_store %arg4[%c0_12, %c0_13, %c0_14], %30 {strides = array<i32>} : memref<1x1x32xf32, #tpu.memory_space<vmem>>, vector<1x1x32xf32>,
    return
  }
  func.func @transform_0(%arg0: i32) -> (i32, i32, i32) {
    %c0_i32 = arith.constant 0 : i32
    %c0_i32_0 = arith.constant 0 : i32
    %c0_i32_1 = arith.constant 0 : i32
    return %arg0, %c0_i32, %c0_i32_0 : i32, i32, i32
  }
  func.func @transform_1(%arg0: i32) -> (i32, i32) {
    %c0_i32 = arith.constant 0 : i32
    %c0_i32_0 = arith.constant 0 : i32
    %c0_i32_1 = arith.constant 0 : i32
    return %c0_i32, %c0_i32_0 : i32, i32
  }
  func.func @transform_2(%arg0: i32) -> (i32, i32) {
    %c0_i32 = arith.constant 0 : i32
    %c0_i32_0 = arith.constant 0 : i32
    %c0_i32_1 = arith.constant 0 : i32
    return %c0_i32, %c0_i32_0 : i32, i32
  }
  func.func @transform_3(%arg0: i32) -> (i32, i32, i32) {
    %c0_i32 = arith.constant 0 : i32
    %c0_i32_0 = arith.constant 0 : i32
    %c0_i32_1 = arith.constant 0 : i32
    return %arg0, %c0_i32, %c0_i32_0 : i32, i32, i32
  }
}

</mosaic_0001>

<llo_original>
// kernel: reformer_forward.9
$region0: #{reformer_forward.9}
  #allocation0 [shape = 'u32[]', space=smem, size = 0x4, offset = 0x4, fixed_abs, tag = 'smem constant byte address 0x4 - core index']
  #allocation1 [shape = 'u32[72,128]{1,0:T(1,128)}', space=vmem, size = 0x9000, scoped, tag = 'internal scratch']
  %s0 = inlined_call_operand.vmem [shape: f32[32,32], index: 0, kind: input, shape index: {}]
  %s1 = inlined_call_operand.vmem [shape: bf16[32,64], index: 1, kind: input, shape index: {}]
  %s2 = inlined_call_operand.vmem [shape: f32[1,64], index: 2, kind: input, shape index: {}]
  %s3 = inlined_call_operand.vmem [shape: f32[32,64], index: 3, kind: output, shape index: {}]
  %s4 = sld [smem:[#allocation0]]
  $region22: #{reformer_forward.9} parent=0
    _
  %s6 = ssub.s32 1, %s4
  %s7 = scalar_select 0, %s6, %s4
  // Predicated region
  $region2: #{reformer_forward.9} parent=0 // pred_check
    _
  $region3: #{reformer_forward.9} parent=0 // pred_check_branch
    %9 = sbr.rel (0) target = $region5
  $region4: #{reformer_forward.9} parent=0 // pred_region
    _
  $region5: #{reformer_forward.9} parent=0 // pred_fallthru
    _
  // Predicated region
  $region6: #{reformer_forward.9} parent=0 // pred_check
    _
  $region7: #{reformer_forward.9} parent=0 // pred_check_branch
    %11 = sbr.rel (0) target = $region9
  $region8: #{reformer_forward.9} parent=0 // pred_region
    _
  $region9: #{reformer_forward.9} parent=0 // pred_fallthru
    _
  // Predicated region
  $region10: #{reformer_forward.9} parent=0 // pred_check
    _
  $region11: #{reformer_forward.9} parent=0 // pred_check_branch
    %13 = sbr.rel (0) target = $region13
  $region12: #{reformer_forward.9} parent=0 // pred_region
    _
  $region13: #{reformer_forward.9} parent=0 // pred_fallthru
    _
  %v15 = vld [vmem:[%s0] sm:$0xff]
  %v16 = vld [vmem:[%s0 + $0x8] sm:$0xff]
  %v17 = vld [vmem:[%s0 + $0x10] sm:$0xff]
  %v18 = vld [vmem:[%s0 + $0x18] sm:$0xff]
  %v19 = vpack.c.bf16 %v16, %v15
  %v20 = vpack.c.bf16 %v18, %v17
  %v21 = vld [vmem:[%s1] sm:$0xf]
  %v22 = vld [vmem:[%s1 + $0x4] sm:$0xf]
  %v23 = vld [vmem:[%s1 + $0x8] sm:$0xf]
  %v24 = vld [vmem:[%s1 + $0xc] sm:$0xf]
  %v25 = vld [vmem:[%s2] sm:$0x1]
  %v27 = vperm.slane %v25, 0
  %v33 = vunpack.c.l.b16 %v21
  %v34 = vunpack.c.l.b16 %v22
  %v35 = vunpack.c.l.b16 %v23
  %v36 = vunpack.c.l.b16 %v24
  %v37 = vpack.c.b16 %v34, %v33
  %v38 = vpack.c.b16 %v36, %v35
  %vm41 = vcmask 261120
  %v43 = vsel %vm41, %v19, 0
  %v46 = vsel %vm41, %v20, 0
  %48 = vmatpush.bf16.msra.mxu0 0
  %49 = vmatpush.bf16.msra.mxu0 0
  %50 = vmatpush.bf16.msra.mxu0 0
  %51 = vmatpush.bf16.msra.mxu0 0
  %52 = vmatpush.bf16.msra.mxu0 0
  %53 = vmatpush.bf16.msra.mxu0 0
  %54 = vmatpush.bf16.msra.mxu0 %v38
  %55 = vmatpush.bf16.msra.mxu0 %v37
  %56 = vmatmul.bf16.gmra.mxu0 %v43
  %v57 = vpop.f32.mrf.mxu0
  %v58 = vadd.f32 %v27, %v57
  %v59 = vpop.f32.mrf.mxu0
  %v60 = vadd.f32 %v27, %v59
  %61 = vmatmul.bf16.gmra.mxu0 %v46
  %v62 = vpop.f32.mrf.mxu0
  %v63 = vadd.f32 %v27, %v62
  %v64 = vpop.f32.mrf.mxu0
  %v65 = vadd.f32 %v27, %v64
  %66 = vdwg.mxu0
  %vm67 = vcmask 523264
  %68 = vst.msk [vmem:[%s3] sm:$0xff] %vm67, %v58
  %69 = vst.msk [vmem:[%s3 + $0x8] sm:$0xff] %vm67, %v60
  %70 = vst.msk [vmem:[%s3 + $0x10] sm:$0xff] %vm67, %v63
  %71 = vst.msk [vmem:[%s3 + $0x18] sm:$0xff] %vm67, %v65
  // Predicated region
  $region14: #{reformer_forward.9} parent=0 // pred_check
    _
  $region15: #{reformer_forward.9} parent=0 // pred_check_branch
    %73 = sbr.rel (0) target = $region17
  $region16: #{reformer_forward.9} parent=0 // pred_region
    _
  $region17: #{reformer_forward.9} parent=0 // pred_fallthru
    _
  // Predicated region
  $region18: #{reformer_forward.9} parent=0 // pred_check
    _
  $region19: #{reformer_forward.9} parent=0 // pred_check_branch
    %75 = sbr.rel (0) target = $region21
  $region20: #{reformer_forward.9} parent=0 // pred_region
    _
  $region21: #{reformer_forward.9} parent=0 // pred_fallthru
    _

// kernel: reformer_forward.8
$region0: #{reformer_forward.8}
  #allocation0 [shape = 'u32[]', space=smem, size = 0x4, offset = 0x4, fixed_abs, tag = 'smem constant byte address 0x4 - core index']
  #allocation1 [shape = 'u32[72,128]{1,0:T(1,128)}', space=vmem, size = 0x9000, scoped, tag = 'internal scratch']
  %s0 = inlined_call_operand.vmem [shape: f32[32,12], index: 0, kind: input, shape index: {}]
  %s1 = inlined_call_operand.vmem [shape: bf16[12,32], index: 1, kind: input, shape index: {}]
  %s2 = inlined_call_operand.vmem [shape: f32[1,32], index: 2, kind: input, shape index: {}]
  %s3 = inlined_call_operand.vmem [shape: f32[32,32], index: 3, kind: output, shape index: {}]
  %s4 = sld [smem:[#allocation0]]
  $region22: #{reformer_forward.8} parent=0
    _
  %s6 = ssub.s32 1, %s4
  %s7 = scalar_select 0, %s6, %s4
  // Predicated region
  $region2: #{reformer_forward.8} parent=0 // pred_check
    _
  $region3: #{reformer_forward.8} parent=0 // pred_check_branch
    %9 = sbr.rel (0) target = $region5
  $region4: #{reformer_forward.8} parent=0 // pred_region
    _
  $region5: #{reformer_forward.8} parent=0 // pred_fallthru
    _
  // Predicated region
  $region6: #{reformer_forward.8} parent=0 // pred_check
    _
  $region7: #{reformer_forward.8} parent=0 // pred_check_branch
    %11 = sbr.rel (0) target = $region9
  $region8: #{reformer_forward.8} parent=0 // pred_region
    _
  $region9: #{reformer_forward.8} parent=0 // pred_fallthru
    _
  // Predicated region
  $region10: #{reformer_forward.8} parent=0 // pred_check
    _
  $region11: #{reformer_forward.8} parent=0 // pred_check_branch
    %13 = sbr.rel (0) target = $region13
  $region12: #{reformer_forward.8} parent=0 // pred_region
    _
  $region13: #{reformer_forward.8} parent=0 // pred_fallthru
    _
  %v15 = vld [vmem:[%s0] sm:$0xff]
  %v16 = vld [vmem:[%s0 + $0x8] sm:$0xff]
  %v17 = vld [vmem:[%s0 + $0x10] sm:$0xff]
  %v18 = vld [vmem:[%s0 + $0x18] sm:$0xff]
  %v19 = vpack.c.bf16 %v16, %v15
  %v20 = vpack.c.bf16 %v18, %v17
  %v21 = vld [vmem:[%s1] sm:$0xf]
  %v22 = vld [vmem:[%s1 + $0x4] sm:$0x3]
  %v23 = vld [vmem:[%s2] sm:$0x1]
  %v25 = vperm.slane %v23, 0
  %v29 = vunpack.c.l.b16 %v21
  %v30 = vunpack.c.l.b16 %v22
  %v31 = vpack.c.b16 %v30, %v29
  %vm32 = vcmask 97280
  %v34 = vsel %vm32, %v19, 0
  %v37 = vsel %vm32, %v20, 0
  %vm39 = vcmask 1045504
  %v41 = vsel %vm39, %v31, 0
  %43 = vmatpush.bf16.msra.mxu0 0
  %44 = vmatpush.bf16.msra.mxu0 0
  %45 = vmatpush.bf16.msra.mxu0 0
  %46 = vmatpush.bf16.msra.mxu0 0
  %47 = vmatpush.bf16.msra.mxu0 0
  %48 = vmatpush.bf16.msra.mxu0 0
  %49 = vmatpush.bf16.msra.mxu0 0
  %50 = vmatpush.bf16.msra.mxu0 %v41
  %51 = vmatmul.bf16.gmra.mxu0 %v34
  %v52 = vpop.f32.mrf.mxu0
  %v53 = vadd.f32 %v25, %v52
  %v54 = vpop.f32.mrf.mxu0
  %v55 = vadd.f32 %v25, %v54
  %56 = vmatmul.bf16.gmra.mxu0 %v37
  %v57 = vpop.f32.mrf.mxu0
  %v58 = vadd.f32 %v25, %v57
  %v59 = vpop.f32.mrf.mxu0
  %v60 = vadd.f32 %v25, %v59
  %61 = vdwg.mxu0
  %vm62 = vcmask 261120
  %63 = vst.msk [vmem:[%s3] sm:$0xff] %vm62, %v53
  %64 = vst.msk [vmem:[%s3 + $0x8] sm:$0xff] %vm62, %v55
  %65 = vst.msk [vmem:[%s3 + $0x10] sm:$0xff] %vm62, %v58
  %66 = vst.msk [vmem:[%s3 + $0x18] sm:$0xff] %vm62, %v60
  // Predicated region
  $region14: #{reformer_forward.8} parent=0 // pred_check
    _
  $region15: #{reformer_forward.8} parent=0 // pred_check_branch
    %68 = sbr.rel (0) target = $region17
  $region16: #{reformer_forward.8} parent=0 // pred_region
    _
  $region17: #{reformer_forward.8} parent=0 // pred_fallthru
    _
  // Predicated region
  $region18: #{reformer_forward.8} parent=0 // pred_check
    _
  $region19: #{reformer_forward.8} parent=0 // pred_check_branch
    %70 = sbr.rel (0) target = $region21
  $region20: #{reformer_forward.8} parent=0 // pred_region
    _
  $region21: #{reformer_forward.8} parent=0 // pred_fallthru
    _

// kernel: reformer_forward.15
$region0: #{reformer_forward.15}
  #allocation0 [shape = 'u32[]', space=smem, size = 0x4, offset = 0x4, fixed_abs, tag = 'smem constant byte address 0x4 - core index']
  #allocation1 [shape = 'u32[72,128]{1,0:T(1,128)}', space=vmem, size = 0x9000, scoped, tag = 'internal scratch']
  %s0 = inlined_call_operand.vmem [shape: f32[2,16,32], index: 0, kind: input, shape index: {}]
  %s1 = inlined_call_operand.vmem [shape: f32[1,32], index: 1, kind: input, shape index: {}]
  %s2 = inlined_call_operand.vmem [shape: f32[1,32], index: 2, kind: input, shape index: {}]
  %s3 = inlined_call_operand.hbm [shape: f32[2,1,32], index: 3, kind: output, shape index: {}]
  %s4 = sld [smem:[#allocation0]]
  $region45: #{reformer_forward.15} parent=0
    _
  %s6 = ssub.s32 1, %s4
  %s7 = scalar_select 0, %s6, %s4
  $region1: #{reformer_forward.15} parent=0
    #allocation2 [shape = 'u8[1024]{0}', space=vmem, size = 0x400, scoped, tag = 'output window, operand 0']
    #allocation3 [shape = 's32[2]{0}', space=sflag, size = 0x8, scoped, tag = 'scoped memory for reformer_forward.15']
    %8 = vsyncpa [#allocation3], 0
    %s9 = scalar_lea.sflag [#allocation3], 1
    %10 = vsyncpa %s9, 0
    loop: start=0, step=1, limit=4
    $region2: #{reformer_forward.15} parent=1 // loop_pre_header
      _
    $region3: #{reformer_forward.15} parent=1 // loop_header
      %s12 = sphi 0, %s16
      %p13 = scmp.ge.s32.totalorder %s12, 4
      %s22 = sphi 0, %s24
      %s25 = sphi 0, %s22
      %s26 = sphi 0, %s25
      %s42 = sphi 0, %s26
      %s46 = sphi 0, %s46
      %s48 = sphi 0, %s46
      %s49 = sphi 0, %s48
      %s63 = sphi 0, %s49
      %s67 = sphi 0, %s67
      %s69 = sphi 0, %s67
      %s70 = sphi 0, %s69
      %s84 = sphi 0, %s70
      %s90 = sphi 0, %s92
      %s93 = sphi 0, %s90
      %s94 = sphi 0, %s93
      %s110 = sphi 0, %s94
    $region4: #{reformer_forward.15} parent=1 // loop_header_branch
      %15 = sbr.rel (%p13) target = $region8
    $region5: #{reformer_forward.15} parent=1 // loop_body
      %s17 = ssub.s32 %s12, 1
      %s18 = ssub.s32 %s12, 2
      %s19 = sadd.s32 %s12, 1
      %s20 = ssub.s32 %s12, %s19
      %p21 = scmp.eq.s32.totalorder %s20, 0
      %s23 = sadd.s32 %s22, 1
      %s24 = scalar_select %p21, %s22, %s23
      %p27 = pneg %p21
      %p28 = scmp.eq.s32.totalorder %s12, 1
      %p29 = por %p27, %p28
      %p30 = scmp.ne.s32.totalorder %s22, %s25
      %p31 = scmp.eq.s32.totalorder %s12, 0
      %p32 = por %p30, %p31
      %p33 = scmp.ne.s32.totalorder %s22, %s25
      %p34 = scmp.eq.s32.totalorder %s17, 1
      %p35 = por %p33, %p34
      %p36 = scmp.ne.s32.totalorder %s25, %s26
      %p37 = scmp.eq.s32.totalorder %s17, 0
      %p38 = por %p36, %p37
      %p39 = scmp.ne.s32.totalorder %s25, %s26
      %p40 = scmp.eq.s32.totalorder %s18, 1
      %p41 = por %p39, %p40
      %p43 = scmp.ne.s32.totalorder %s26, %s42
      %p44 = scmp.eq.s32.totalorder %s18, 0
      %p45 = por %p43, %p44
      %s47 = sadd.s32 %s46, 1
      %p50 = scmp.eq.s32.totalorder %s12, 1
      %p51 = scmp.ne.s32.totalorder %s46, %s48
      %p52 = scmp.eq.s32.totalorder %s12, 0
      %p53 = por %p51, %p52
      %p54 = scmp.ne.s32.totalorder %s46, %s48
      %p55 = scmp.eq.s32.totalorder %s17, 1
      %p56 = por %p54, %p55
      %p57 = scmp.ne.s32.totalorder %s48, %s49
      %p58 = scmp.eq.s32.totalorder %s17, 0
      %p59 = por %p57, %p58
      %p60 = scmp.ne.s32.totalorder %s48, %s49
      %p61 = scmp.eq.s32.totalorder %s18, 1
      %p62 = por %p60, %p61
      %p64 = scmp.ne.s32.totalorder %s49, %s63
      %p65 = scmp.eq.s32.totalorder %s18, 0
      %p66 = por %p64, %p65
      %s68 = sadd.s32 %s67, 1
      %p71 = scmp.eq.s32.totalorder %s12, 1
      %p72 = scmp.ne.s32.totalorder %s67, %s69
      %p73 = scmp.eq.s32.totalorder %s12, 0
      %p74 = por %p72, %p73
      %p75 = scmp.ne.s32.totalorder %s67, %s69
      %p76 = scmp.eq.s32.totalorder %s17, 1
      %p77 = por %p75, %p76
      %p78 = scmp.ne.s32.totalorder %s69, %s70
      %p79 = scmp.eq.s32.totalorder %s17, 0
      %p80 = por %p78, %p79
      %p81 = scmp.ne.s32.totalorder %s69, %s70
      %p82 = scmp.eq.s32.totalorder %s18, 1
      %p83 = por %p81, %p82
      %p85 = scmp.ne.s32.totalorder %s70, %s84
      %p86 = scmp.eq.s32.totalorder %s18, 0
      %p87 = por %p85, %p86
      %s88 = ssub.s32 %s12, %s19
      %p89 = scmp.eq.s32.totalorder %s88, 0
      %s91 = sadd.s32 %s90, 1
      %s92 = scalar_select %p89, %s90, %s91
      %p95 = pneg %p89
      %p96 = scmp.eq.s32.totalorder %s12, 1
      %p97 = por %p95, %p96
      %p98 = scmp.ne.s32.totalorder %s90, %s93
      %p99 = scmp.eq.s32.totalorder %s12, 0
      %p100 = por %p98, %p99
      %p101 = scmp.ne.s32.totalorder %s90, %s93
      %p102 = scmp.eq.s32.totalorder %s17, 1
      %p103 = por %p101, %p102
      %p104 = scmp.ne.s32.totalorder %s93, %s94
      %p105 = scmp.eq.s32.totalorder %s17, 0
      %p106 = por %p104, %p105
      %p107 = scmp.ne.s32.totalorder %s93, %s94
      %p108 = scmp.eq.s32.totalorder %s18, 1
      %p109 = por %p107, %p108
      %p111 = scmp.ne.s32.totalorder %s94, %s110
      %p112 = scmp.eq.s32.totalorder %s18, 0
      %p113 = por %p111, %p112
      %p114 = scmp.le.s32.totalorder 1, %s12
      %p115 = scmp.lt.s32.totalorder %s12, 3
      %p116 = pnand %p114, %p115
      %p117 = pneg %p116
      // Predicated region
      $region9: #{reformer_forward.15} parent=5 // pred_check
        _
      $region10: #{reformer_forward.15} parent=5 // pred_check_branch
        %119 = sbr.rel (%p116) target = $region12
      $region11: #{reformer_forward.15} parent=5 // pred_region
        %s120 = ssub.s32 %s12, 1
        // Predicated region
        $region13: #{reformer_forward.15} parent=11 // pred_check
          %p121 = pneg %p59
        $region14: #{reformer_forward.15} parent=11 // pred_check_branch
          %123 = sbr.rel (%p121) target = $region16
        $region15: #{reformer_forward.15} parent=11 // pred_region
          _
        $region16: #{reformer_forward.15} parent=11 // pred_fallthru
          _
        // Predicated region
        $region17: #{reformer_forward.15} parent=11 // pred_check
          %p124 = pneg %p80
        $region18: #{reformer_forward.15} parent=11 // pred_check_branch
          %126 = sbr.rel (%p124) target = $region20
        $region19: #{reformer_forward.15} parent=11 // pred_region
          _
        $region20: #{reformer_forward.15} parent=11 // pred_fallthru
          _
      $region12: #{reformer_forward.15} parent=5 // pred_fallthru
        _
      %p127 = scmp.lt.s32.totalorder %s12, 2
      // Predicated region
      $region21: #{reformer_forward.15} parent=5 // pred_check
        %p128 = pneg %p127
      $region22: #{reformer_forward.15} parent=5 // pred_check_branch
        %130 = sbr.rel (%p128) target = $region24
      $region23: #{reformer_forward.15} parent=5 // pred_region
        // Predicated region
        $region25: #{reformer_forward.15} parent=23 // pred_check
          %p131 = pneg %p32
        $region26: #{reformer_forward.15} parent=23 // pred_check_branch
          %133 = sbr.rel (%p131) target = $region28
        $region27: #{reformer_forward.15} parent=23 // pred_region
          %p134 = scmp.lt.s32.totalorder %s12, 1
          %s135 = scalar_select %p134, %s12, 1
          %s136 = smul.addr %s135, 2
          %s137 = smul.addr %s136, 8
          %s138 = scalar_lea.vmem %s0, %s137
        $region28: #{reformer_forward.15} parent=23 // pred_fallthru
          _
      $region24: #{reformer_forward.15} parent=5 // pred_fallthru
        _
      %p139 = scmp.le.s32.totalorder 1, %s12
      %p140 = scmp.lt.s32.totalorder %s12, 3
      %p141 = pnand %p139, %p140
      %p142 = pneg %p141
      // Predicated region
      $region29: #{reformer_forward.15} parent=5 // pred_check
        _
      $region30: #{reformer_forward.15} parent=5 // pred_check_branch
        %144 = sbr.rel (%p141) target = $region32
      $region31: #{reformer_forward.15} parent=5 // pred_region
        %s145 = ssub.s32 %s12, 1
        %p146 = scmp.lt.s32.totalorder %s17, 1
        %s147 = scalar_select %p146, %s17, 1
        %s148 = smul.addr %s147, 2
        %s149 = smul.addr %s148, 8
        %s150 = scalar_lea.vmem %s0, %s149
        %p151 = pneg %p38
        %p152 = pneg %p35
        %p153 = pneg %p59
        %p154 = pneg %p56
        %p155 = pneg %p80
        %p156 = pneg %p77
        %p157 = pneg %p106
        %p158 = pneg %p103
        %s159 = sand.u32 %s93, 1
        %s160 = scalar_lea.sflag [#allocation3], %s159
        %s161 = sand.u32 %s93, 1
        %s162 = scalar_lea.vmem [#allocation2], %s161
        %p163 = scmp.lt.s32.totalorder %s17, 1
        %s164 = scalar_select %p163, %s17, 1
        %s165 = smul.addr %s164, 2
        %s166 = smul.addr %s165, 8
        %s167 = scalar_lea.vmem %s0, %s166
        %v168 = vld [vmem:[%s167] sm:$0xff]
        %v169 = vld [vmem:[%s167 + $0x8] sm:$0xff]
        %v170 = vld [vmem:[%s1] sm:$0x1]
        %v171 = vld [vmem:[%s2] sm:$0x1]
        %vm172 = vcmask 261120
        %v173 = vsel %vm172, %v168, 0.0
        %174 = vadd.xlane.f32.xlu0 %v173
        %v175 = vpop.xlane.xlu0 %174
        %v176 = vsel %vm172, %v169, 0.0
        %177 = vadd.xlane.f32.xlu0 %v176
        %v178 = vpop.xlane.xlu0 %177
        %v179 = vrcp.pop 32.0
        %v180 = vmul.f32 32.0, %v179
        %v181 = vsub.f32 1.0, %v180
        %v182 = vmul.f32 %v179, %v181
        %v183 = vadd.f32 %v179, %v182
        %vm184 = vweird.f32 %v179
        %v185 = vsel %vm184, %v179, %v183
        %v186 = vmul.f32 %v175, %v185
        %v187 = vmul.f32 %v178, %v185
        %v188 = vsub.f32 %v168, %v186
        %v189 = vsub.f32 %v169, %v187
        %v190 = vmul.f32 %v188, %v188
        %v191 = vmul.f32 %v189, %v189
        %v192 = vsel %vm172, %v190, 0.0
        %193 = vadd.xlane.f32.xlu0 %v192
        %v194 = vpop.xlane.xlu0 %193
        %v195 = vsel %vm172, %v191, 0.0
        %196 = vadd.xlane.f32.xlu0 %v195
        %v197 = vpop.xlane.xlu0 %196
        %v198 = vmul.f32 %v194, %v185
        %v199 = vmul.f32 %v197, %v185
        %v200 = vadd.f32 %v198, 1e-05
        %v201 = vadd.f32 %v199, 1e-05
        %v202 = vrsqrt.pop %v200
        %v203 = vmul.f32 %v202, %v200
        %v204 = vmul.f32 %v203, %v202
        %v205 = vmul.f32 0.5, %v204
        %v206 = vsub.f32 1.5, %v205
        %v207 = vmul.f32 %v202, %v206
        %vm208 = vweird.f32 %v200
        %vm209 = vweird.f32 %v202
        %vm210 = vmor %vm208, %vm209
        %v211 = vsel %vm210, %v202, %v207
        %v212 = vrsqrt.pop %v201
        %v213 = vmul.f32 %v212, %v201
        %v214 = vmul.f32 %v213, %v212
        %v215 = vmul.f32 0.5, %v214
        %v216 = vsub.f32 1.5, %v215
        %v217 = vmul.f32 %v212, %v216
        %vm218 = vweird.f32 %v201
        %vm219 = vweird.f32 %v212
        %vm220 = vmor %vm218, %vm219
        %v221 = vsel %vm220, %v212, %v217
        %v222 = vmul.f32 %v188, %v211
        %v223 = vmul.f32 %v189, %v221
        %v225 = vperm.slane %v170, 0
        %v227 = vmul.f32 %v222, %v225
        %v228 = vmul.f32 %v223, %v225
        %v230 = vperm.slane %v171, 0
        %v232 = vadd.f32 %v227, %v230
        %v233 = vadd.f32 %v228, %v230
        %v234 = vsel %vm172, %v232, 0.0
        %v235 = vsel %vm172, %v233, 0.0
        %v236 = vadd.f32 %v234, %v235
        %v237 = vrot.slane %v236, 4
        %v238 = vadd.f32 %v236, %v237
        %v239 = vrot.slane %v238, 2
        %v240 = vadd.f32 %v238, %v239
        %v241 = vrot.slane %v240, 1
        %v242 = vadd.f32 %v240, %v241
        %v243 = vrcp.pop 16.0
        %v244 = vmul.f32 16.0, %v243
        %v245 = vsub.f32 1.0, %v244
        %v246 = vmul.f32 %v243, %v245
        %v247 = vadd.f32 %v243, %v246
        %vm248 = vweird.f32 %v243
        %v249 = vsel %vm248, %v243, %v247
        %v250 = vmul.f32 %v242, %v249
        %vm251 = vcmask 253952
        %252 = vst.msk [vmem:[%s162] sm:$0x1] %vm251, %v250
        %s253 = sand.u32 %s93, 1
        %s254 = scalar_lea.sflag [#allocation3], %s253
        %s255 = sand.u32 %s93, 1
        %s256 = scalar_lea.vmem [#allocation2], %s255
        // Predicated region
        $region33: #{reformer_forward.15} parent=31 // pred_check
          %p257 = pneg %p103
        $region34: #{reformer_forward.15} parent=31 // pred_check_branch
          %259 = sbr.rel (%p257) target = $region36
        $region35: #{reformer_forward.15} parent=31 // pred_region
          %261 = vsyncadd %s254, 0
          %s262 = scalar_lea.hbm %s3, %s17
          %s264 = sshll.u32 %s256, 4
          %s265 = int_to_ptr.vmem [resolvable:$true] %s264
          %s266 = sshll.u32 %s262, 4
          %s267 = int_to_ptr.hbm [resolvable:$true] %s266
          %269 = dma.vmem_to_hbm [thread:$0]  %s265, 16, %s267, %s254
        $region36: #{reformer_forward.15} parent=31 // pred_fallthru
          _
      $region32: #{reformer_forward.15} parent=5 // pred_fallthru
        _
      %p270 = scmp.le.s32.totalorder 2, %s12
      // Predicated region
      $region37: #{reformer_forward.15} parent=5 // pred_check
        %p271 = pneg %p270
      $region38: #{reformer_forward.15} parent=5 // pred_check_branch
        %273 = sbr.rel (%p271) target = $region40
      $region39: #{reformer_forward.15} parent=5 // pred_region
        %s274 = ssub.s32 %s12, 2
        // Predicated region
        $region41: #{reformer_forward.15} parent=39 // pred_check
          %p275 = pneg %p109
        $region42: #{reformer_forward.15} parent=39 // pred_check_branch
          %277 = sbr.rel (%p275) target = $region44
        $region43: #{reformer_forward.15} parent=39 // pred_region
          %s278 = sand.u32 %s94, 1
          %s279 = scalar_lea.sflag [#allocation3], %s278
          %s280 = sand.u32 %s94, 1
          %s281 = scalar_lea.vmem [#allocation2], %s280
          %283 = dma.done %s279, 16
        $region44: #{reformer_forward.15} parent=39 // pred_fallthru
          _
      $region40: #{reformer_forward.15} parent=5 // pred_fallthru
        _
    $region6: #{reformer_forward.15} parent=1 // loop_footer
      %s16 = sadd.s32 1, %s12
    $region7: #{reformer_forward.15} parent=1 // loop_footer_branch
      %11 = sbr.rel target = $region3
    $region8: #{reformer_forward.15} parent=1 // loop_exit
      _
    %284 = vsyncpa [#allocation3], 1
    %s285 = scalar_lea.sflag [#allocation3], 1
    %286 = vsyncpa %s285, 1

// kernel: reformer_forward.11
$region0: #{reformer_forward.11}
  #allocation0 [shape = 'u32[]', space=smem, size = 0x4, offset = 0x4, fixed_abs, tag = 'smem constant byte address 0x4 - core index']
  #allocation1 [shape = 'u32[72,128]{1,0:T(1,128)}', space=vmem, size = 0x9000, scoped, tag = 'internal scratch']
  %s0 = inlined_call_operand.vmem [shape: f32[32,32], index: 0, kind: input, shape index: {}]
  %s1 = inlined_call_operand.vmem [shape: f32[32,32], index: 1, kind: input, shape index: {}]
  %s2 = inlined_call_operand.vmem [shape: bf16[32,32], index: 2, kind: input, shape index: {}]
  %s3 = inlined_call_operand.vmem [shape: f32[1,32], index: 3, kind: input, shape index: {}]
  %s4 = inlined_call_operand.vmem [shape: f32[1,32], index: 4, kind: input, shape index: {}]
  %s5 = inlined_call_operand.vmem [shape: f32[1,32], index: 5, kind: input, shape index: {}]
  %s6 = inlined_call_operand.vmem [shape: bf16[32,512], index: 6, kind: input, shape index: {}]
  %s7 = inlined_call_operand.vmem [shape: f32[1,512], index: 7, kind: input, shape index: {}]
  %s8 = inlined_call_operand.vmem [shape: bf16[512,32], index: 8, kind: input, shape index: {}]
  %s9 = inlined_call_operand.vmem [shape: f32[1,32], index: 9, kind: input, shape index: {}]
  %s10 = inlined_call_operand.vmem [shape: f32[1,32], index: 10, kind: input, shape index: {}]
  %s11 = inlined_call_operand.vmem [shape: f32[1,32], index: 11, kind: input, shape index: {}]
  %s12 = inlined_call_operand.vmem [shape: f32[32,32], index: 12, kind: output, shape index: {}]
  %s13 = sld [smem:[#allocation0]]
  $region58: #{reformer_forward.11} parent=0
    _
  %s15 = ssub.s32 1, %s13
  %s16 = scalar_select 0, %s15, %s13
  // Predicated region
  $region2: #{reformer_forward.11} parent=0 // pred_check
    _
  $region3: #{reformer_forward.11} parent=0 // pred_check_branch
    %18 = sbr.rel (0) target = $region5
  $region4: #{reformer_forward.11} parent=0 // pred_region
    _
  $region5: #{reformer_forward.11} parent=0 // pred_fallthru
    _
  // Predicated region
  $region6: #{reformer_forward.11} parent=0 // pred_check
    _
  $region7: #{reformer_forward.11} parent=0 // pred_check_branch
    %20 = sbr.rel (0) target = $region9
  $region8: #{reformer_forward.11} parent=0 // pred_region
    _
  $region9: #{reformer_forward.11} parent=0 // pred_fallthru
    _
  // Predicated region
  $region10: #{reformer_forward.11} parent=0 // pred_check
    _
  $region11: #{reformer_forward.11} parent=0 // pred_check_branch
    %22 = sbr.rel (0) target = $region13
  $region12: #{reformer_forward.11} parent=0 // pred_region
    _
  $region13: #{reformer_forward.11} parent=0 // pred_fallthru
    _
  // Predicated region
  $region14: #{reformer_forward.11} parent=0 // pred_check
    _
  $region15: #{reformer_forward.11} parent=0 // pred_check_branch
    %24 = sbr.rel (0) target = $region17
  $region16: #{reformer_forward.11} parent=0 // pred_region
    _
  $region17: #{reformer_forward.11} parent=0 // pred_fallthru
    _
  // Predicated region
  $region18: #{reformer_forward.11} parent=0 // pred_check
    _
  $region19: #{reformer_forward.11} parent=0 // pred_check_branch
    %26 = sbr.rel (0) target = $region21
  $region20: #{reformer_forward.11} parent=0 // pred_region
    _
  $region21: #{reformer_forward.11} parent=0 // pred_fallthru
    _
  // Predicated region
  $region22: #{reformer_forward.11} parent=0 // pred_check
    _
  $region23: #{reformer_forward.11} parent=0 // pred_check_branch
    %28 = sbr.rel (0) target = $region25
  $region24: #{reformer_forward.11} parent=0 // pred_region
    _
  $region25: #{reformer_forward.11} parent=0 // pred_fallthru
    _
  // Predicated region
  $region26: #{reformer_forward.11} parent=0 // pred_check
    _
  $region27: #{reformer_forward.11} parent=0 // pred_check_branch
    %30 = sbr.rel (0) target = $region29
  $region28: #{reformer_forward.11} parent=0 // pred_region
    _
  $region29: #{reformer_forward.11} parent=0 // pred_fallthru
    _
  // Predicated region
  $region30: #{reformer_forward.11} parent=0 // pred_check
    _
  $region31: #{reformer_forward.11} parent=0 // pred_check_branch
    %32 = sbr.rel (0) target = $region33
  $region32: #{reformer_forward.11} parent=0 // pred_region
    _
  $region33: #{reformer_forward.11} parent=0 // pred_fallthru
    _
  // Predicated region
  $region34: #{reformer_forward.11} parent=0 // pred_check
    _
  $region35: #{reformer_forward.11} parent=0 // pred_check_branch
    %34 = sbr.rel (0) target = $region37
  $region36: #{reformer_forward.11} parent=0 // pred_region
    _
  $region37: #{reformer_forward.11} parent=0 // pred_fallthru
    _
  // Predicated region
  $region38: #{reformer_forward.11} parent=0 // pred_check
    _
  $region39: #{reformer_forward.11} parent=0 // pred_check_branch
    %36 = sbr.rel (0) target = $region41
  $region40: #{reformer_forward.11} parent=0 // pred_region
    _
  $region41: #{reformer_forward.11} parent=0 // pred_fallthru
    _
  // Predicated region
  $region42: #{reformer_forward.11} parent=0 // pred_check
    _
  $region43: #{reformer_forward.11} parent=0 // pred_check_branch
    %38 = sbr.rel (0) target = $region45
  $region44: #{reformer_forward.11} parent=0 // pred_region
    _
  $region45: #{reformer_forward.11} parent=0 // pred_fallthru
    _
  // Predicated region
  $region46: #{reformer_forward.11} parent=0 // pred_check
    _
  $region47: #{reformer_forward.11} parent=0 // pred_check_branch
    %40 = sbr.rel (0) target = $region49
  $region48: #{reformer_forward.11} parent=0 // pred_region
    _
  $region49: #{reformer_forward.11} parent=0 // pred_fallthru
    _
  %v42 = vld [vmem:[%s0] sm:$0xff]
  %v43 = vld [vmem:[%s0 + $0x8] sm:$0xff]
  %v44 = vld [vmem:[%s0 + $0x10] sm:$0xff]
  %v45 = vld [vmem:[%s0 + $0x18] sm:$0xff]
  %v46 = vpack.c.bf16 %v43, %v42
  %v47 = vpack.c.bf16 %v45, %v44
  %v48 = vld [vmem:[%s2] sm:$0xf]
  %v49 = vld [vmem:[%s2 + $0x4] sm:$0xf]
  %v50 = vld [vmem:[%s2 + $0x8] sm:$0xf]
  %v51 = vld [vmem:[%s2 + $0xc] sm:$0xf]
  %v52 = vld [vmem:[%s3] sm:$0x1]
  %v54 = vperm.slane %v52, 0
  %v60 = vunpack.c.l.b16 %v48
  %v61 = vunpack.c.l.b16 %v49
  %v62 = vunpack.c.l.b16 %v50
  %v63 = vunpack.c.l.b16 %v51
  %v64 = vpack.c.b16 %v61, %v60
  %v65 = vpack.c.b16 %v63, %v62
  %vm68 = vcmask 261120
  %v70 = vsel %vm68, %v46, 0
  %v73 = vsel %vm68, %v47, 0
  %75 = vmatpush.bf16.msra.mxu0 0
  %76 = vmatpush.bf16.msra.mxu0 0
  %77 = vmatpush.bf16.msra.mxu0 0
  %78 = vmatpush.bf16.msra.mxu0 0
  %79 = vmatpush.bf16.msra.mxu0 0
  %80 = vmatpush.bf16.msra.mxu0 0
  %81 = vmatpush.bf16.msra.mxu0 %v65
  %82 = vmatpush.bf16.msra.mxu0 %v64
  %83 = vmatmul.bf16.gmra.mxu0 %v70
  %v84 = vpop.f32.mrf.mxu0
  %v85 = vadd.f32 %v54, %v84
  %v86 = vpop.f32.mrf.mxu0
  %v87 = vadd.f32 %v54, %v86
  %88 = vmatmul.bf16.gmra.mxu0 %v73
  %v89 = vpop.f32.mrf.mxu0
  %v90 = vadd.f32 %v54, %v89
  %v91 = vpop.f32.mrf.mxu0
  %v92 = vadd.f32 %v54, %v91
  %93 = vdwg.mxu0
  %v94 = vld [vmem:[%s1] sm:$0xff]
  %v95 = vld [vmem:[%s1 + $0x8] sm:$0xff]
  %v96 = vld [vmem:[%s1 + $0x10] sm:$0xff]
  %v97 = vld [vmem:[%s1 + $0x18] sm:$0xff]
  %v98 = vadd.f32 %v94, %v85
  %v99 = vadd.f32 %v95, %v87
  %v100 = vadd.f32 %v96, %v90
  %v101 = vadd.f32 %v97, %v92
  %v102 = vld [vmem:[%s4] sm:$0x1]
  %v103 = vld [vmem:[%s5] sm:$0x1]
  %v104 = vsel %vm68, %v98, 0.0
  %105 = vadd.xlane.f32.xlu0 %v104
  %v106 = vpop.xlane.xlu0 %105
  %v107 = vsel %vm68, %v99, 0.0
  %108 = vadd.xlane.f32.xlu0 %v107
  %v109 = vpop.xlane.xlu0 %108
  %v110 = vsel %vm68, %v100, 0.0
  %111 = vadd.xlane.f32.xlu0 %v110
  %v112 = vpop.xlane.xlu0 %111
  %v113 = vsel %vm68, %v101, 0.0
  %114 = vadd.xlane.f32.xlu0 %v113
  %v115 = vpop.xlane.xlu0 %114
  %v116 = vrcp.pop 32.0
  %v117 = vmul.f32 32.0, %v116
  %v118 = vsub.f32 1.0, %v117
  %v119 = vmul.f32 %v116, %v118
  %v120 = vadd.f32 %v116, %v119
  %vm121 = vweird.f32 %v116
  %v122 = vsel %vm121, %v116, %v120
  %v123 = vmul.f32 %v106, %v122
  %v124 = vmul.f32 %v109, %v122
  %v125 = vmul.f32 %v112, %v122
  %v126 = vmul.f32 %v115, %v122
  %v127 = vsub.f32 %v98, %v123
  %v128 = vsub.f32 %v99, %v124
  %v129 = vsub.f32 %v100, %v125
  %v130 = vsub.f32 %v101, %v126
  %v131 = vmul.f32 %v127, %v127
  %v132 = vmul.f32 %v128, %v128
  %v133 = vmul.f32 %v129, %v129
  %v134 = vmul.f32 %v130, %v130
  %v135 = vsel %vm68, %v131, 0.0
  %136 = vadd.xlane.f32.xlu0 %v135
  %v137 = vpop.xlane.xlu0 %136
  %v138 = vsel %vm68, %v132, 0.0
  %139 = vadd.xlane.f32.xlu0 %v138
  %v140 = vpop.xlane.xlu0 %139
  %v141 = vsel %vm68, %v133, 0.0
  %142 = vadd.xlane.f32.xlu0 %v141
  %v143 = vpop.xlane.xlu0 %142
  %v144 = vsel %vm68, %v134, 0.0
  %145 = vadd.xlane.f32.xlu0 %v144
  %v146 = vpop.xlane.xlu0 %145
  %v147 = vmul.f32 %v137, %v122
  %v148 = vmul.f32 %v140, %v122
  %v149 = vmul.f32 %v143, %v122
  %v150 = vmul.f32 %v146, %v122
  %v151 = vadd.f32 %v147, 1e-05
  %v152 = vadd.f32 %v148, 1e-05
  %v153 = vadd.f32 %v149, 1e-05
  %v154 = vadd.f32 %v150, 1e-05
  %v155 = vrsqrt.pop %v151
  %v156 = vmul.f32 %v155, %v151
  %v157 = vmul.f32 %v156, %v155
  %v158 = vmul.f32 0.5, %v157
  %v159 = vsub.f32 1.5, %v158
  %v160 = vmul.f32 %v155, %v159
  %vm161 = vweird.f32 %v151
  %vm162 = vweird.f32 %v155
  %vm163 = vmor %vm161, %vm162
  %v164 = vsel %vm163, %v155, %v160
  %v165 = vrsqrt.pop %v152
  %v166 = vmul.f32 %v165, %v152
  %v167 = vmul.f32 %v166, %v165
  %v168 = vmul.f32 0.5, %v167
  %v169 = vsub.f32 1.5, %v168
  %v170 = vmul.f32 %v165, %v169
  %vm171 = vweird.f32 %v152
  %vm172 = vweird.f32 %v165
  %vm173 = vmor %vm171, %vm172
  %v174 = vsel %vm173, %v165, %v170
  %v175 = vrsqrt.pop %v153
  %v176 = vmul.f32 %v175, %v153
  %v177 = vmul.f32 %v176, %v175
  %v178 = vmul.f32 0.5, %v177
  %v179 = vsub.f32 1.5, %v178
  %v180 = vmul.f32 %v175, %v179
  %vm181 = vweird.f32 %v153
  %vm182 = vweird.f32 %v175
  %vm183 = vmor %vm181, %vm182
  %v184 = vsel %vm183, %v175, %v180
  %v185 = vrsqrt.pop %v154
  %v186 = vmul.f32 %v185, %v154
  %v187 = vmul.f32 %v186, %v185
  %v188 = vmul.f32 0.5, %v187
  %v189 = vsub.f32 1.5, %v188
  %v190 = vmul.f32 %v185, %v189
  %vm191 = vweird.f32 %v154
  %vm192 = vweird.f32 %v185
  %vm193 = vmor %vm191, %vm192
  %v194 = vsel %vm193, %v185, %v190
  %v195 = vmul.f32 %v127, %v164
  %v196 = vmul.f32 %v128, %v174
  %v197 = vmul.f32 %v129, %v184
  %v198 = vmul.f32 %v130, %v194
  %v200 = vperm.slane %v102, 0
  %v202 = vmul.f32 %v195, %v200
  %v203 = vmul.f32 %v196, %v200
  %v204 = vmul.f32 %v197, %v200
  %v205 = vmul.f32 %v198, %v200
  %v207 = vperm.slane %v103, 0
  %v209 = vadd.f32 %v202, %v207
  %v210 = vadd.f32 %v203, %v207
  %v211 = vadd.f32 %v204, %v207
  %v212 = vadd.f32 %v205, %v207
  %v213 = vpack.c.bf16 %v210, %v209
  %v214 = vpack.c.bf16 %v212, %v211
  %v215 = vld [vmem:[%s6] sm:$0xff]
  %v216 = vld [vmem:[%s6 + $0x8] sm:$0xff]
  %v217 = vld [vmem:[%s6 + $0x10] sm:$0xff]
  %v218 = vld [vmem:[%s6 + $0x18] sm:$0xff]
  %v219 = vld [vmem:[%s6 + $0x20] sm:$0xff]
  %v220 = vld [vmem:[%s6 + $0x28] sm:$0xff]
  %v221 = vld [vmem:[%s6 + $0x30] sm:$0xff]
  %v222 = vld [vmem:[%s6 + $0x38] sm:$0xff]
  %v223 = vld [vmem:[%s7] sm:$0xf]
  %v225 = vperm.slane %v223, 0
  %v226 = vperm.slane %v223, 1
  %v227 = vperm.slane %v223, 2
  %v228 = vperm.slane %v223, 3
  %v241 = vunpack.c.l.b16 %v215
  %v242 = vunpack.c.h.b16 %v215
  %v243 = vunpack.c.l.b16 %v216
  %v244 = vunpack.c.h.b16 %v216
  %v245 = vunpack.c.l.b16 %v217
  %v246 = vunpack.c.h.b16 %v217
  %v247 = vunpack.c.l.b16 %v218
  %v248 = vunpack.c.h.b16 %v218
  %v249 = vunpack.c.l.b16 %v219
  %v250 = vunpack.c.h.b16 %v219
  %v251 = vunpack.c.l.b16 %v220
  %v252 = vunpack.c.h.b16 %v220
  %v253 = vunpack.c.l.b16 %v221
  %v254 = vunpack.c.h.b16 %v221
  %v255 = vunpack.c.l.b16 %v222
  %v256 = vunpack.c.h.b16 %v222
  %v257 = vpack.c.b16 %v245, %v241
  %v258 = vpack.c.b16 %v246, %v242
  %v259 = vpack.c.b16 %v247, %v243
  %v260 = vpack.c.b16 %v248, %v244
  %v261 = vpack.c.b16 %v253, %v249
  %v262 = vpack.c.b16 %v254, %v250
  %v263 = vpack.c.b16 %v255, %v251
  %v264 = vpack.c.b16 %v256, %v252
  %v274 = vsel %vm68, %v213, 0
  %v277 = vsel %vm68, %v214, 0
  %279 = vmatpush.bf16.msra.mxu0 0
  %280 = vmatpush.bf16.msra.mxu0 0
  %281 = vmatpush.bf16.msra.mxu0 0
  %282 = vmatpush.bf16.msra.mxu0 0
  %283 = vmatpush.bf16.msra.mxu0 0
  %284 = vmatpush.bf16.msra.mxu0 0
  %285 = vmatpush.bf16.msra.mxu0 %v261
  %286 = vmatpush.bf16.msra.mxu0 %v257
  %287 = vmatmul.bf16.gmra.mxu0 %v274
  %v288 = vpop.f32.mrf.mxu0
  %v289 = vadd.f32 %v225, %v288
  %v290 = vpop.f32.mrf.mxu0
  %v291 = vadd.f32 %v225, %v290
  %292 = vmatmul.bf16.gmra.mxu0 %v277
  %v293 = vpop.f32.mrf.mxu0
  %v294 = vadd.f32 %v225, %v293
  %v295 = vpop.f32.mrf.mxu0
  %v296 = vadd.f32 %v225, %v295
  %297 = vdwg.mxu0
  %298 = vmatpush.bf16.msra.mxu0 0
  %299 = vmatpush.bf16.msra.mxu0 0
  %300 = vmatpush.bf16.msra.mxu0 0
  %301 = vmatpush.bf16.msra.mxu0 0
  %302 = vmatpush.bf16.msra.mxu0 0
  %303 = vmatpush.bf16.msra.mxu0 0
  %304 = vmatpush.bf16.msra.mxu0 %v262
  %305 = vmatpush.bf16.msra.mxu0 %v258
  %306 = vmatmul.bf16.gmra.mxu0 %v274
  %v307 = vpop.f32.mrf.mxu0
  %v308 = vadd.f32 %v226, %v307
  %v309 = vpop.f32.mrf.mxu0
  %v310 = vadd.f32 %v226, %v309
  %311 = vmatmul.bf16.gmra.mxu0 %v277
  %v312 = vpop.f32.mrf.mxu0
  %v313 = vadd.f32 %v226, %v312
  %v314 = vpop.f32.mrf.mxu0
  %v315 = vadd.f32 %v226, %v314
  %316 = vdwg.mxu0
  %317 = vmatpush.bf16.msra.mxu0 0
  %318 = vmatpush.bf16.msra.mxu0 0
  %319 = vmatpush.bf16.msra.mxu0 0
  %320 = vmatpush.bf16.msra.mxu0 0
  %321 = vmatpush.bf16.msra.mxu0 0
  %322 = vmatpush.bf16.msra.mxu0 0
  %323 = vmatpush.bf16.msra.mxu0 %v263
  %324 = vmatpush.bf16.msra.mxu0 %v259
  %325 = vmatmul.bf16.gmra.mxu0 %v274
  %v326 = vpop.f32.mrf.mxu0
  %v327 = vadd.f32 %v227, %v326
  %v328 = vpop.f32.mrf.mxu0
  %v329 = vadd.f32 %v227, %v328
  %330 = vmatmul.bf16.gmra.mxu0 %v277
  %v331 = vpop.f32.mrf.mxu0
  %v332 = vadd.f32 %v227, %v331
  %v333 = vpop.f32.mrf.mxu0
  %v334 = vadd.f32 %v227, %v333
  %335 = vdwg.mxu0
  %336 = vmatpush.bf16.msra.mxu0 0
  %337 = vmatpush.bf16.msra.mxu0 0
  %338 = vmatpush.bf16.msra.mxu0 0
  %339 = vmatpush.bf16.msra.mxu0 0
  %340 = vmatpush.bf16.msra.mxu0 0
  %341 = vmatpush.bf16.msra.mxu0 0
  %342 = vmatpush.bf16.msra.mxu0 %v264
  %343 = vmatpush.bf16.msra.mxu0 %v260
  %344 = vmatmul.bf16.gmra.mxu0 %v274
  %v345 = vpop.f32.mrf.mxu0
  %v346 = vadd.f32 %v228, %v345
  %v347 = vpop.f32.mrf.mxu0
  %v348 = vadd.f32 %v228, %v347
  %349 = vmatmul.bf16.gmra.mxu0 %v277
  %v350 = vpop.f32.mrf.mxu0
  %v351 = vadd.f32 %v228, %v350
  %v352 = vpop.f32.mrf.mxu0
  %v353 = vadd.f32 %v228, %v352
  %354 = vdwg.mxu0
  %v355 = vmul.f32 %v289, 0.5
  %v356 = vmul.f32 %v308, 0.5
  %v357 = vmul.f32 %v327, 0.5
  %v358 = vmul.f32 %v346, 0.5
  %v359 = vmul.f32 %v291, 0.5
  %v360 = vmul.f32 %v310, 0.5
  %v361 = vmul.f32 %v329, 0.5
  %v362 = vmul.f32 %v348, 0.5
  %v363 = vmul.f32 %v294, 0.5
  %v364 = vmul.f32 %v313, 0.5
  %v365 = vmul.f32 %v332, 0.5
  %v366 = vmul.f32 %v351, 0.5
  %v367 = vmul.f32 %v296, 0.5
  %v368 = vmul.f32 %v315, 0.5
  %v369 = vmul.f32 %v334, 0.5
  %v370 = vmul.f32 %v353, 0.5
  %v371 = vmul.f32 %v289, 0.70710677
  %v372 = vmul.f32 %v308, 0.70710677
  %v373 = vmul.f32 %v327, 0.70710677
  %v374 = vmul.f32 %v346, 0.70710677
  %v375 = vmul.f32 %v291, 0.70710677
  %v376 = vmul.f32 %v310, 0.70710677
  %v377 = vmul.f32 %v329, 0.70710677
  %v378 = vmul.f32 %v348, 0.70710677
  %v379 = vmul.f32 %v294, 0.70710677
  %v380 = vmul.f32 %v313, 0.70710677
  %v381 = vmul.f32 %v332, 0.70710677
  %v382 = vmul.f32 %v351, 0.70710677
  %v383 = vmul.f32 %v296, 0.70710677
  %v384 = vmul.f32 %v315, 0.70710677
  %v385 = vmul.f32 %v334, 0.70710677
  %v386 = vmul.f32 %v353, 0.70710677
  %v387 = vmax.f32 %v371, -4.0
  %v388 = vmax.f32 %v372, -4.0
  %v389 = vmax.f32 %v373, -4.0
  %v390 = vmax.f32 %v374, -4.0
  %v391 = vmax.f32 %v375, -4.0
  %v392 = vmax.f32 %v376, -4.0
  %v393 = vmax.f32 %v377, -4.0
  %v394 = vmax.f32 %v378, -4.0
  %v395 = vmax.f32 %v379, -4.0
  %v396 = vmax.f32 %v380, -4.0
  %v397 = vmax.f32 %v381, -4.0
  %v398 = vmax.f32 %v382, -4.0
  %v399 = vmax.f32 %v383, -4.0
  %v400 = vmax.f32 %v384, -4.0
  %v401 = vmax.f32 %v385, -4.0
  %v402 = vmax.f32 %v386, -4.0
  %v403 = vmin.f32 %v387, 4.0
  %v404 = vmin.f32 %v388, 4.0
  %v405 = vmin.f32 %v389, 4.0
  %v406 = vmin.f32 %v390, 4.0
  %v407 = vmin.f32 %v391, 4.0
  %v408 = vmin.f32 %v392, 4.0
  %v409 = vmin.f32 %v393, 4.0
  %v410 = vmin.f32 %v394, 4.0
  %v411 = vmin.f32 %v395, 4.0
  %v412 = vmin.f32 %v396, 4.0
  %v413 = vmin.f32 %v397, 4.0
  %v414 = vmin.f32 %v398, 4.0
  %v415 = vmin.f32 %v399, 4.0
  %v416 = vmin.f32 %v400, 4.0
  %v417 = vmin.f32 %v401, 4.0
  %v418 = vmin.f32 %v402, 4.0
  %v419 = vmul.f32 %v403, %v403
  %v420 = vmul.f32 %v404, %v404
  %v421 = vmul.f32 %v405, %v405
  %v422 = vmul.f32 %v406, %v406
  %v423 = vmul.f32 %v407, %v407
  %v424 = vmul.f32 %v408, %v408
  %v425 = vmul.f32 %v409, %v409
  %v426 = vmul.f32 %v410, %v410
  %v427 = vmul.f32 %v411, %v411
  %v428 = vmul.f32 %v412, %v412
  %v429 = vmul.f32 %v413, %v413
  %v430 = vmul.f32 %v414, %v414
  %v431 = vmul.f32 %v415, %v415
  %v432 = vmul.f32 %v416, %v416
  %v433 = vmul.f32 %v417, %v417
  %v434 = vmul.f32 %v418, %v418
  %v435 = vmul.f32 %v419, 0.00022905065
  %v436 = vmul.f32 %v420, 0.00022905065
  %v437 = vmul.f32 %v421, 0.00022905065
  %v438 = vmul.f32 %v422, 0.00022905065
  %v439 = vmul.f32 %v423, 0.00022905065
  %v440 = vmul.f32 %v424, 0.00022905065
  %v441 = vmul.f32 %v425, 0.00022905065
  %v442 = vmul.f32 %v426, 0.00022905065
  %v443 = vmul.f32 %v427, 0.00022905065
  %v444 = vmul.f32 %v428, 0.00022905065
  %v445 = vmul.f32 %v429, 0.00022905065
  %v446 = vmul.f32 %v430, 0.00022905065
  %v447 = vmul.f32 %v431, 0.00022905065
  %v448 = vmul.f32 %v432, 0.00022905065
  %v449 = vmul.f32 %v433, 0.00022905065
  %v450 = vmul.f32 %v434, 0.00022905065
  %v451 = vadd.f32 %v435, 0.003408291
  %v452 = vadd.f32 %v436, 0.003408291
  %v453 = vadd.f32 %v437, 0.003408291
  %v454 = vadd.f32 %v438, 0.003408291
  %v455 = vadd.f32 %v439, 0.003408291
  %v456 = vadd.f32 %v440, 0.003408291
  %v457 = vadd.f32 %v441, 0.003408291
  %v458 = vadd.f32 %v442, 0.003408291
  %v459 = vadd.f32 %v443, 0.003408291
  %v460 = vadd.f32 %v444, 0.003408291
  %v461 = vadd.f32 %v445, 0.003408291
  %v462 = vadd.f32 %v446, 0.003408291
  %v463 = vadd.f32 %v447, 0.003408291
  %v464 = vadd.f32 %v448, 0.003408291
  %v465 = vadd.f32 %v449, 0.003408291
  %v466 = vadd.f32 %v450, 0.003408291
  %v467 = vmul.f32 %v451, %v419
  %v468 = vmul.f32 %v452, %v420
  %v469 = vmul.f32 %v453, %v421
  %v470 = vmul.f32 %v454, %v422
  %v471 = vmul.f32 %v455, %v423
  %v472 = vmul.f32 %v456, %v424
  %v473 = vmul.f32 %v457, %v425
  %v474 = vmul.f32 %v458, %v426
  %v475 = vmul.f32 %v459, %v427
  %v476 = vmul.f32 %v460, %v428
  %v477 = vmul.f32 %v461, %v429
  %v478 = vmul.f32 %v462, %v430
  %v479 = vmul.f32 %v463, %v431
  %v480 = vmul.f32 %v464, %v432
  %v481 = vmul.f32 %v465, %v433
  %v482 = vmul.f32 %v466, %v434
  %v483 = vadd.f32 %v467, 0.050955694
  %v484 = vadd.f32 %v468, 0.050955694
  %v485 = vadd.f32 %v469, 0.050955694
  %v486 = vadd.f32 %v470, 0.050955694
  %v487 = vadd.f32 %v471, 0.050955694
  %v488 = vadd.f32 %v472, 0.050955694
  %v489 = vadd.f32 %v473, 0.050955694
  %v490 = vadd.f32 %v474, 0.050955694
  %v491 = vadd.f32 %v475, 0.050955694
  %v492 = vadd.f32 %v476, 0.050955694
  %v493 = vadd.f32 %v477, 0.050955694
  %v494 = vadd.f32 %v478, 0.050955694
  %v495 = vadd.f32 %v479, 0.050955694
  %v496 = vadd.f32 %v480, 0.050955694
  %v497 = vadd.f32 %v481, 0.050955694
  %v498 = vadd.f32 %v482, 0.050955694
  %v499 = vmul.f32 %v483, %v419
  %v500 = vmul.f32 %v484, %v420
  %v501 = vmul.f32 %v485, %v421
  %v502 = vmul.f32 %v486, %v422
  %v503 = vmul.f32 %v487, %v423
  %v504 = vmul.f32 %v488, %v424
  %v505 = vmul.f32 %v489, %v425
  %v506 = vmul.f32 %v490, %v426
  %v507 = vmul.f32 %v491, %v427
  %v508 = vmul.f32 %v492, %v428
  %v509 = vmul.f32 %v493, %v429
  %v510 = vmul.f32 %v494, %v430
  %v511 = vmul.f32 %v495, %v431
  %v512 = vmul.f32 %v496, %v432
  %v513 = vmul.f32 %v497, %v433
  %v514 = vmul.f32 %v498, %v434
  %v515 = vadd.f32 %v499, 0.18520832
  %v516 = vadd.f32 %v500, 0.18520832
  %v517 = vadd.f32 %v501, 0.18520832
  %v518 = vadd.f32 %v502, 0.18520832
  %v519 = vadd.f32 %v503, 0.18520832
  %v520 = vadd.f32 %v504, 0.18520832
  %v521 = vadd.f32 %v505, 0.18520832
  %v522 = vadd.f32 %v506, 0.18520832
  %v523 = vadd.f32 %v507, 0.18520832
  %v524 = vadd.f32 %v508, 0.18520832
  %v525 = vadd.f32 %v509, 0.18520832
  %v526 = vadd.f32 %v510, 0.18520832
  %v527 = vadd.f32 %v511, 0.18520832
  %v528 = vadd.f32 %v512, 0.18520832
  %v529 = vadd.f32 %v513, 0.18520832
  %v530 = vadd.f32 %v514, 0.18520832
  %v531 = vmul.f32 %v515, %v419
  %v532 = vmul.f32 %v516, %v420
  %v533 = vmul.f32 %v517, %v421
  %v534 = vmul.f32 %v518, %v422
  %v535 = vmul.f32 %v519, %v423
  %v536 = vmul.f32 %v520, %v424
  %v537 = vmul.f32 %v521, %v425
  %v538 = vmul.f32 %v522, %v426
  %v539 = vmul.f32 %v523, %v427
  %v540 = vmul.f32 %v524, %v428
  %v541 = vmul.f32 %v525, %v429
  %v542 = vmul.f32 %v526, %v430
  %v543 = vmul.f32 %v527, %v431
  %v544 = vmul.f32 %v528, %v432
  %v545 = vmul.f32 %v529, %v433
  %v546 = vmul.f32 %v530, %v434
  %v547 = vadd.f32 %v531, 1.1283791
  %v548 = vadd.f32 %v532, 1.1283791
  %v549 = vadd.f32 %v533, 1.1283791
  %v550 = vadd.f32 %v534, 1.1283791
  %v551 = vadd.f32 %v535, 1.1283791
  %v552 = vadd.f32 %v536, 1.1283791
  %v553 = vadd.f32 %v537, 1.1283791
  %v554 = vadd.f32 %v538, 1.1283791
  %v555 = vadd.f32 %v539, 1.1283791
  %v556 = vadd.f32 %v540, 1.1283791
  %v557 = vadd.f32 %v541, 1.1283791
  %v558 = vadd.f32 %v542, 1.1283791
  %v559 = vadd.f32 %v543, 1.1283791
  %v560 = vadd.f32 %v544, 1.1283791
  %v561 = vadd.f32 %v545, 1.1283791
  %v562 = vadd.f32 %v546, 1.1283791
  %v563 = vmul.f32 %v419, -1.1791603e-07
  %v564 = vmul.f32 %v420, -1.1791603e-07
  %v565 = vmul.f32 %v421, -1.1791603e-07
  %v566 = vmul.f32 %v422, -1.1791603e-07
  %v567 = vmul.f32 %v423, -1.1791603e-07
  %v568 = vmul.f32 %v424, -1.1791603e-07
  %v569 = vmul.f32 %v425, -1.1791603e-07
  %v570 = vmul.f32 %v426, -1.1791603e-07
  %v571 = vmul.f32 %v427, -1.1791603e-07
  %v572 = vmul.f32 %v428, -1.1791603e-07
  %v573 = vmul.f32 %v429, -1.1791603e-07
  %v574 = vmul.f32 %v430, -1.1791603e-07
  %v575 = vmul.f32 %v431, -1.1791603e-07
  %v576 = vmul.f32 %v432, -1.1791603e-07
  %v577 = vmul.f32 %v433, -1.1791603e-07
  %v578 = vmul.f32 %v434, -1.1791603e-07
  %v579 = vadd.f32 %v563, 2.3547966e-05
  %v580 = vadd.f32 %v564, 2.3547966e-05
  %v581 = vadd.f32 %v565, 2.3547966e-05
  %v582 = vadd.f32 %v566, 2.3547966e-05
  %v583 = vadd.f32 %v567, 2.3547966e-05
  %v584 = vadd.f32 %v568, 2.3547966e-05
  %v585 = vadd.f32 %v569, 2.3547966e-05
  %v586 = vadd.f32 %v570, 2.3547966e-05
  %v587 = vadd.f32 %v571, 2.3547966e-05
  %v588 = vadd.f32 %v572, 2.3547966e-05
  %v589 = vadd.f32 %v573, 2.3547966e-05
  %v590 = vadd.f32 %v574, 2.3547966e-05
  %v591 = vadd.f32 %v575, 2.3547966e-05
  %v592 = vadd.f32 %v576, 2.3547966e-05
  %v593 = vadd.f32 %v577, 2.3547966e-05
  %v594 = vadd.f32 %v578, 2.3547966e-05
  %v595 = vmul.f32 %v579, %v419
  %v596 = vmul.f32 %v580, %v420
  %v597 = vmul.f32 %v581, %v421
  %v598 = vmul.f32 %v582, %v422
  %v599 = vmul.f32 %v583, %v423
  %v600 = vmul.f32 %v584, %v424
  %v601 = vmul.f32 %v585, %v425
  %v602 = vmul.f32 %v586, %v426
  %v603 = vmul.f32 %v587, %v427
  %v604 = vmul.f32 %v588, %v428
  %v605 = vmul.f32 %v589, %v429
  %v606 = vmul.f32 %v590, %v430
  %v607 = vmul.f32 %v591, %v431
  %v608 = vmul.f32 %v592, %v432
  %v609 = vmul.f32 %v593, %v433
  %v610 = vmul.f32 %v594, %v434
  %v611 = vadd.f32 %v595, 0.0010179626
  %v612 = vadd.f32 %v596, 0.0010179626
  %v613 = vadd.f32 %v597, 0.0010179626
  %v614 = vadd.f32 %v598, 0.0010179626
  %v615 = vadd.f32 %v599, 0.0010179626
  %v616 = vadd.f32 %v600, 0.0010179626
  %v617 = vadd.f32 %v601, 0.0010179626
  %v618 = vadd.f32 %v602, 0.0010179626
  %v619 = vadd.f32 %v603, 0.0010179626
  %v620 = vadd.f32 %v604, 0.0010179626
  %v621 = vadd.f32 %v605, 0.0010179626
  %v622 = vadd.f32 %v606, 0.0010179626
  %v623 = vadd.f32 %v607, 0.0010179626
  %v624 = vadd.f32 %v608, 0.0010179626
  %v625 = vadd.f32 %v609, 0.0010179626
  %v626 = vadd.f32 %v610, 0.0010179626
  %v627 = vmul.f32 %v611, %v419
  %v628 = vmul.f32 %v612, %v420
  %v629 = vmul.f32 %v613, %v421
  %v630 = vmul.f32 %v614, %v422
  %v631 = vmul.f32 %v615, %v423
  %v632 = vmul.f32 %v616, %v424
  %v633 = vmul.f32 %v617, %v425
  %v634 = vmul.f32 %v618, %v426
  %v635 = vmul.f32 %v619, %v427
  %v636 = vmul.f32 %v620, %v428
  %v637 = vmul.f32 %v621, %v429
  %v638 = vmul.f32 %v622, %v430
  %v639 = vmul.f32 %v623, %v431
  %v640 = vmul.f32 %v624, %v432
  %v641 = vmul.f32 %v625, %v433
  %v642 = vmul.f32 %v626, %v434
  %v643 = vadd.f32 %v627, 0.01407047
  %v644 = vadd.f32 %v628, 0.01407047
  %v645 = vadd.f32 %v629, 0.01407047
  %v646 = vadd.f32 %v630, 0.01407047
  %v647 = vadd.f32 %v631, 0.01407047
  %v648 = vadd.f32 %v632, 0.01407047
  %v649 = vadd.f32 %v633, 0.01407047
  %v650 = vadd.f32 %v634, 0.01407047
  %v651 = vadd.f32 %v635, 0.01407047
  %v652 = vadd.f32 %v636, 0.01407047
  %v653 = vadd.f32 %v637, 0.01407047
  %v654 = vadd.f32 %v638, 0.01407047
  %v655 = vadd.f32 %v639, 0.01407047
  %v656 = vadd.f32 %v640, 0.01407047
  %v657 = vadd.f32 %v641, 0.01407047
  %v658 = vadd.f32 %v642, 0.01407047
  %v659 = vmul.f32 %v643, %v419
  %v660 = vmul.f32 %v644, %v420
  %v661 = vmul.f32 %v645, %v421
  %v662 = vmul.f32 %v646, %v422
  %v663 = vmul.f32 %v647, %v423
  %v664 = vmul.f32 %v648, %v424
  %v665 = vmul.f32 %v649, %v425
  %v666 = vmul.f32 %v650, %v426
  %v667 = vmul.f32 %v651, %v427
  %v668 = vmul.f32 %v652, %v428
  %v669 = vmul.f32 %v653, %v429
  %v670 = vmul.f32 %v654, %v430
  %v671 = vmul.f32 %v655, %v431
  %v672 = vmul.f32 %v656, %v432
  %v673 = vmul.f32 %v657, %v433
  %v674 = vmul.f32 %v658, %v434
  %v675 = vadd.f32 %v659, 0.11098505
  %v676 = vadd.f32 %v660, 0.11098505
  %v677 = vadd.f32 %v661, 0.11098505
  %v678 = vadd.f32 %v662, 0.11098505
  %v679 = vadd.f32 %v663, 0.11098505
  %v680 = vadd.f32 %v664, 0.11098505
  %v681 = vadd.f32 %v665, 0.11098505
  %v682 = vadd.f32 %v666, 0.11098505
  %v683 = vadd.f32 %v667, 0.11098505
  %v684 = vadd.f32 %v668, 0.11098505
  %v685 = vadd.f32 %v669, 0.11098505
  %v686 = vadd.f32 %v670, 0.11098505
  %v687 = vadd.f32 %v671, 0.11098505
  %v688 = vadd.f32 %v672, 0.11098505
  %v689 = vadd.f32 %v673, 0.11098505
  %v690 = vadd.f32 %v674, 0.11098505
  %v691 = vmul.f32 %v675, %v419
  %v692 = vmul.f32 %v676, %v420
  %v693 = vmul.f32 %v677, %v421
  %v694 = vmul.f32 %v678, %v422
  %v695 = vmul.f32 %v679, %v423
  %v696 = vmul.f32 %v680, %v424
  %v697 = vmul.f32 %v681, %v425
  %v698 = vmul.f32 %v682, %v426
  %v699 = vmul.f32 %v683, %v427
  %v700 = vmul.f32 %v684, %v428
  %v701 = vmul.f32 %v685, %v429
  %v702 = vmul.f32 %v686, %v430
  %v703 = vmul.f32 %v687, %v431
  %v704 = vmul.f32 %v688, %v432
  %v705 = vmul.f32 %v689, %v433
  %v706 = vmul.f32 %v690, %v434
  %v707 = vadd.f32 %v691, 0.49746925
  %v708 = vadd.f32 %v692, 0.49746925
  %v709 = vadd.f32 %v693, 0.49746925
  %v710 = vadd.f32 %v694, 0.49746925
  %v711 = vadd.f32 %v695, 0.49746925
  %v712 = vadd.f32 %v696, 0.49746925
  %v713 = vadd.f32 %v697, 0.49746925
  %v714 = vadd.f32 %v698, 0.49746925
  %v715 = vadd.f32 %v699, 0.49746925
  %v716 = vadd.f32 %v700, 0.49746925
  %v717 = vadd.f32 %v701, 0.49746925
  %v718 = vadd.f32 %v702, 0.49746925
  %v719 = vadd.f32 %v703, 0.49746925
  %v720 = vadd.f32 %v704, 0.49746925
  %v721 = vadd.f32 %v705, 0.49746925
  %v722 = vadd.f32 %v706, 0.49746925
  %v723 = vmul.f32 %v707, %v419
  %v724 = vmul.f32 %v708, %v420
  %v725 = vmul.f32 %v709, %v421
  %v726 = vmul.f32 %v710, %v422
  %v727 = vmul.f32 %v711, %v423
  %v728 = vmul.f32 %v712, %v424
  %v729 = vmul.f32 %v713, %v425
  %v730 = vmul.f32 %v714, %v426
  %v731 = vmul.f32 %v715, %v427
  %v732 = vmul.f32 %v716, %v428
  %v733 = vmul.f32 %v717, %v429
  %v734 = vmul.f32 %v718, %v430
  %v735 = vmul.f32 %v719, %v431
  %v736 = vmul.f32 %v720, %v432
  %v737 = vmul.f32 %v721, %v433
  %v738 = vmul.f32 %v722, %v434
  %v739 = vadd.f32 %v723, 1.0
  %v740 = vadd.f32 %v724, 1.0
  %v741 = vadd.f32 %v725, 1.0
  %v742 = vadd.f32 %v726, 1.0
  %v743 = vadd.f32 %v727, 1.0
  %v744 = vadd.f32 %v728, 1.0
  %v745 = vadd.f32 %v729, 1.0
  %v746 = vadd.f32 %v730, 1.0
  %v747 = vadd.f32 %v731, 1.0
  %v748 = vadd.f32 %v732, 1.0
  %v749 = vadd.f32 %v733, 1.0
  %v750 = vadd.f32 %v734, 1.0
  %v751 = vadd.f32 %v735, 1.0
  %v752 = vadd.f32 %v736, 1.0
  %v753 = vadd.f32 %v737, 1.0
  %v754 = vadd.f32 %v738, 1.0
  %v755 = vmul.f32 %v403, %v547
  %v756 = vmul.f32 %v404, %v548
  %v757 = vmul.f32 %v405, %v549
  %v758 = vmul.f32 %v406, %v550
  %v759 = vmul.f32 %v407, %v551
  %v760 = vmul.f32 %v408, %v552
  %v761 = vmul.f32 %v409, %v553
  %v762 = vmul.f32 %v410, %v554
  %v763 = vmul.f32 %v411, %v555
  %v764 = vmul.f32 %v412, %v556
  %v765 = vmul.f32 %v413, %v557
  %v766 = vmul.f32 %v414, %v558
  %v767 = vmul.f32 %v415, %v559
  %v768 = vmul.f32 %v416, %v560
  %v769 = vmul.f32 %v417, %v561
  %v770 = vmul.f32 %v418, %v562
  %v771 = vrcp.pop %v739
  %v772 = vmul.f32 %v739, %v771
  %v773 = vsub.f32 1.0, %v772
  %v774 = vmul.f32 %v771, %v773
  %v775 = vadd.f32 %v771, %v774
  %vm776 = vweird.f32 %v739
  %vm777 = vweird.f32 %v771
  %vm778 = vmor %vm776, %vm777
  %v779 = vsel %vm778, %v771, %v775
  %v780 = vand.u32 2147483647, %v739
  %vm781 = vcmp.eq.f32.partialorder %v780, 8.507059e+37
  %v782 = vand.u32 %v739, 2147483648
  %v783 = vor.u32 1.1754944e-38, %v782
  %v784 = vsel %vm781, %v783, %v779
  %v785 = vmul.f32 %v755, %v784
  %v786 = vrcp.pop %v740
  %v787 = vmul.f32 %v740, %v786
  %v788 = vsub.f32 1.0, %v787
  %v789 = vmul.f32 %v786, %v788
  %v790 = vadd.f32 %v786, %v789
  %vm791 = vweird.f32 %v740
  %vm792 = vweird.f32 %v786
  %vm793 = vmor %vm791, %vm792
  %v794 = vsel %vm793, %v786, %v790
  %v795 = vand.u32 2147483647, %v740
  %vm796 = vcmp.eq.f32.partialorder %v795, 8.507059e+37
  %v797 = vand.u32 %v740, 2147483648
  %v798 = vor.u32 1.1754944e-38, %v797
  %v799 = vsel %vm796, %v798, %v794
  %v800 = vmul.f32 %v756, %v799
  %v801 = vrcp.pop %v741
  %v802 = vmul.f32 %v741, %v801
  %v803 = vsub.f32 1.0, %v802
  %v804 = vmul.f32 %v801, %v803
  %v805 = vadd.f32 %v801, %v804
  %vm806 = vweird.f32 %v741
  %vm807 = vweird.f32 %v801
  %vm808 = vmor %vm806, %vm807
  %v809 = vsel %vm808, %v801, %v805
  %v810 = vand.u32 2147483647, %v741
  %vm811 = vcmp.eq.f32.partialorder %v810, 8.507059e+37
  %v812 = vand.u32 %v741, 2147483648
  %v813 = vor.u32 1.1754944e-38, %v812
  %v814 = vsel %vm811, %v813, %v809
  %v815 = vmul.f32 %v757, %v814
  %v816 = vrcp.pop %v742
  %v817 = vmul.f32 %v742, %v816
  %v818 = vsub.f32 1.0, %v817
  %v819 = vmul.f32 %v816, %v818
  %v820 = vadd.f32 %v816, %v819
  %vm821 = vweird.f32 %v742
  %vm822 = vweird.f32 %v816
  %vm823 = vmor %vm821, %vm822
  %v824 = vsel %vm823, %v816, %v820
  %v825 = vand.u32 2147483647, %v742
  %vm826 = vcmp.eq.f32.partialorder %v825, 8.507059e+37
  %v827 = vand.u32 %v742, 2147483648
  %v828 = vor.u32 1.1754944e-38, %v827
  %v829 = vsel %vm826, %v828, %v824
  %v830 = vmul.f32 %v758, %v829
  %v831 = vrcp.pop %v743
  %v832 = vmul.f32 %v743, %v831
  %v833 = vsub.f32 1.0, %v832
  %v834 = vmul.f32 %v831, %v833
  %v835 = vadd.f32 %v831, %v834
  %vm836 = vweird.f32 %v743
  %vm837 = vweird.f32 %v831
  %vm838 = vmor %vm836, %vm837
  %v839 = vsel %vm838, %v831, %v835
  %v840 = vand.u32 2147483647, %v743
  %vm841 = vcmp.eq.f32.partialorder %v840, 8.507059e+37
  %v842 = vand.u32 %v743, 2147483648
  %v843 = vor.u32 1.1754944e-38, %v842
  %v844 = vsel %vm841, %v843, %v839
  %v845 = vmul.f32 %v759, %v844
  %v846 = vrcp.pop %v744
  %v847 = vmul.f32 %v744, %v846
  %v848 = vsub.f32 1.0, %v847
  %v849 = vmul.f32 %v846, %v848
  %v850 = vadd.f32 %v846, %v849
  %vm851 = vweird.f32 %v744
  %vm852 = vweird.f32 %v846
  %vm853 = vmor %vm851, %vm852
  %v854 = vsel %vm853, %v846, %v850
  %v855 = vand.u32 2147483647, %v744
  %vm856 = vcmp.eq.f32.partialorder %v855, 8.507059e+37
  %v857 = vand.u32 %v744, 2147483648
  %v858 = vor.u32 1.1754944e-38, %v857
  %v859 = vsel %vm856, %v858, %v854
  %v860 = vmul.f32 %v760, %v859
  %v861 = vrcp.pop %v745
  %v862 = vmul.f32 %v745, %v861
  %v863 = vsub.f32 1.0, %v862
  %v864 = vmul.f32 %v861, %v863
  %v865 = vadd.f32 %v861, %v864
  %vm866 = vweird.f32 %v745
  %vm867 = vweird.f32 %v861
  %vm868 = vmor %vm866, %vm867
  %v869 = vsel %vm868, %v861, %v865
  %v870 = vand.u32 2147483647, %v745
  %vm871 = vcmp.eq.f32.partialorder %v870, 8.507059e+37
  %v872 = vand.u32 %v745, 2147483648
  %v873 = vor.u32 1.1754944e-38, %v872
  %v874 = vsel %vm871, %v873, %v869
  %v875 = vmul.f32 %v761, %v874
  %v876 = vrcp.pop %v746
  %v877 = vmul.f32 %v746, %v876
  %v878 = vsub.f32 1.0, %v877
  %v879 = vmul.f32 %v876, %v878
  %v880 = vadd.f32 %v876, %v879
  %vm881 = vweird.f32 %v746
  %vm882 = vweird.f32 %v876
  %vm883 = vmor %vm881, %vm882
  %v884 = vsel %vm883, %v876, %v880
  %v885 = vand.u32 2147483647, %v746
  %vm886 = vcmp.eq.f32.partialorder %v885, 8.507059e+37
  %v887 = vand.u32 %v746, 2147483648
  %v888 = vor.u32 1.1754944e-38, %v887
  %v889 = vsel %vm886, %v888, %v884
  %v890 = vmul.f32 %v762, %v889
  %v891 = vrcp.pop %v747
  %v892 = vmul.f32 %v747, %v891
  %v893 = vsub.f32 1.0, %v892
  %v894 = vmul.f32 %v891, %v893
  %v895 = vadd.f32 %v891, %v894
  %vm896 = vweird.f32 %v747
  %vm897 = vweird.f32 %v891
  %vm898 = vmor %vm896, %vm897
  %v899 = vsel %vm898, %v891, %v895
  %v900 = vand.u32 2147483647, %v747
  %vm901 = vcmp.eq.f32.partialorder %v900, 8.507059e+37
  %v902 = vand.u32 %v747, 2147483648
  %v903 = vor.u32 1.1754944e-38, %v902
  %v904 = vsel %vm901, %v903, %v899
  %v905 = vmul.f32 %v763, %v904
  %v906 = vrcp.pop %v748
  %v907 = vmul.f32 %v748, %v906
  %v908 = vsub.f32 1.0, %v907
  %v909 = vmul.f32 %v906, %v908
  %v910 = vadd.f32 %v906, %v909
  %vm911 = vweird.f32 %v748
  %vm912 = vweird.f32 %v906
  %vm913 = vmor %vm911, %vm912
  %v914 = vsel %vm913, %v906, %v910
  %v915 = vand.u32 2147483647, %v748
  %vm916 = vcmp.eq.f32.partialorder %v915, 8.507059e+37
  %v917 = vand.u32 %v748, 2147483648
  %v918 = vor.u32 1.1754944e-38, %v917
  %v919 = vsel %vm916, %v918, %v914
  %v920 = vmul.f32 %v764, %v919
  %v921 = vrcp.pop %v749
  %v922 = vmul.f32 %v749, %v921
  %v923 = vsub.f32 1.0, %v922
  %v924 = vmul.f32 %v921, %v923
  %v925 = vadd.f32 %v921, %v924
  %vm926 = vweird.f32 %v749
  %vm927 = vweird.f32 %v921
  %vm928 = vmor %vm926, %vm927
  %v929 = vsel %vm928, %v921, %v925
  %v930 = vand.u32 2147483647, %v749
  %vm931 = vcmp.eq.f32.partialorder %v930, 8.507059e+37
  %v932 = vand.u32 %v749, 2147483648
  %v933 = vor.u32 1.1754944e-38, %v932
  %v934 = vsel %vm931, %v933, %v929
  %v935 = vmul.f32 %v765, %v934
  %v936 = vrcp.pop %v750
  %v937 = vmul.f32 %v750, %v936
  %v938 = vsub.f32 1.0, %v937
  %v939 = vmul.f32 %v936, %v938
  %v940 = vadd.f32 %v936, %v939
  %vm941 = vweird.f32 %v750
  %vm942 = vweird.f32 %v936
  %vm943 = vmor %vm941, %vm942
  %v944 = vsel %vm943, %v936, %v940
  %v945 = vand.u32 2147483647, %v750
  %vm946 = vcmp.eq.f32.partialorder %v945, 8.507059e+37
  %v947 = vand.u32 %v750, 2147483648
  %v948 = vor.u32 1.1754944e-38, %v947
  %v949 = vsel %vm946, %v948, %v944
  %v950 = vmul.f32 %v766, %v949
  %v951 = vrcp.pop %v751
  %v952 = vmul.f32 %v751, %v951
  %v953 = vsub.f32 1.0, %v952
  %v954 = vmul.f32 %v951, %v953
  %v955 = vadd.f32 %v951, %v954
  %vm956 = vweird.f32 %v751
  %vm957 = vweird.f32 %v951
  %vm958 = vmor %vm956, %vm957
  %v959 = vsel %vm958, %v951, %v955
  %v960 = vand.u32 2147483647, %v751
  %vm961 = vcmp.eq.f32.partialorder %v960, 8.507059e+37
  %v962 = vand.u32 %v751, 2147483648
  %v963 = vor.u32 1.1754944e-38, %v962
  %v964 = vsel %vm961, %v963, %v959
  %v965 = vmul.f32 %v767, %v964
  %v966 = vrcp.pop %v752
  %v967 = vmul.f32 %v752, %v966
  %v968 = vsub.f32 1.0, %v967
  %v969 = vmul.f32 %v966, %v968
  %v970 = vadd.f32 %v966, %v969
  %vm971 = vweird.f32 %v752
  %vm972 = vweird.f32 %v966
  %vm973 = vmor %vm971, %vm972
  %v974 = vsel %vm973, %v966, %v970
  %v975 = vand.u32 2147483647, %v752
  %vm976 = vcmp.eq.f32.partialorder %v975, 8.507059e+37
  %v977 = vand.u32 %v752, 2147483648
  %v978 = vor.u32 1.1754944e-38, %v977
  %v979 = vsel %vm976, %v978, %v974
  %v980 = vmul.f32 %v768, %v979
  %v981 = vrcp.pop %v753
  %v982 = vmul.f32 %v753, %v981
  %v983 = vsub.f32 1.0, %v982
  %v984 = vmul.f32 %v981, %v983
  %v985 = vadd.f32 %v981, %v984
  %vm986 = vweird.f32 %v753
  %vm987 = vweird.f32 %v981
  %vm988 = vmor %vm986, %vm987
  %v989 = vsel %vm988, %v981, %v985
  %v990 = vand.u32 2147483647, %v753
  %vm991 = vcmp.eq.f32.partialorder %v990, 8.507059e+37
  %v992 = vand.u32 %v753, 2147483648
  %v993 = vor.u32 1.1754944e-38, %v992
  %v994 = vsel %vm991, %v993, %v989
  %v995 = vmul.f32 %v769, %v994
  %v996 = vrcp.pop %v754
  %v997 = vmul.f32 %v754, %v996
  %v998 = vsub.f32 1.0, %v997
  %v999 = vmul.f32 %v996, %v998
  %v1000 = vadd.f32 %v996, %v999
  %vm1001 = vweird.f32 %v754
  %vm1002 = vweird.f32 %v996
  %vm1003 = vmor %vm1001, %vm1002
  %v1004 = vsel %vm1003, %v996, %v1000
  %v1005 = vand.u32 2147483647, %v754
  %vm1006 = vcmp.eq.f32.partialorder %v1005, 8.507059e+37
  %v1007 = vand.u32 %v754, 2147483648
  %v1008 = vor.u32 1.1754944e-38, %v1007
  %v1009 = vsel %vm1006, %v1008, %v1004
  %v1010 = vmul.f32 %v770, %v1009
  %v1011 = vadd.f32 %v785, 1.0
  %v1012 = vadd.f32 %v800, 1.0
  %v1013 = vadd.f32 %v815, 1.0
  %v1014 = vadd.f32 %v830, 1.0
  %v1015 = vadd.f32 %v845, 1.0
  %v1016 = vadd.f32 %v860, 1.0
  %v1017 = vadd.f32 %v875, 1.0
  %v1018 = vadd.f32 %v890, 1.0
  %v1019 = vadd.f32 %v905, 1.0
  %v1020 = vadd.f32 %v920, 1.0
  %v1021 = vadd.f32 %v935, 1.0
  %v1022 = vadd.f32 %v950, 1.0
  %v1023 = vadd.f32 %v965, 1.0
  %v1024 = vadd.f32 %v980, 1.0
  %v1025 = vadd.f32 %v995, 1.0
  %v1026 = vadd.f32 %v1010, 1.0
  %v1027 = vmul.f32 %v355, %v1011
  %v1028 = vmul.f32 %v356, %v1012
  %v1029 = vmul.f32 %v357, %v1013
  %v1030 = vmul.f32 %v358, %v1014
  %v1031 = vmul.f32 %v359, %v1015
  %v1032 = vmul.f32 %v360, %v1016
  %v1033 = vmul.f32 %v361, %v1017
  %v1034 = vmul.f32 %v362, %v1018
  %v1035 = vmul.f32 %v363, %v1019
  %v1036 = vmul.f32 %v364, %v1020
  %v1037 = vmul.f32 %v365, %v1021
  %v1038 = vmul.f32 %v366, %v1022
  %v1039 = vmul.f32 %v367, %v1023
  %v1040 = vmul.f32 %v368, %v1024
  %v1041 = vmul.f32 %v369, %v1025
  %v1042 = vmul.f32 %v370, %v1026
  %v1043 = vpack.c.bf16 %v1031, %v1027
  %v1044 = vpack.c.bf16 %v1032, %v1028
  %v1045 = vpack.c.bf16 %v1033, %v1029
  %v1046 = vpack.c.bf16 %v1034, %v1030
  %v1047 = vpack.c.bf16 %v1039, %v1035
  %v1048 = vpack.c.bf16 %v1040, %v1036
  %v1049 = vpack.c.bf16 %v1041, %v1037
  %v1050 = vpack.c.bf16 %v1042, %v1038
  %v1051 = vld [vmem:[%s8] sm:$0xf]
  %v1052 = vld [vmem:[%s8 + $0x4] sm:$0xf]
  %v1053 = vld [vmem:[%s8 + $0x8] sm:$0xf]
  %v1054 = vld [vmem:[%s8 + $0xc] sm:$0xf]
  %v1055 = vld [vmem:[%s8 + $0x10] sm:$0xf]
  %v1056 = vld [vmem:[%s8 + $0x14] sm:$0xf]
  %v1057 = vld [vmem:[%s8 + $0x18] sm:$0xf]
  %v1058 = vld [vmem:[%s8 + $0x1c] sm:$0xf]
  %v1059 = vld [vmem:[%s8 + $0x20] sm:$0xf]
  %v1060 = vld [vmem:[%s8 + $0x24] sm:$0xf]
  %v1061 = vld [vmem:[%s8 + $0x28] sm:$0xf]
  %v1062 = vld [vmem:[%s8 + $0x2c] sm:$0xf]
  %v1063 = vld [vmem:[%s8 + $0x30] sm:$0xf]
  %v1064 = vld [vmem:[%s8 + $0x34] sm:$0xf]
  %v1065 = vld [vmem:[%s8 + $0x38] sm:$0xf]
  %v1066 = vld [vmem:[%s8 + $0x3c] sm:$0xf]
  %v1067 = vld [vmem:[%s8 + $0x40] sm:$0xf]
  %v1068 = vld [vmem:[%s8 + $0x44] sm:$0xf]
  %v1069 = vld [vmem:[%s8 + $0x48] sm:$0xf]
  %v1070 = vld [vmem:[%s8 + $0x4c] sm:$0xf]
  %v1071 = vld [vmem:[%s8 + $0x50] sm:$0xf]
  %v1072 = vld [vmem:[%s8 + $0x54] sm:$0xf]
  %v1073 = vld [vmem:[%s8 + $0x58] sm:$0xf]
  %v1074 = vld [vmem:[%s8 + $0x5c] sm:$0xf]
  %v1075 = vld [vmem:[%s8 + $0x60] sm:$0xf]
  %v1076 = vld [vmem:[%s8 + $0x64] sm:$0xf]
  %v1077 = vld [vmem:[%s8 + $0x68] sm:$0xf]
  %v1078 = vld [vmem:[%s8 + $0x6c] sm:$0xf]
  %v1079 = vld [vmem:[%s8 + $0x70] sm:$0xf]
  %v1080 = vld [vmem:[%s8 + $0x74] sm:$0xf]
  %v1081 = vld [vmem:[%s8 + $0x78] sm:$0xf]
  %v1082 = vld [vmem:[%s8 + $0x7c] sm:$0xf]
  %v1083 = vld [vmem:[%s8 + $0x80] sm:$0xf]
  %v1084 = vld [vmem:[%s8 + $0x84] sm:$0xf]
  %v1085 = vld [vmem:[%s8 + $0x88] sm:$0xf]
  %v1086 = vld [vmem:[%s8 + $0x8c] sm:$0xf]
  %v1087 = vld [vmem:[%s8 + $0x90] sm:$0xf]
  %v1088 = vld [vmem:[%s8 + $0x94] sm:$0xf]
  %v1089 = vld [vmem:[%s8 + $0x98] sm:$0xf]
  %v1090 = vld [vmem:[%s8 + $0x9c] sm:$0xf]
  %v1091 = vld [vmem:[%s8 + $0xa0] sm:$0xf]
  %v1092 = vld [vmem:[%s8 + $0xa4] sm:$0xf]
  %v1093 = vld [vmem:[%s8 + $0xa8] sm:$0xf]
  %v1094 = vld [vmem:[%s8 + $0xac] sm:$0xf]
  %v1095 = vld [vmem:[%s8 + $0xb0] sm:$0xf]
  %v1096 = vld [vmem:[%s8 + $0xb4] sm:$0xf]
  %v1097 = vld [vmem:[%s8 + $0xb8] sm:$0xf]
  %v1098 = vld [vmem:[%s8 + $0xbc] sm:$0xf]
  %v1099 = vld [vmem:[%s8 + $0xc0] sm:$0xf]
  %v1100 = vld [vmem:[%s8 + $0xc4] sm:$0xf]
  %v1101 = vld [vmem:[%s8 + $0xc8] sm:$0xf]
  %v1102 = vld [vmem:[%s8 + $0xcc] sm:$0xf]
  %v1103 = vld [vmem:[%s8 + $0xd0] sm:$0xf]
  %v1104 = vld [vmem:[%s8 + $0xd4] sm:$0xf]
  %v1105 = vld [vmem:[%s8 + $0xd8] sm:$0xf]
  %v1106 = vld [vmem:[%s8 + $0xdc] sm:$0xf]
  %v1107 = vld [vmem:[%s8 + $0xe0] sm:$0xf]
  %v1108 = vld [vmem:[%s8 + $0xe4] sm:$0xf]
  %v1109 = vld [vmem:[%s8 + $0xe8] sm:$0xf]
  %v1110 = vld [vmem:[%s8 + $0xec] sm:$0xf]
  %v1111 = vld [vmem:[%s8 + $0xf0] sm:$0xf]
  %v1112 = vld [vmem:[%s8 + $0xf4] sm:$0xf]
  %v1113 = vld [vmem:[%s8 + $0xf8] sm:$0xf]
  %v1114 = vld [vmem:[%s8 + $0xfc] sm:$0xf]
  %v1115 = vld [vmem:[%s9] sm:$0x1]
  %v1117 = vperm.slane %v1115, 0
  %v1183 = vunpack.c.l.b16 %v1051
  %v1184 = vunpack.c.l.b16 %v1052
  %v1185 = vunpack.c.l.b16 %v1053
  %v1186 = vunpack.c.l.b16 %v1054
  %v1187 = vunpack.c.l.b16 %v1055
  %v1188 = vunpack.c.l.b16 %v1056
  %v1189 = vunpack.c.l.b16 %v1057
  %v1190 = vunpack.c.l.b16 %v1058
  %v1191 = vunpack.c.l.b16 %v1059
  %v1192 = vunpack.c.l.b16 %v1060
  %v1193 = vunpack.c.l.b16 %v1061
  %v1194 = vunpack.c.l.b16 %v1062
  %v1195 = vunpack.c.l.b16 %v1063
  %v1196 = vunpack.c.l.b16 %v1064
  %v1197 = vunpack.c.l.b16 %v1065
  %v1198 = vunpack.c.l.b16 %v1066
  %v1199 = vunpack.c.l.b16 %v1067
  %v1200 = vunpack.c.l.b16 %v1068
  %v1201 = vunpack.c.l.b16 %v1069
  %v1202 = vunpack.c.l.b16 %v1070
  %v1203 = vunpack.c.l.b16 %v1071
  %v1204 = vunpack.c.l.b16 %v1072
  %v1205 = vunpack.c.l.b16 %v1073
  %v1206 = vunpack.c.l.b16 %v1074
  %v1207 = vunpack.c.l.b16 %v1075
  %v1208 = vunpack.c.l.b16 %v1076
  %v1209 = vunpack.c.l.b16 %v1077
  %v1210 = vunpack.c.l.b16 %v1078
  %v1211 = vunpack.c.l.b16 %v1079
  %v1212 = vunpack.c.l.b16 %v1080
  %v1213 = vunpack.c.l.b16 %v1081
  %v1214 = vunpack.c.l.b16 %v1082
  %v1215 = vunpack.c.l.b16 %v1083
  %v1216 = vunpack.c.l.b16 %v1084
  %v1217 = vunpack.c.l.b16 %v1085
  %v1218 = vunpack.c.l.b16 %v1086
  %v1219 = vunpack.c.l.b16 %v1087
  %v1220 = vunpack.c.l.b16 %v1088
  %v1221 = vunpack.c.l.b16 %v1089
  %v1222 = vunpack.c.l.b16 %v1090
  %v1223 = vunpack.c.l.b16 %v1091
  %v1224 = vunpack.c.l.b16 %v1092
  %v1225 = vunpack.c.l.b16 %v1093
  %v1226 = vunpack.c.l.b16 %v1094
  %v1227 = vunpack.c.l.b16 %v1095
  %v1228 = vunpack.c.l.b16 %v1096
  %v1229 = vunpack.c.l.b16 %v1097
  %v1230 = vunpack.c.l.b16 %v1098
  %v1231 = vunpack.c.l.b16 %v1099
  %v1232 = vunpack.c.l.b16 %v1100
  %v1233 = vunpack.c.l.b16 %v1101
  %v1234 = vunpack.c.l.b16 %v1102
  %v1235 = vunpack.c.l.b16 %v1103
  %v1236 = vunpack.c.l.b16 %v1104
  %v1237 = vunpack.c.l.b16 %v1105
  %v1238 = vunpack.c.l.b16 %v1106
  %v1239 = vunpack.c.l.b16 %v1107
  %v1240 = vunpack.c.l.b16 %v1108
  %v1241 = vunpack.c.l.b16 %v1109
  %v1242 = vunpack.c.l.b16 %v1110
  %v1243 = vunpack.c.l.b16 %v1111
  %v1244 = vunpack.c.l.b16 %v1112
  %v1245 = vunpack.c.l.b16 %v1113
  %v1246 = vunpack.c.l.b16 %v1114
  %v1247 = vpack.c.b16 %v1184, %v1183
  %v1248 = vpack.c.b16 %v1186, %v1185
  %v1249 = vpack.c.b16 %v1188, %v1187
  %v1250 = vpack.c.b16 %v1190, %v1189
  %v1251 = vpack.c.b16 %v1192, %v1191
  %v1252 = vpack.c.b16 %v1194, %v1193
  %v1253 = vpack.c.b16 %v1196, %v1195
  %v1254 = vpack.c.b16 %v1198, %v1197
  %v1255 = vpack.c.b16 %v1200, %v1199
  %v1256 = vpack.c.b16 %v1202, %v1201
  %v1257 = vpack.c.b16 %v1204, %v1203
  %v1258 = vpack.c.b16 %v1206, %v1205
  %v1259 = vpack.c.b16 %v1208, %v1207
  %v1260 = vpack.c.b16 %v1210, %v1209
  %v1261 = vpack.c.b16 %v1212, %v1211
  %v1262 = vpack.c.b16 %v1214, %v1213
  %v1263 = vpack.c.b16 %v1216, %v1215
  %v1264 = vpack.c.b16 %v1218, %v1217
  %v1265 = vpack.c.b16 %v1220, %v1219
  %v1266 = vpack.c.b16 %v1222, %v1221
  %v1267 = vpack.c.b16 %v1224, %v1223
  %v1268 = vpack.c.b16 %v1226, %v1225
  %v1269 = vpack.c.b16 %v1228, %v1227
  %v1270 = vpack.c.b16 %v1230, %v1229
  %v1271 = vpack.c.b16 %v1232, %v1231
  %v1272 = vpack.c.b16 %v1234, %v1233
  %v1273 = vpack.c.b16 %v1236, %v1235
  %v1274 = vpack.c.b16 %v1238, %v1237
  %v1275 = vpack.c.b16 %v1240, %v1239
  %v1276 = vpack.c.b16 %v1242, %v1241
  %v1277 = vpack.c.b16 %v1244, %v1243
  %v1278 = vpack.c.b16 %v1246, %v1245
  %1311 = vmatpush.bf16.msra.mxu0 %v1254
  %1312 = vmatpush.bf16.msra.mxu0 %v1253
  %1313 = vmatpush.bf16.msra.mxu0 %v1252
  %1314 = vmatpush.bf16.msra.mxu0 %v1251
  %1315 = vmatpush.bf16.msra.mxu0 %v1250
  %1316 = vmatpush.bf16.msra.mxu0 %v1249
  %1317 = vmatpush.bf16.msra.mxu0 %v1248
  %1318 = vmatpush.bf16.msra.mxu0 %v1247
  %1319 = vmatmul.bf16.gmra.mxu0 %v1043
  %v1320 = vpop.f32.mrf.mxu0
  %v1321 = vadd.f32 %v1117, %v1320
  %v1322 = vpop.f32.mrf.mxu0
  %v1323 = vadd.f32 %v1117, %v1322
  %1324 = vmatmul.bf16.gmra.mxu0 %v1047
  %v1325 = vpop.f32.mrf.mxu0
  %v1326 = vadd.f32 %v1117, %v1325
  %v1327 = vpop.f32.mrf.mxu0
  %v1328 = vadd.f32 %v1117, %v1327
  %1329 = vdwg.mxu0
  %1330 = vmatpush.bf16.msra.mxu0 %v1262
  %1331 = vmatpush.bf16.msra.mxu0 %v1261
  %1332 = vmatpush.bf16.msra.mxu0 %v1260
  %1333 = vmatpush.bf16.msra.mxu0 %v1259
  %1334 = vmatpush.bf16.msra.mxu0 %v1258
  %1335 = vmatpush.bf16.msra.mxu0 %v1257
  %1336 = vmatpush.bf16.msra.mxu0 %v1256
  %1337 = vmatpush.bf16.msra.mxu0 %v1255
  %1338 = vmatmul.bf16.gmra.mxu0 %v1044
  %v1339 = vpop.f32.mrf.mxu0
  %v1340 = vadd.f32 %v1321, %v1339
  %v1341 = vpop.f32.mrf.mxu0
  %v1342 = vadd.f32 %v1323, %v1341
  %1343 = vmatmul.bf16.gmra.mxu0 %v1048
  %v1344 = vpop.f32.mrf.mxu0
  %v1345 = vadd.f32 %v1326, %v1344
  %v1346 = vpop.f32.mrf.mxu0
  %v1347 = vadd.f32 %v1328, %v1346
  %1348 = vdwg.mxu0
  %1349 = vmatpush.bf16.msra.mxu0 %v1270
  %1350 = vmatpush.bf16.msra.mxu0 %v1269
  %1351 = vmatpush.bf16.msra.mxu0 %v1268
  %1352 = vmatpush.bf16.msra.mxu0 %v1267
  %1353 = vmatpush.bf16.msra.mxu0 %v1266
  %1354 = vmatpush.bf16.msra.mxu0 %v1265
  %1355 = vmatpush.bf16.msra.mxu0 %v1264
  %1356 = vmatpush.bf16.msra.mxu0 %v1263
  %1357 = vmatmul.bf16.gmra.mxu0 %v1045
  %v1358 = vpop.f32.mrf.mxu0
  %v1359 = vadd.f32 %v1340, %v1358
  %v1360 = vpop.f32.mrf.mxu0
  %v1361 = vadd.f32 %v1342, %v1360
  %1362 = vmatmul.bf16.gmra.mxu0 %v1049
  %v1363 = vpop.f32.mrf.mxu0
  %v1364 = vadd.f32 %v1345, %v1363
  %v1365 = vpop.f32.mrf.mxu0
  %v1366 = vadd.f32 %v1347, %v1365
  %1367 = vdwg.mxu0
  %1368 = vmatpush.bf16.msra.mxu0 %v1278
  %1369 = vmatpush.bf16.msra.mxu0 %v1277
  %1370 = vmatpush.bf16.msra.mxu0 %v1276
  %1371 = vmatpush.bf16.msra.mxu0 %v1275
  %1372 = vmatpush.bf16.msra.mxu0 %v1274
  %1373 = vmatpush.bf16.msra.mxu0 %v1273
  %1374 = vmatpush.bf16.msra.mxu0 %v1272
  %1375 = vmatpush.bf16.msra.mxu0 %v1271
  %1376 = vmatmul.bf16.gmra.mxu0 %v1046
  %v1377 = vpop.f32.mrf.mxu0
  %v1378 = vadd.f32 %v1359, %v1377
  %v1379 = vpop.f32.mrf.mxu0
  %v1380 = vadd.f32 %v1361, %v1379
  %1381 = vmatmul.bf16.gmra.mxu0 %v1050
  %v1382 = vpop.f32.mrf.mxu0
  %v1383 = vadd.f32 %v1364, %v1382
  %v1384 = vpop.f32.mrf.mxu0
  %v1385 = vadd.f32 %v1366, %v1384
  %1386 = vdwg.mxu0
  %v1387 = vadd.f32 %v209, %v1378
  %v1388 = vadd.f32 %v210, %v1380
  %v1389 = vadd.f32 %v211, %v1383
  %v1390 = vadd.f32 %v212, %v1385
  %v1391 = vld [vmem:[%s10] sm:$0x1]
  %v1392 = vld [vmem:[%s11] sm:$0x1]
  %v1393 = vsel %vm68, %v1387, 0.0
  %1394 = vadd.xlane.f32.xlu0 %v1393
  %v1395 = vpop.xlane.xlu0 %1394
  %v1396 = vsel %vm68, %v1388, 0.0
  %1397 = vadd.xlane.f32.xlu0 %v1396
  %v1398 = vpop.xlane.xlu0 %1397
  %v1399 = vsel %vm68, %v1389, 0.0
  %1400 = vadd.xlane.f32.xlu0 %v1399
  %v1401 = vpop.xlane.xlu0 %1400
  %v1402 = vsel %vm68, %v1390, 0.0
  %1403 = vadd.xlane.f32.xlu0 %v1402
  %v1404 = vpop.xlane.xlu0 %1403
  %v1405 = vmul.f32 %v1395, %v122
  %v1406 = vmul.f32 %v1398, %v122
  %v1407 = vmul.f32 %v1401, %v122
  %v1408 = vmul.f32 %v1404, %v122
  %v1409 = vsub.f32 %v1387, %v1405
  %v1410 = vsub.f32 %v1388, %v1406
  %v1411 = vsub.f32 %v1389, %v1407
  %v1412 = vsub.f32 %v1390, %v1408
  %v1413 = vmul.f32 %v1409, %v1409
  %v1414 = vmul.f32 %v1410, %v1410
  %v1415 = vmul.f32 %v1411, %v1411
  %v1416 = vmul.f32 %v1412, %v1412
  %v1417 = vsel %vm68, %v1413, 0.0
  %1418 = vadd.xlane.f32.xlu0 %v1417
  %v1419 = vpop.xlane.xlu0 %1418
  %v1420 = vsel %vm68, %v1414, 0.0
  %1421 = vadd.xlane.f32.xlu0 %v1420
  %v1422 = vpop.xlane.xlu0 %1421
  %v1423 = vsel %vm68, %v1415, 0.0
  %1424 = vadd.xlane.f32.xlu0 %v1423
  %v1425 = vpop.xlane.xlu0 %1424
  %v1426 = vsel %vm68, %v1416, 0.0
  %1427 = vadd.xlane.f32.xlu0 %v1426
  %v1428 = vpop.xlane.xlu0 %1427
  %v1429 = vmul.f32 %v1419, %v122
  %v1430 = vmul.f32 %v1422, %v122
  %v1431 = vmul.f32 %v1425, %v122
  %v1432 = vmul.f32 %v1428, %v122
  %v1433 = vadd.f32 %v1429, 1e-05
  %v1434 = vadd.f32 %v1430, 1e-05
  %v1435 = vadd.f32 %v1431, 1e-05
  %v1436 = vadd.f32 %v1432, 1e-05
  %v1437 = vrsqrt.pop %v1433
  %v1438 = vmul.f32 %v1437, %v1433
  %v1439 = vmul.f32 %v1438, %v1437
  %v1440 = vmul.f32 0.5, %v1439
  %v1441 = vsub.f32 1.5, %v1440
  %v1442 = vmul.f32 %v1437, %v1441
  %vm1443 = vweird.f32 %v1433
  %vm1444 = vweird.f32 %v1437
  %vm1445 = vmor %vm1443, %vm1444
  %v1446 = vsel %vm1445, %v1437, %v1442
  %v1447 = vrsqrt.pop %v1434
  %v1448 = vmul.f32 %v1447, %v1434
  %v1449 = vmul.f32 %v1448, %v1447
  %v1450 = vmul.f32 0.5, %v1449
  %v1451 = vsub.f32 1.5, %v1450
  %v1452 = vmul.f32 %v1447, %v1451
  %vm1453 = vweird.f32 %v1434
  %vm1454 = vweird.f32 %v1447
  %vm1455 = vmor %vm1453, %vm1454
  %v1456 = vsel %vm1455, %v1447, %v1452
  %v1457 = vrsqrt.pop %v1435
  %v1458 = vmul.f32 %v1457, %v1435
  %v1459 = vmul.f32 %v1458, %v1457
  %v1460 = vmul.f32 0.5, %v1459
  %v1461 = vsub.f32 1.5, %v1460
  %v1462 = vmul.f32 %v1457, %v1461
  %vm1463 = vweird.f32 %v1435
  %vm1464 = vweird.f32 %v1457
  %vm1465 = vmor %vm1463, %vm1464
  %v1466 = vsel %vm1465, %v1457, %v1462
  %v1467 = vrsqrt.pop %v1436
  %v1468 = vmul.f32 %v1467, %v1436
  %v1469 = vmul.f32 %v1468, %v1467
  %v1470 = vmul.f32 0.5, %v1469
  %v1471 = vsub.f32 1.5, %v1470
  %v1472 = vmul.f32 %v1467, %v1471
  %vm1473 = vweird.f32 %v1436
  %vm1474 = vweird.f32 %v1467
  %vm1475 = vmor %vm1473, %vm1474
  %v1476 = vsel %vm1475, %v1467, %v1472
  %v1477 = vmul.f32 %v1409, %v1446
  %v1478 = vmul.f32 %v1410, %v1456
  %v1479 = vmul.f32 %v1411, %v1466
  %v1480 = vmul.f32 %v1412, %v1476
  %v1482 = vperm.slane %v1391, 0
  %v1484 = vmul.f32 %v1477, %v1482
  %v1485 = vmul.f32 %v1478, %v1482
  %v1486 = vmul.f32 %v1479, %v1482
  %v1487 = vmul.f32 %v1480, %v1482
  %v1489 = vperm.slane %v1392, 0
  %v1491 = vadd.f32 %v1484, %v1489
  %v1492 = vadd.f32 %v1485, %v1489
  %v1493 = vadd.f32 %v1486, %v1489
  %v1494 = vadd.f32 %v1487, %v1489
  %1495 = vst.msk [vmem:[%s12] sm:$0xff] %vm68, %v1491
  %1496 = vst.msk [vmem:[%s12 + $0x8] sm:$0xff] %vm68, %v1492
  %1497 = vst.msk [vmem:[%s12 + $0x10] sm:$0xff] %vm68, %v1493
  %1498 = vst.msk [vmem:[%s12 + $0x18] sm:$0xff] %vm68, %v1494
  // Predicated region
  $region50: #{reformer_forward.11} parent=0 // pred_check
    _
  $region51: #{reformer_forward.11} parent=0 // pred_check_branch
    %1500 = sbr.rel (0) target = $region53
  $region52: #{reformer_forward.11} parent=0 // pred_region
    _
  $region53: #{reformer_forward.11} parent=0 // pred_fallthru
    _
  // Predicated region
  $region54: #{reformer_forward.11} parent=0 // pred_check
    _
  $region55: #{reformer_forward.11} parent=0 // pred_check_branch
    %1502 = sbr.rel (0) target = $region57
  $region56: #{reformer_forward.11} parent=0 // pred_region
    _
  $region57: #{reformer_forward.11} parent=0 // pred_fallthru
    _

// kernel: reformer_forward.10
$region0: #{reformer_forward.10}
  #allocation0 [shape = 'u32[]', space=smem, size = 0x4, offset = 0x4, fixed_abs, tag = 'smem constant byte address 0x4 - core index']
  #allocation1 [shape = 'u32[72,128]{1,0:T(1,128)}', space=vmem, size = 0x9000, scoped, tag = 'internal scratch']
  %s0 = inlined_call_operand.vmem [shape: f32[128,4,8], index: 0, kind: input, shape index: {}]
  %s1 = inlined_call_operand.vmem [shape: f32[128,8,8], index: 1, kind: input, shape index: {}]
  %s2 = inlined_call_operand.vmem [shape: f32[128,8,8], index: 2, kind: input, shape index: {}]
  %s3 = inlined_call_operand.vmem [shape: s32[128,4], index: 3, kind: input, shape index: {}]
  %s4 = inlined_call_operand.vmem [shape: s32[128,8], index: 4, kind: input, shape index: {}]
  %s5 = inlined_call_operand.vmem [shape: f32[128,32], index: 5, kind: output, shape index: {0}]
  %s6 = inlined_call_operand.vmem [shape: f32[128,4], index: 6, kind: output, shape index: {1}]
  %7 = xla_tuple %s5, %s6
  %s8 = sld [smem:[#allocation0]]
  $region61: #{reformer_forward.10} parent=0
    _
  %s10 = ssub.s32 1, %s8
  %s11 = scalar_select 0, %s10, %s8
  loop: start=0, step=1, limit=6
  $region2: #{reformer_forward.10} parent=0 // loop_pre_header
    _
  $region3: #{reformer_forward.10} parent=0 // loop_header
    %s13 = sphi 0, %s17
    %p14 = scmp.ge.s32.totalorder %s13, 6
    %s23 = sphi 0, %s25
    %s26 = sphi 0, %s23
    %s27 = sphi 0, %s26
    %s43 = sphi 0, %s27
    %s49 = sphi 0, %s51
    %s52 = sphi 0, %s49
    %s53 = sphi 0, %s52
    %s69 = sphi 0, %s53
    %s75 = sphi 0, %s77
    %s78 = sphi 0, %s75
    %s79 = sphi 0, %s78
    %s95 = sphi 0, %s79
    %s101 = sphi 0, %s103
    %s104 = sphi 0, %s101
    %s105 = sphi 0, %s104
    %s121 = sphi 0, %s105
    %s127 = sphi 0, %s129
    %s130 = sphi 0, %s127
    %s131 = sphi 0, %s130
    %s147 = sphi 0, %s131
    %s153 = sphi 0, %s155
    %s156 = sphi 0, %s153
    %s157 = sphi 0, %s156
    %s173 = sphi 0, %s157
    %s179 = sphi 0, %s181
    %s182 = sphi 0, %s179
    %s183 = sphi 0, %s182
    %s199 = sphi 0, %s183
  $region4: #{reformer_forward.10} parent=0 // loop_header_branch
    %16 = sbr.rel (%p14) target = $region8
  $region5: #{reformer_forward.10} parent=0 // loop_body
    %s18 = ssub.s32 %s13, 1
    %s19 = ssub.s32 %s13, 2
    %s20 = sadd.s32 %s13, 1
    %s21 = ssub.s32 %s13, %s20
    %p22 = scmp.eq.s32.totalorder %s21, 0
    %s24 = sadd.s32 %s23, 1
    %s25 = scalar_select %p22, %s23, %s24
    %p28 = pneg %p22
    %p29 = scmp.eq.s32.totalorder %s13, 3
    %p30 = por %p28, %p29
    %p31 = scmp.ne.s32.totalorder %s23, %s26
    %p32 = scmp.eq.s32.totalorder %s13, 0
    %p33 = por %p31, %p32
    %p34 = scmp.ne.s32.totalorder %s23, %s26
    %p35 = scmp.eq.s32.totalorder %s18, 3
    %p36 = por %p34, %p35
    %p37 = scmp.ne.s32.totalorder %s26, %s27
    %p38 = scmp.eq.s32.totalorder %s18, 0
    %p39 = por %p37, %p38
    %p40 = scmp.ne.s32.totalorder %s26, %s27
    %p41 = scmp.eq.s32.totalorder %s19, 3
    %p42 = por %p40, %p41
    %p44 = scmp.ne.s32.totalorder %s27, %s43
    %p45 = scmp.eq.s32.totalorder %s19, 0
    %p46 = por %p44, %p45
    %s47 = ssub.s32 %s13, %s20
    %p48 = scmp.eq.s32.totalorder %s47, 0
    %s50 = sadd.s32 %s49, 1
    %s51 = scalar_select %p48, %s49, %s50
    %p54 = pneg %p48
    %p55 = scmp.eq.s32.totalorder %s13, 3
    %p56 = por %p54, %p55
    %p57 = scmp.ne.s32.totalorder %s49, %s52
    %p58 = scmp.eq.s32.totalorder %s13, 0
    %p59 = por %p57, %p58
    %p60 = scmp.ne.s32.totalorder %s49, %s52
    %p61 = scmp.eq.s32.totalorder %s18, 3
    %p62 = por %p60, %p61
    %p63 = scmp.ne.s32.totalorder %s52, %s53
    %p64 = scmp.eq.s32.totalorder %s18, 0
    %p65 = por %p63, %p64
    %p66 = scmp.ne.s32.totalorder %s52, %s53
    %p67 = scmp.eq.s32.totalorder %s19, 3
    %p68 = por %p66, %p67
    %p70 = scmp.ne.s32.totalorder %s53, %s69
    %p71 = scmp.eq.s32.totalorder %s19, 0
    %p72 = por %p70, %p71
    %s73 = ssub.s32 %s13, %s20
    %p74 = scmp.eq.s32.totalorder %s73, 0
    %s76 = sadd.s32 %s75, 1
    %s77 = scalar_select %p74, %s75, %s76
    %p80 = pneg %p74
    %p81 = scmp.eq.s32.totalorder %s13, 3
    %p82 = por %p80, %p81
    %p83 = scmp.ne.s32.totalorder %s75, %s78
    %p84 = scmp.eq.s32.totalorder %s13, 0
    %p85 = por %p83, %p84
    %p86 = scmp.ne.s32.totalorder %s75, %s78
    %p87 = scmp.eq.s32.totalorder %s18, 3
    %p88 = por %p86, %p87
    %p89 = scmp.ne.s32.totalorder %s78, %s79
    %p90 = scmp.eq.s32.totalorder %s18, 0
    %p91 = por %p89, %p90
    %p92 = scmp.ne.s32.totalorder %s78, %s79
    %p93 = scmp.eq.s32.totalorder %s19, 3
    %p94 = por %p92, %p93
    %p96 = scmp.ne.s32.totalorder %s79, %s95
    %p97 = scmp.eq.s32.totalorder %s19, 0
    %p98 = por %p96, %p97
    %s99 = ssub.s32 %s13, %s20
    %p100 = scmp.eq.s32.totalorder %s99, 0
    %s102 = sadd.s32 %s101, 1
    %s103 = scalar_select %p100, %s101, %s102
    %p106 = pneg %p100
    %p107 = scmp.eq.s32.totalorder %s13, 3
    %p108 = por %p106, %p107
    %p109 = scmp.ne.s32.totalorder %s101, %s104
    %p110 = scmp.eq.s32.totalorder %s13, 0
    %p111 = por %p109, %p110
    %p112 = scmp.ne.s32.totalorder %s101, %s104
    %p113 = scmp.eq.s32.totalorder %s18, 3
    %p114 = por %p112, %p113
    %p115 = scmp.ne.s32.totalorder %s104, %s105
    %p116 = scmp.eq.s32.totalorder %s18, 0
    %p117 = por %p115, %p116
    %p118 = scmp.ne.s32.totalorder %s104, %s105
    %p119 = scmp.eq.s32.totalorder %s19, 3
    %p120 = por %p118, %p119
    %p122 = scmp.ne.s32.totalorder %s105, %s121
    %p123 = scmp.eq.s32.totalorder %s19, 0
    %p124 = por %p122, %p123
    %s125 = ssub.s32 %s13, %s20
    %p126 = scmp.eq.s32.totalorder %s125, 0
    %s128 = sadd.s32 %s127, 1
    %s129 = scalar_select %p126, %s127, %s128
    %p132 = pneg %p126
    %p133 = scmp.eq.s32.totalorder %s13, 3
    %p134 = por %p132, %p133
    %p135 = scmp.ne.s32.totalorder %s127, %s130
    %p136 = scmp.eq.s32.totalorder %s13, 0
    %p137 = por %p135, %p136
    %p138 = scmp.ne.s32.totalorder %s127, %s130
    %p139 = scmp.eq.s32.totalorder %s18, 3
    %p140 = por %p138, %p139
    %p141 = scmp.ne.s32.totalorder %s130, %s131
    %p142 = scmp.eq.s32.totalorder %s18, 0
    %p143 = por %p141, %p142
    %p144 = scmp.ne.s32.totalorder %s130, %s131
    %p145 = scmp.eq.s32.totalorder %s19, 3
    %p146 = por %p144, %p145
    %p148 = scmp.ne.s32.totalorder %s131, %s147
    %p149 = scmp.eq.s32.totalorder %s19, 0
    %p150 = por %p148, %p149
    %s151 = ssub.s32 %s13, %s20
    %p152 = scmp.eq.s32.totalorder %s151, 0
    %s154 = sadd.s32 %s153, 1
    %s155 = scalar_select %p152, %s153, %s154
    %p158 = pneg %p152
    %p159 = scmp.eq.s32.totalorder %s13, 3
    %p160 = por %p158, %p159
    %p161 = scmp.ne.s32.totalorder %s153, %s156
    %p162 = scmp.eq.s32.totalorder %s13, 0
    %p163 = por %p161, %p162
    %p164 = scmp.ne.s32.totalorder %s153, %s156
    %p165 = scmp.eq.s32.totalorder %s18, 3
    %p166 = por %p164, %p165
    %p167 = scmp.ne.s32.totalorder %s156, %s157
    %p168 = scmp.eq.s32.totalorder %s18, 0
    %p169 = por %p167, %p168
    %p170 = scmp.ne.s32.totalorder %s156, %s157
    %p171 = scmp.eq.s32.totalorder %s19, 3
    %p172 = por %p170, %p171
    %p174 = scmp.ne.s32.totalorder %s157, %s173
    %p175 = scmp.eq.s32.totalorder %s19, 0
    %p176 = por %p174, %p175
    %s177 = ssub.s32 %s13, %s20
    %p178 = scmp.eq.s32.totalorder %s177, 0
    %s180 = sadd.s32 %s179, 1
    %s181 = scalar_select %p178, %s179, %s180
    %p184 = pneg %p178
    %p185 = scmp.eq.s32.totalorder %s13, 3
    %p186 = por %p184, %p185
    %p187 = scmp.ne.s32.totalorder %s179, %s182
    %p188 = scmp.eq.s32.totalorder %s13, 0
    %p189 = por %p187, %p188
    %p190 = scmp.ne.s32.totalorder %s179, %s182
    %p191 = scmp.eq.s32.totalorder %s18, 3
    %p192 = por %p190, %p191
    %p193 = scmp.ne.s32.totalorder %s182, %s183
    %p194 = scmp.eq.s32.totalorder %s18, 0
    %p195 = por %p193, %p194
    %p196 = scmp.ne.s32.totalorder %s182, %s183
    %p197 = scmp.eq.s32.totalorder %s19, 3
    %p198 = por %p196, %p197
    %p200 = scmp.ne.s32.totalorder %s183, %s199
    %p201 = scmp.eq.s32.totalorder %s19, 0
    %p202 = por %p200, %p201
    %p203 = scmp.le.s32.totalorder 1, %s13
    %p204 = scmp.lt.s32.totalorder %s13, 5
    %p205 = pnand %p203, %p204
    %p206 = pneg %p205
    // Predicated region
    $region9: #{reformer_forward.10} parent=5 // pred_check
      _
    $region10: #{reformer_forward.10} parent=5 // pred_check_branch
      %208 = sbr.rel (%p205) target = $region12
    $region11: #{reformer_forward.10} parent=5 // pred_region
      %s209 = ssub.s32 %s13, 1
    $region12: #{reformer_forward.10} parent=5 // pred_fallthru
      _
    %p210 = scmp.lt.s32.totalorder %s13, 4
    // Predicated region
    $region13: #{reformer_forward.10} parent=5 // pred_check
      %p211 = pneg %p210
    $region14: #{reformer_forward.10} parent=5 // pred_check_branch
      %213 = sbr.rel (%p211) target = $region16
    $region15: #{reformer_forward.10} parent=5 // pred_region
      // Predicated region
      $region17: #{reformer_forward.10} parent=15 // pred_check
        %p214 = pneg %p33
      $region18: #{reformer_forward.10} parent=15 // pred_check_branch
        %216 = sbr.rel (%p214) target = $region20
      $region19: #{reformer_forward.10} parent=15 // pred_region
        %s217 = smul.u32 32, %s13
        %p218 = scmp.lt.s32.totalorder %s217, 127
        %s219 = scalar_select %p218, %s217, 127
        %s220 = smul.addr %s219, 4
        %s221 = scalar_lea.vmem %s0, %s220
        %s222 = smul.u32 32, %s13
      $region20: #{reformer_forward.10} parent=15 // pred_fallthru
        _
      // Predicated region
      $region21: #{reformer_forward.10} parent=15 // pred_check
        %p223 = pneg %p59
      $region22: #{reformer_forward.10} parent=15 // pred_check_branch
        %225 = sbr.rel (%p223) target = $region24
      $region23: #{reformer_forward.10} parent=15 // pred_region
        %s226 = smul.u32 32, %s13
        %p227 = scmp.lt.s32.totalorder %s226, 127
        %s228 = scalar_select %p227, %s226, 127
        %s229 = smul.addr %s228, 8
        %s230 = scalar_lea.vmem %s1, %s229
        %s231 = smul.u32 32, %s13
      $region24: #{reformer_forward.10} parent=15 // pred_fallthru
        _
      // Predicated region
      $region25: #{reformer_forward.10} parent=15 // pred_check
        %p232 = pneg %p85
      $region26: #{reformer_forward.10} parent=15 // pred_check_branch
        %234 = sbr.rel (%p232) target = $region28
      $region27: #{reformer_forward.10} parent=15 // pred_region
        %s235 = smul.u32 32, %s13
        %p236 = scmp.lt.s32.totalorder %s235, 127
        %s237 = scalar_select %p236, %s235, 127
        %s238 = smul.addr %s237, 8
        %s239 = scalar_lea.vmem %s2, %s238
        %s240 = smul.u32 32, %s13
      $region28: #{reformer_forward.10} parent=15 // pred_fallthru
        _
      // Predicated region
      $region29: #{reformer_forward.10} parent=15 // pred_check
        %p241 = pneg %p111
      $region30: #{reformer_forward.10} parent=15 // pred_check_branch
        %243 = sbr.rel (%p241) target = $region32
      $region31: #{reformer_forward.10} parent=15 // pred_region
        %s244 = smul.u32 4, %s13
        %p245 = scmp.lt.s32.totalorder %s244, 15
        %s246 = scalar_select %p245, %s244, 15
        %s247 = smul.addr %s246, 8
        %s248 = scalar_lea.vmem %s3, %s247
        %s249 = smul.u32 4, %s13
      $region32: #{reformer_forward.10} parent=15 // pred_fallthru
        _
      // Predicated region
      $region33: #{reformer_forward.10} parent=15 // pred_check
        %p250 = pneg %p137
      $region34: #{reformer_forward.10} parent=15 // pred_check_branch
        %252 = sbr.rel (%p250) target = $region36
      $region35: #{reformer_forward.10} parent=15 // pred_region
        %s253 = smul.u32 4, %s13
        %p254 = scmp.lt.s32.totalorder %s253, 15
        %s255 = scalar_select %p254, %s253, 15
        %s256 = smul.addr %s255, 8
        %s257 = scalar_lea.vmem %s4, %s256
        %s258 = smul.u32 4, %s13
      $region36: #{reformer_forward.10} parent=15 // pred_fallthru
        _
    $region16: #{reformer_forward.10} parent=5 // pred_fallthru
      _
    %p259 = scmp.le.s32.totalorder 1, %s13
    %p260 = scmp.lt.s32.totalorder %s13, 5
    %p261 = pnand %p259, %p260
    %p262 = pneg %p261
    // Predicated region
    $region37: #{reformer_forward.10} parent=5 // pred_check
      _
    $region38: #{reformer_forward.10} parent=5 // pred_check_branch
      %264 = sbr.rel (%p261) target = $region40
    $region39: #{reformer_forward.10} parent=5 // pred_region
      %s265 = ssub.s32 %s13, 1
      %s266 = smul.u32 32, %s18
      %p267 = scmp.lt.s32.totalorder %s266, 127
      %s268 = scalar_select %p267, %s266, 127
      %s269 = smul.addr %s268, 4
      %s270 = scalar_lea.vmem %s0, %s269
      %p271 = pneg %p39
      %p272 = pneg %p36
      %s273 = smul.u32 32, %s18
      %p274 = scmp.lt.s32.totalorder %s273, 127
      %s275 = scalar_select %p274, %s273, 127
      %s276 = smul.addr %s275, 8
      %s277 = scalar_lea.vmem %s1, %s276
      %p278 = pneg %p65
      %p279 = pneg %p62
      %s280 = smul.u32 32, %s18
      %p281 = scmp.lt.s32.totalorder %s280, 127
      %s282 = scalar_select %p281, %s280, 127
      %s283 = smul.addr %s282, 8
      %s284 = scalar_lea.vmem %s2, %s283
      %p285 = pneg %p91
      %p286 = pneg %p88
      %s287 = smul.u32 4, %s18
      %p288 = scmp.lt.s32.totalorder %s287, 15
      %s289 = scalar_select %p288, %s287, 15
      %s290 = smul.addr %s289, 8
      %s291 = scalar_lea.vmem %s3, %s290
      %p292 = pneg %p117
      %p293 = pneg %p114
      %s294 = smul.u32 4, %s18
      %p295 = scmp.lt.s32.totalorder %s294, 15
      %s296 = scalar_select %p295, %s294, 15
      %s297 = smul.addr %s296, 8
      %s298 = scalar_lea.vmem %s4, %s297
      %p299 = pneg %p143
      %p300 = pneg %p140
      %p301 = pneg %p169
      %p302 = pneg %p166
      %s303 = smul.u32 4, %s18
      %p304 = scmp.lt.s32.totalorder %s303, 15
      %s305 = scalar_select %p304, %s303, 15
      %s306 = smul.addr %s305, 8
      %s307 = scalar_lea.vmem %s5, %s306
      %p308 = pneg %p195
      %p309 = pneg %p192
      %s310 = smul.u32 4, %s18
      %p311 = scmp.lt.s32.totalorder %s310, 15
      %s312 = scalar_select %p311, %s310, 15
      %s313 = smul.addr %s312, 8
      %s314 = scalar_lea.vmem %s6, %s313
      %s315 = smul.u32 32, %s18
      %p316 = scmp.lt.s32.totalorder %s315, 127
      %s317 = scalar_select %p316, %s315, 127
      %s318 = smul.addr %s317, 4
      %s319 = scalar_lea.vmem %s0, %s318
      %s320 = smul.u32 32, %s18
      %s321 = smul.u32 32, %s18
      %p322 = scmp.lt.s32.totalorder %s321, 127
      %s323 = scalar_select %p322, %s321, 127
      %s324 = smul.addr %s323, 8
      %s325 = scalar_lea.vmem %s1, %s324
      %s326 = smul.u32 32, %s18
      %s327 = smul.u32 32, %s18
      %p328 = scmp.lt.s32.totalorder %s327, 127
      %s329 = scalar_select %p328, %s327, 127
      %s330 = smul.addr %s329, 8
      %s331 = scalar_lea.vmem %s2, %s330
      %s332 = smul.u32 32, %s18
      %s333 = smul.u32 4, %s18
      %p334 = scmp.lt.s32.totalorder %s333, 15
      %s335 = scalar_select %p334, %s333, 15
      %s336 = smul.addr %s335, 8
      %s337 = scalar_lea.vmem %s3, %s336
      %s338 = smul.u32 4, %s18
      %s339 = smul.u32 4, %s18
      %p340 = scmp.lt.s32.totalorder %s339, 15
      %s341 = scalar_select %p340, %s339, 15
      %s342 = smul.addr %s341, 8
      %s343 = scalar_lea.vmem %s4, %s342
      %s344 = smul.u32 4, %s18
      %s345 = smul.u32 4, %s18
      %p346 = scmp.lt.s32.totalorder %s345, 15
      %s347 = scalar_select %p346, %s345, 15
      %s348 = smul.addr %s347, 8
      %s349 = scalar_lea.vmem %s5, %s348
      %s350 = smul.u32 4, %s18
      %s351 = smul.u32 4, %s18
      %p352 = scmp.lt.s32.totalorder %s351, 15
      %s353 = scalar_select %p352, %s351, 15
      %s354 = smul.addr %s353, 8
      %s355 = scalar_lea.vmem %s6, %s354
      %s356 = smul.u32 4, %s18
      %v358 = vld [vmem:[%s319] sm:$0xf]
      %v359 = vld [vmem:[%s319 + $0x4] sm:$0xf]
      %v360 = vld [vmem:[%s319 + $0x8] sm:$0xf]
      %v361 = vld [vmem:[%s319 + $0xc] sm:$0xf]
      %v362 = vld [vmem:[%s319 + $0x10] sm:$0xf]
      %v363 = vld [vmem:[%s319 + $0x14] sm:$0xf]
      %v364 = vld [vmem:[%s319 + $0x18] sm:$0xf]
      %v365 = vld [vmem:[%s319 + $0x1c] sm:$0xf]
      %v366 = vld [vmem:[%s319 + $0x20] sm:$0xf]
      %v367 = vld [vmem:[%s319 + $0x24] sm:$0xf]
      %v368 = vld [vmem:[%s319 + $0x28] sm:$0xf]
      %v369 = vld [vmem:[%s319 + $0x2c] sm:$0xf]
      %v370 = vld [vmem:[%s319 + $0x30] sm:$0xf]
      %v371 = vld [vmem:[%s319 + $0x34] sm:$0xf]
      %v372 = vld [vmem:[%s319 + $0x38] sm:$0xf]
      %v373 = vld [vmem:[%s319 + $0x3c] sm:$0xf]
      %v374 = vld [vmem:[%s319 + $0x40] sm:$0xf]
      %v375 = vld [vmem:[%s319 + $0x44] sm:$0xf]
      %v376 = vld [vmem:[%s319 + $0x48] sm:$0xf]
      %v377 = vld [vmem:[%s319 + $0x4c] sm:$0xf]
      %v378 = vld [vmem:[%s319 + $0x50] sm:$0xf]
      %v379 = vld [vmem:[%s319 + $0x54] sm:$0xf]
      %v380 = vld [vmem:[%s319 + $0x58] sm:$0xf]
      %v381 = vld [vmem:[%s319 + $0x5c] sm:$0xf]
      %v382 = vld [vmem:[%s319 + $0x60] sm:$0xf]
      %v383 = vld [vmem:[%s319 + $0x64] sm:$0xf]
      %v384 = vld [vmem:[%s319 + $0x68] sm:$0xf]
      %v385 = vld [vmem:[%s319 + $0x6c] sm:$0xf]
      %v386 = vld [vmem:[%s319 + $0x70] sm:$0xf]
      %v387 = vld [vmem:[%s319 + $0x74] sm:$0xf]
      %v388 = vld [vmem:[%s319 + $0x78] sm:$0xf]
      %v389 = vld [vmem:[%s319 + $0x7c] sm:$0xf]
      %v390 = vpack.c.bf16 %v358, %v358
      %v391 = vpack.c.bf16 %v359, %v359
      %v392 = vpack.c.bf16 %v360, %v360
      %v393 = vpack.c.bf16 %v361, %v361
      %v394 = vpack.c.bf16 %v362, %v362
      %v395 = vpack.c.bf16 %v363, %v363
      %v396 = vpack.c.bf16 %v364, %v364
      %v397 = vpack.c.bf16 %v365, %v365
      %v398 = vpack.c.bf16 %v366, %v366
      %v399 = vpack.c.bf16 %v367, %v367
      %v400 = vpack.c.bf16 %v368, %v368
      %v401 = vpack.c.bf16 %v369, %v369
      %v402 = vpack.c.bf16 %v370, %v370
      %v403 = vpack.c.bf16 %v371, %v371
      %v404 = vpack.c.bf16 %v372, %v372
      %v405 = vpack.c.bf16 %v373, %v373
      %v406 = vpack.c.bf16 %v374, %v374
      %v407 = vpack.c.bf16 %v375, %v375
      %v408 = vpack.c.bf16 %v376, %v376
      %v409 = vpack.c.bf16 %v377, %v377
      %v410 = vpack.c.bf16 %v378, %v378
      %v411 = vpack.c.bf16 %v379, %v379
      %v412 = vpack.c.bf16 %v380, %v380
      %v413 = vpack.c.bf16 %v381, %v381
      %v414 = vpack.c.bf16 %v382, %v382
      %v415 = vpack.c.bf16 %v383, %v383
      %v416 = vpack.c.bf16 %v384, %v384
      %v417 = vpack.c.bf16 %v385, %v385
      %v418 = vpack.c.bf16 %v386, %v386
      %v419 = vpack.c.bf16 %v387, %v387
      %v420 = vpack.c.bf16 %v388, %v388
      %v421 = vpack.c.bf16 %v389, %v389
      %v422 = vld [vmem:[%s325] sm:$0xff]
      %v423 = vld [vmem:[%s325 + $0x8] sm:$0xff]
      %v424 = vld [vmem:[%s325 + $0x10] sm:$0xff]
      %v425 = vld [vmem:[%s325 + $0x18] sm:$0xff]
      %v426 = vld [vmem:[%s325 + $0x20] sm:$0xff]
      %v427 = vld [vmem:[%s325 + $0x28] sm:$0xff]
      %v428 = vld [vmem:[%s325 + $0x30] sm:$0xff]
      %v429 = vld [vmem:[%s325 + $0x38] sm:$0xff]
      %v430 = vld [vmem:[%s325 + $0x40] sm:$0xff]
      %v431 = vld [vmem:[%s325 + $0x48] sm:$0xff]
      %v432 = vld [vmem:[%s325 + $0x50] sm:$0xff]
      %v433 = vld [vmem:[%s325 + $0x58] sm:$0xff]
      %v434 = vld [vmem:[%s325 + $0x60] sm:$0xff]
      %v435 = vld [vmem:[%s325 + $0x68] sm:$0xff]
      %v436 = vld [vmem:[%s325 + $0x70] sm:$0xff]
      %v437 = vld [vmem:[%s325 + $0x78] sm:$0xff]
      %v438 = vld [vmem:[%s325 + $0x80] sm:$0xff]
      %v439 = vld [vmem:[%s325 + $0x88] sm:$0xff]
      %v440 = vld [vmem:[%s325 + $0x90] sm:$0xff]
      %v441 = vld [vmem:[%s325 + $0x98] sm:$0xff]
      %v442 = vld [vmem:[%s325 + $0xa0] sm:$0xff]
      %v443 = vld [vmem:[%s325 + $0xa8] sm:$0xff]
      %v444 = vld [vmem:[%s325 + $0xb0] sm:$0xff]
      %v445 = vld [vmem:[%s325 + $0xb8] sm:$0xff]
      %v446 = vld [vmem:[%s325 + $0xc0] sm:$0xff]
      %v447 = vld [vmem:[%s325 + $0xc8] sm:$0xff]
      %v448 = vld [vmem:[%s325 + $0xd0] sm:$0xff]
      %v449 = vld [vmem:[%s325 + $0xd8] sm:$0xff]
      %v450 = vld [vmem:[%s325 + $0xe0] sm:$0xff]
      %v451 = vld [vmem:[%s325 + $0xe8] sm:$0xff]
      %v452 = vld [vmem:[%s325 + $0xf0] sm:$0xff]
      %v453 = vld [vmem:[%s325 + $0xf8] sm:$0xff]
      %v454 = vmul.f32 %v422, %v422
      %v455 = vmul.f32 %v423, %v423
      %v456 = vmul.f32 %v424, %v424
      %v457 = vmul.f32 %v425, %v425
      %v458 = vmul.f32 %v426, %v426
      %v459 = vmul.f32 %v427, %v427
      %v460 = vmul.f32 %v428, %v428
      %v461 = vmul.f32 %v429, %v429
      %v462 = vmul.f32 %v430, %v430
      %v463 = vmul.f32 %v431, %v431
      %v464 = vmul.f32 %v432, %v432
      %v465 = vmul.f32 %v433, %v433
      %v466 = vmul.f32 %v434, %v434
      %v467 = vmul.f32 %v435, %v435
      %v468 = vmul.f32 %v436, %v436
      %v469 = vmul.f32 %v437, %v437
      %v470 = vmul.f32 %v438, %v438
      %v471 = vmul.f32 %v439, %v439
      %v472 = vmul.f32 %v440, %v440
      %v473 = vmul.f32 %v441, %v441
      %v474 = vmul.f32 %v442, %v442
      %v475 = vmul.f32 %v443, %v443
      %v476 = vmul.f32 %v444, %v444
      %v477 = vmul.f32 %v445, %v445
      %v478 = vmul.f32 %v446, %v446
      %v479 = vmul.f32 %v447, %v447
      %v480 = vmul.f32 %v448, %v448
      %v481 = vmul.f32 %v449, %v449
      %v482 = vmul.f32 %v450, %v450
      %v483 = vmul.f32 %v451, %v451
      %v484 = vmul.f32 %v452, %v452
      %v485 = vmul.f32 %v453, %v453
      %vm486 = vcmask 64512
      %v487 = vsel %vm486, %v454, 0.0
      %v488 = vrot.slane %v487, 4
      %v489 = vadd.f32 %v487, %v488
      %v490 = vrot.slane %v489, 2
      %v491 = vadd.f32 %v489, %v490
      %v492 = vrot.slane %v491, 1
      %v493 = vadd.f32 %v491, %v492
      %v494 = vsel %vm486, %v455, 0.0
      %v495 = vrot.slane %v494, 4
      %v496 = vadd.f32 %v494, %v495
      %v497 = vrot.slane %v496, 2
      %v498 = vadd.f32 %v496, %v497
      %v499 = vrot.slane %v498, 1
      %v500 = vadd.f32 %v498, %v499
      %v501 = vsel %vm486, %v456, 0.0
      %v502 = vrot.slane %v501, 4
      %v503 = vadd.f32 %v501, %v502
      %v504 = vrot.slane %v503, 2
      %v505 = vadd.f32 %v503, %v504
      %v506 = vrot.slane %v505, 1
      %v507 = vadd.f32 %v505, %v506
      %v508 = vsel %vm486, %v457, 0.0
      %v509 = vrot.slane %v508, 4
      %v510 = vadd.f32 %v508, %v509
      %v511 = vrot.slane %v510, 2
      %v512 = vadd.f32 %v510, %v511
      %v513 = vrot.slane %v512, 1
      %v514 = vadd.f32 %v512, %v513
      %v515 = vsel %vm486, %v458, 0.0
      %v516 = vrot.slane %v515, 4
      %v517 = vadd.f32 %v515, %v516
      %v518 = vrot.slane %v517, 2
      %v519 = vadd.f32 %v517, %v518
      %v520 = vrot.slane %v519, 1
      %v521 = vadd.f32 %v519, %v520
      %v522 = vsel %vm486, %v459, 0.0
      %v523 = vrot.slane %v522, 4
      %v524 = vadd.f32 %v522, %v523
      %v525 = vrot.slane %v524, 2
      %v526 = vadd.f32 %v524, %v525
      %v527 = vrot.slane %v526, 1
      %v528 = vadd.f32 %v526, %v527
      %v529 = vsel %vm486, %v460, 0.0
      %v530 = vrot.slane %v529, 4
      %v531 = vadd.f32 %v529, %v530
      %v532 = vrot.slane %v531, 2
      %v533 = vadd.f32 %v531, %v532
      %v534 = vrot.slane %v533, 1
      %v535 = vadd.f32 %v533, %v534
      %v536 = vsel %vm486, %v461, 0.0
      %v537 = vrot.slane %v536, 4
      %v538 = vadd.f32 %v536, %v537
      %v539 = vrot.slane %v538, 2
      %v540 = vadd.f32 %v538, %v539
      %v541 = vrot.slane %v540, 1
      %v542 = vadd.f32 %v540, %v541
      %v543 = vsel %vm486, %v462, 0.0
      %v544 = vrot.slane %v543, 4
      %v545 = vadd.f32 %v543, %v544
      %v546 = vrot.slane %v545, 2
      %v547 = vadd.f32 %v545, %v546
      %v548 = vrot.slane %v547, 1
      %v549 = vadd.f32 %v547, %v548
      %v550 = vsel %vm486, %v463, 0.0
      %v551 = vrot.slane %v550, 4
      %v552 = vadd.f32 %v550, %v551
      %v553 = vrot.slane %v552, 2
      %v554 = vadd.f32 %v552, %v553
      %v555 = vrot.slane %v554, 1
      %v556 = vadd.f32 %v554, %v555
      %v557 = vsel %vm486, %v464, 0.0
      %v558 = vrot.slane %v557, 4
      %v559 = vadd.f32 %v557, %v558
      %v560 = vrot.slane %v559, 2
      %v561 = vadd.f32 %v559, %v560
      %v562 = vrot.slane %v561, 1
      %v563 = vadd.f32 %v561, %v562
      %v564 = vsel %vm486, %v465, 0.0
      %v565 = vrot.slane %v564, 4
      %v566 = vadd.f32 %v564, %v565
      %v567 = vrot.slane %v566, 2
      %v568 = vadd.f32 %v566, %v567
      %v569 = vrot.slane %v568, 1
      %v570 = vadd.f32 %v568, %v569
      %v571 = vsel %vm486, %v466, 0.0
      %v572 = vrot.slane %v571, 4
      %v573 = vadd.f32 %v571, %v572
      %v574 = vrot.slane %v573, 2
      %v575 = vadd.f32 %v573, %v574
      %v576 = vrot.slane %v575, 1
      %v577 = vadd.f32 %v575, %v576
      %v578 = vsel %vm486, %v467, 0.0
      %v579 = vrot.slane %v578, 4
      %v580 = vadd.f32 %v578, %v579
      %v581 = vrot.slane %v580, 2
      %v582 = vadd.f32 %v580, %v581
      %v583 = vrot.slane %v582, 1
      %v584 = vadd.f32 %v582, %v583
      %v585 = vsel %vm486, %v468, 0.0
      %v586 = vrot.slane %v585, 4
      %v587 = vadd.f32 %v585, %v586
      %v588 = vrot.slane %v587, 2
      %v589 = vadd.f32 %v587, %v588
      %v590 = vrot.slane %v589, 1
      %v591 = vadd.f32 %v589, %v590
      %v592 = vsel %vm486, %v469, 0.0
      %v593 = vrot.slane %v592, 4
      %v594 = vadd.f32 %v592, %v593
      %v595 = vrot.slane %v594, 2
      %v596 = vadd.f32 %v594, %v595
      %v597 = vrot.slane %v596, 1
      %v598 = vadd.f32 %v596, %v597
      %v599 = vsel %vm486, %v470, 0.0
      %v600 = vrot.slane %v599, 4
      %v601 = vadd.f32 %v599, %v600
      %v602 = vrot.slane %v601, 2
      %v603 = vadd.f32 %v601, %v602
      %v604 = vrot.slane %v603, 1
      %v605 = vadd.f32 %v603, %v604
      %v606 = vsel %vm486, %v471, 0.0
      %v607 = vrot.slane %v606, 4
      %v608 = vadd.f32 %v606, %v607
      %v609 = vrot.slane %v608, 2
      %v610 = vadd.f32 %v608, %v609
      %v611 = vrot.slane %v610, 1
      %v612 = vadd.f32 %v610, %v611
      %v613 = vsel %vm486, %v472, 0.0
      %v614 = vrot.slane %v613, 4
      %v615 = vadd.f32 %v613, %v614
      %v616 = vrot.slane %v615, 2
      %v617 = vadd.f32 %v615, %v616
      %v618 = vrot.slane %v617, 1
      %v619 = vadd.f32 %v617, %v618
      %v620 = vsel %vm486, %v473, 0.0
      %v621 = vrot.slane %v620, 4
      %v622 = vadd.f32 %v620, %v621
      %v623 = vrot.slane %v622, 2
      %v624 = vadd.f32 %v622, %v623
      %v625 = vrot.slane %v624, 1
      %v626 = vadd.f32 %v624, %v625
      %v627 = vsel %vm486, %v474, 0.0
      %v628 = vrot.slane %v627, 4
      %v629 = vadd.f32 %v627, %v628
      %v630 = vrot.slane %v629, 2
      %v631 = vadd.f32 %v629, %v630
      %v632 = vrot.slane %v631, 1
      %v633 = vadd.f32 %v631, %v632
      %v634 = vsel %vm486, %v475, 0.0
      %v635 = vrot.slane %v634, 4
      %v636 = vadd.f32 %v634, %v635
      %v637 = vrot.slane %v636, 2
      %v638 = vadd.f32 %v636, %v637
      %v639 = vrot.slane %v638, 1
      %v640 = vadd.f32 %v638, %v639
      %v641 = vsel %vm486, %v476, 0.0
      %v642 = vrot.slane %v641, 4
      %v643 = vadd.f32 %v641, %v642
      %v644 = vrot.slane %v643, 2
      %v645 = vadd.f32 %v643, %v644
      %v646 = vrot.slane %v645, 1
      %v647 = vadd.f32 %v645, %v646
      %v648 = vsel %vm486, %v477, 0.0
      %v649 = vrot.slane %v648, 4
      %v650 = vadd.f32 %v648, %v649
      %v651 = vrot.slane %v650, 2
      %v652 = vadd.f32 %v650, %v651
      %v653 = vrot.slane %v652, 1
      %v654 = vadd.f32 %v652, %v653
      %v655 = vsel %vm486, %v478, 0.0
      %v656 = vrot.slane %v655, 4
      %v657 = vadd.f32 %v655, %v656
      %v658 = vrot.slane %v657, 2
      %v659 = vadd.f32 %v657, %v658
      %v660 = vrot.slane %v659, 1
      %v661 = vadd.f32 %v659, %v660
      %v662 = vsel %vm486, %v479, 0.0
      %v663 = vrot.slane %v662, 4
      %v664 = vadd.f32 %v662, %v663
      %v665 = vrot.slane %v664, 2
      %v666 = vadd.f32 %v664, %v665
      %v667 = vrot.slane %v666, 1
      %v668 = vadd.f32 %v666, %v667
      %v669 = vsel %vm486, %v480, 0.0
      %v670 = vrot.slane %v669, 4
      %v671 = vadd.f32 %v669, %v670
      %v672 = vrot.slane %v671, 2
      %v673 = vadd.f32 %v671, %v672
      %v674 = vrot.slane %v673, 1
      %v675 = vadd.f32 %v673, %v674
      %v676 = vsel %vm486, %v481, 0.0
      %v677 = vrot.slane %v676, 4
      %v678 = vadd.f32 %v676, %v677
      %v679 = vrot.slane %v678, 2
      %v680 = vadd.f32 %v678, %v679
      %v681 = vrot.slane %v680, 1
      %v682 = vadd.f32 %v680, %v681
      %v683 = vsel %vm486, %v482, 0.0
      %v684 = vrot.slane %v683, 4
      %v685 = vadd.f32 %v683, %v684
      %v686 = vrot.slane %v685, 2
      %v687 = vadd.f32 %v685, %v686
      %v688 = vrot.slane %v687, 1
      %v689 = vadd.f32 %v687, %v688
      %v690 = vsel %vm486, %v483, 0.0
      %v691 = vrot.slane %v690, 4
      %v692 = vadd.f32 %v690, %v691
      %v693 = vrot.slane %v692, 2
      %v694 = vadd.f32 %v692, %v693
      %v695 = vrot.slane %v694, 1
      %v696 = vadd.f32 %v694, %v695
      %v697 = vsel %vm486, %v484, 0.0
      %v698 = vrot.slane %v697, 4
      %v699 = vadd.f32 %v697, %v698
      %v700 = vrot.slane %v699, 2
      %v701 = vadd.f32 %v699, %v700
      %v702 = vrot.slane %v701, 1
      %v703 = vadd.f32 %v701, %v702
      %v704 = vsel %vm486, %v485, 0.0
      %v705 = vrot.slane %v704, 4
      %v706 = vadd.f32 %v704, %v705
      %v707 = vrot.slane %v706, 2
      %v708 = vadd.f32 %v706, %v707
      %v709 = vrot.slane %v708, 1
      %v710 = vadd.f32 %v708, %v709
      %v711 = vmax.f32 %v493, 1e-24
      %v712 = vmax.f32 %v500, 1e-24
      %v713 = vmax.f32 %v507, 1e-24
      %v714 = vmax.f32 %v514, 1e-24
      %v715 = vmax.f32 %v521, 1e-24
      %v716 = vmax.f32 %v528, 1e-24
      %v717 = vmax.f32 %v535, 1e-24
      %v718 = vmax.f32 %v542, 1e-24
      %v719 = vmax.f32 %v549, 1e-24
      %v720 = vmax.f32 %v556, 1e-24
      %v721 = vmax.f32 %v563, 1e-24
      %v722 = vmax.f32 %v570, 1e-24
      %v723 = vmax.f32 %v577, 1e-24
      %v724 = vmax.f32 %v584, 1e-24
      %v725 = vmax.f32 %v591, 1e-24
      %v726 = vmax.f32 %v598, 1e-24
      %v727 = vmax.f32 %v605, 1e-24
      %v728 = vmax.f32 %v612, 1e-24
      %v729 = vmax.f32 %v619, 1e-24
      %v730 = vmax.f32 %v626, 1e-24
      %v731 = vmax.f32 %v633, 1e-24
      %v732 = vmax.f32 %v640, 1e-24
      %v733 = vmax.f32 %v647, 1e-24
      %v734 = vmax.f32 %v654, 1e-24
      %v735 = vmax.f32 %v661, 1e-24
      %v736 = vmax.f32 %v668, 1e-24
      %v737 = vmax.f32 %v675, 1e-24
      %v738 = vmax.f32 %v682, 1e-24
      %v739 = vmax.f32 %v689, 1e-24
      %v740 = vmax.f32 %v696, 1e-24
      %v741 = vmax.f32 %v703, 1e-24
      %v742 = vmax.f32 %v710, 1e-24
      %v743 = vrsqrt.pop %v711
      %v744 = vmul.f32 %v743, %v711
      %v745 = vmul.f32 %v744, %v743
      %v746 = vmul.f32 0.5, %v745
      %v747 = vsub.f32 1.5, %v746
      %v748 = vmul.f32 %v743, %v747
      %vm749 = vweird.f32 %v711
      %vm750 = vweird.f32 %v743
      %vm751 = vmor %vm749, %vm750
      %v752 = vsel %vm751, %v743, %v748
      %v753 = vrsqrt.pop %v712
      %v754 = vmul.f32 %v753, %v712
      %v755 = vmul.f32 %v754, %v753
      %v756 = vmul.f32 0.5, %v755
      %v757 = vsub.f32 1.5, %v756
      %v758 = vmul.f32 %v753, %v757
      %vm759 = vweird.f32 %v712
      %vm760 = vweird.f32 %v753
      %vm761 = vmor %vm759, %vm760
      %v762 = vsel %vm761, %v753, %v758
      %v763 = vrsqrt.pop %v713
      %v764 = vmul.f32 %v763, %v713
      %v765 = vmul.f32 %v764, %v763
      %v766 = vmul.f32 0.5, %v765
      %v767 = vsub.f32 1.5, %v766
      %v768 = vmul.f32 %v763, %v767
      %vm769 = vweird.f32 %v713
      %vm770 = vweird.f32 %v763
      %vm771 = vmor %vm769, %vm770
      %v772 = vsel %vm771, %v763, %v768
      %v773 = vrsqrt.pop %v714
      %v774 = vmul.f32 %v773, %v714
      %v775 = vmul.f32 %v774, %v773
      %v776 = vmul.f32 0.5, %v775
      %v777 = vsub.f32 1.5, %v776
      %v778 = vmul.f32 %v773, %v777
      %vm779 = vweird.f32 %v714
      %vm780 = vweird.f32 %v773
      %vm781 = vmor %vm779, %vm780
      %v782 = vsel %vm781, %v773, %v778
      %v783 = vrsqrt.pop %v715
      %v784 = vmul.f32 %v783, %v715
      %v785 = vmul.f32 %v784, %v783
      %v786 = vmul.f32 0.5, %v785
      %v787 = vsub.f32 1.5, %v786
      %v788 = vmul.f32 %v783, %v787
      %vm789 = vweird.f32 %v715
      %vm790 = vweird.f32 %v783
      %vm791 = vmor %vm789, %vm790
      %v792 = vsel %vm791, %v783, %v788
      %v793 = vrsqrt.pop %v716
      %v794 = vmul.f32 %v793, %v716
      %v795 = vmul.f32 %v794, %v793
      %v796 = vmul.f32 0.5, %v795
      %v797 = vsub.f32 1.5, %v796
      %v798 = vmul.f32 %v793, %v797
      %vm799 = vweird.f32 %v716
      %vm800 = vweird.f32 %v793
      %vm801 = vmor %vm799, %vm800
      %v802 = vsel %vm801, %v793, %v798
      %v803 = vrsqrt.pop %v717
      %v804 = vmul.f32 %v803, %v717
      %v805 = vmul.f32 %v804, %v803
      %v806 = vmul.f32 0.5, %v805
      %v807 = vsub.f32 1.5, %v806
      %v808 = vmul.f32 %v803, %v807
      %vm809 = vweird.f32 %v717
      %vm810 = vweird.f32 %v803
      %vm811 = vmor %vm809, %vm810
      %v812 = vsel %vm811, %v803, %v808
      %v813 = vrsqrt.pop %v718
      %v814 = vmul.f32 %v813, %v718
      %v815 = vmul.f32 %v814, %v813
      %v816 = vmul.f32 0.5, %v815
      %v817 = vsub.f32 1.5, %v816
      %v818 = vmul.f32 %v813, %v817
      %vm819 = vweird.f32 %v718
      %vm820 = vweird.f32 %v813
      %vm821 = vmor %vm819, %vm820
      %v822 = vsel %vm821, %v813, %v818
      %v823 = vrsqrt.pop %v719
      %v824 = vmul.f32 %v823, %v719
      %v825 = vmul.f32 %v824, %v823
      %v826 = vmul.f32 0.5, %v825
      %v827 = vsub.f32 1.5, %v826
      %v828 = vmul.f32 %v823, %v827
      %vm829 = vweird.f32 %v719
      %vm830 = vweird.f32 %v823
      %vm831 = vmor %vm829, %vm830
      %v832 = vsel %vm831, %v823, %v828
      %v833 = vrsqrt.pop %v720
      %v834 = vmul.f32 %v833, %v720
      %v835 = vmul.f32 %v834, %v833
      %v836 = vmul.f32 0.5, %v835
      %v837 = vsub.f32 1.5, %v836
      %v838 = vmul.f32 %v833, %v837
      %vm839 = vweird.f32 %v720
      %vm840 = vweird.f32 %v833
      %vm841 = vmor %vm839, %vm840
      %v842 = vsel %vm841, %v833, %v838
      %v843 = vrsqrt.pop %v721
      %v844 = vmul.f32 %v843, %v721
      %v845 = vmul.f32 %v844, %v843
      %v846 = vmul.f32 0.5, %v845
      %v847 = vsub.f32 1.5, %v846
      %v848 = vmul.f32 %v843, %v847
      %vm849 = vweird.f32 %v721
      %vm850 = vweird.f32 %v843
      %vm851 = vmor %vm849, %vm850
      %v852 = vsel %vm851, %v843, %v848
      %v853 = vrsqrt.pop %v722
      %v854 = vmul.f32 %v853, %v722
      %v855 = vmul.f32 %v854, %v853
      %v856 = vmul.f32 0.5, %v855
      %v857 = vsub.f32 1.5, %v856
      %v858 = vmul.f32 %v853, %v857
      %vm859 = vweird.f32 %v722
      %vm860 = vweird.f32 %v853
      %vm861 = vmor %vm859, %vm860
      %v862 = vsel %vm861, %v853, %v858
      %v863 = vrsqrt.pop %v723
      %v864 = vmul.f32 %v863, %v723
      %v865 = vmul.f32 %v864, %v863
      %v866 = vmul.f32 0.5, %v865
      %v867 = vsub.f32 1.5, %v866
      %v868 = vmul.f32 %v863, %v867
      %vm869 = vweird.f32 %v723
      %vm870 = vweird.f32 %v863
      %vm871 = vmor %vm869, %vm870
      %v872 = vsel %vm871, %v863, %v868
      %v873 = vrsqrt.pop %v724
      %v874 = vmul.f32 %v873, %v724
      %v875 = vmul.f32 %v874, %v873
      %v876 = vmul.f32 0.5, %v875
      %v877 = vsub.f32 1.5, %v876
      %v878 = vmul.f32 %v873, %v877
      %vm879 = vweird.f32 %v724
      %vm880 = vweird.f32 %v873
      %vm881 = vmor %vm879, %vm880
      %v882 = vsel %vm881, %v873, %v878
      %v883 = vrsqrt.pop %v725
      %v884 = vmul.f32 %v883, %v725
      %v885 = vmul.f32 %v884, %v883
      %v886 = vmul.f32 0.5, %v885
      %v887 = vsub.f32 1.5, %v886
      %v888 = vmul.f32 %v883, %v887
      %vm889 = vweird.f32 %v725
      %vm890 = vweird.f32 %v883
      %vm891 = vmor %vm889, %vm890
      %v892 = vsel %vm891, %v883, %v888
      %v893 = vrsqrt.pop %v726
      %v894 = vmul.f32 %v893, %v726
      %v895 = vmul.f32 %v894, %v893
      %v896 = vmul.f32 0.5, %v895
      %v897 = vsub.f32 1.5, %v896
      %v898 = vmul.f32 %v893, %v897
      %vm899 = vweird.f32 %v726
      %vm900 = vweird.f32 %v893
      %vm901 = vmor %vm899, %vm900
      %v902 = vsel %vm901, %v893, %v898
      %v903 = vrsqrt.pop %v727
      %v904 = vmul.f32 %v903, %v727
      %v905 = vmul.f32 %v904, %v903
      %v906 = vmul.f32 0.5, %v905
      %v907 = vsub.f32 1.5, %v906
      %v908 = vmul.f32 %v903, %v907
      %vm909 = vweird.f32 %v727
      %vm910 = vweird.f32 %v903
      %vm911 = vmor %vm909, %vm910
      %v912 = vsel %vm911, %v903, %v908
      %v913 = vrsqrt.pop %v728
      %v914 = vmul.f32 %v913, %v728
      %v915 = vmul.f32 %v914, %v913
      %v916 = vmul.f32 0.5, %v915
      %v917 = vsub.f32 1.5, %v916
      %v918 = vmul.f32 %v913, %v917
      %vm919 = vweird.f32 %v728
      %vm920 = vweird.f32 %v913
      %vm921 = vmor %vm919, %vm920
      %v922 = vsel %vm921, %v913, %v918
      %v923 = vrsqrt.pop %v729
      %v924 = vmul.f32 %v923, %v729
      %v925 = vmul.f32 %v924, %v923
      %v926 = vmul.f32 0.5, %v925
      %v927 = vsub.f32 1.5, %v926
      %v928 = vmul.f32 %v923, %v927
      %vm929 = vweird.f32 %v729
      %vm930 = vweird.f32 %v923
      %vm931 = vmor %vm929, %vm930
      %v932 = vsel %vm931, %v923, %v928
      %v933 = vrsqrt.pop %v730
      %v934 = vmul.f32 %v933, %v730
      %v935 = vmul.f32 %v934, %v933
      %v936 = vmul.f32 0.5, %v935
      %v937 = vsub.f32 1.5, %v936
      %v938 = vmul.f32 %v933, %v937
      %vm939 = vweird.f32 %v730
      %vm940 = vweird.f32 %v933
      %vm941 = vmor %vm939, %vm940
      %v942 = vsel %vm941, %v933, %v938
      %v943 = vrsqrt.pop %v731
      %v944 = vmul.f32 %v943, %v731
      %v945 = vmul.f32 %v944, %v943
      %v946 = vmul.f32 0.5, %v945
      %v947 = vsub.f32 1.5, %v946
      %v948 = vmul.f32 %v943, %v947
      %vm949 = vweird.f32 %v731
      %vm950 = vweird.f32 %v943
      %vm951 = vmor %vm949, %vm950
      %v952 = vsel %vm951, %v943, %v948
      %v953 = vrsqrt.pop %v732
      %v954 = vmul.f32 %v953, %v732
      %v955 = vmul.f32 %v954, %v953
      %v956 = vmul.f32 0.5, %v955
      %v957 = vsub.f32 1.5, %v956
      %v958 = vmul.f32 %v953, %v957
      %vm959 = vweird.f32 %v732
      %vm960 = vweird.f32 %v953
      %vm961 = vmor %vm959, %vm960
      %v962 = vsel %vm961, %v953, %v958
      %v963 = vrsqrt.pop %v733
      %v964 = vmul.f32 %v963, %v733
      %v965 = vmul.f32 %v964, %v963
      %v966 = vmul.f32 0.5, %v965
      %v967 = vsub.f32 1.5, %v966
      %v968 = vmul.f32 %v963, %v967
      %vm969 = vweird.f32 %v733
      %vm970 = vweird.f32 %v963
      %vm971 = vmor %vm969, %vm970
      %v972 = vsel %vm971, %v963, %v968
      %v973 = vrsqrt.pop %v734
      %v974 = vmul.f32 %v973, %v734
      %v975 = vmul.f32 %v974, %v973
      %v976 = vmul.f32 0.5, %v975
      %v977 = vsub.f32 1.5, %v976
      %v978 = vmul.f32 %v973, %v977
      %vm979 = vweird.f32 %v734
      %vm980 = vweird.f32 %v973
      %vm981 = vmor %vm979, %vm980
      %v982 = vsel %vm981, %v973, %v978
      %v983 = vrsqrt.pop %v735
      %v984 = vmul.f32 %v983, %v735
      %v985 = vmul.f32 %v984, %v983
      %v986 = vmul.f32 0.5, %v985
      %v987 = vsub.f32 1.5, %v986
      %v988 = vmul.f32 %v983, %v987
      %vm989 = vweird.f32 %v735
      %vm990 = vweird.f32 %v983
      %vm991 = vmor %vm989, %vm990
      %v992 = vsel %vm991, %v983, %v988
      %v993 = vrsqrt.pop %v736
      %v994 = vmul.f32 %v993, %v736
      %v995 = vmul.f32 %v994, %v993
      %v996 = vmul.f32 0.5, %v995
      %v997 = vsub.f32 1.5, %v996
      %v998 = vmul.f32 %v993, %v997
      %vm999 = vweird.f32 %v736
      %vm1000 = vweird.f32 %v993
      %vm1001 = vmor %vm999, %vm1000
      %v1002 = vsel %vm1001, %v993, %v998
      %v1003 = vrsqrt.pop %v737
      %v1004 = vmul.f32 %v1003, %v737
      %v1005 = vmul.f32 %v1004, %v1003
      %v1006 = vmul.f32 0.5, %v1005
      %v1007 = vsub.f32 1.5, %v1006
      %v1008 = vmul.f32 %v1003, %v1007
      %vm1009 = vweird.f32 %v737
      %vm1010 = vweird.f32 %v1003
      %vm1011 = vmor %vm1009, %vm1010
      %v1012 = vsel %vm1011, %v1003, %v1008
      %v1013 = vrsqrt.pop %v738
      %v1014 = vmul.f32 %v1013, %v738
      %v1015 = vmul.f32 %v1014, %v1013
      %v1016 = vmul.f32 0.5, %v1015
      %v1017 = vsub.f32 1.5, %v1016
      %v1018 = vmul.f32 %v1013, %v1017
      %vm1019 = vweird.f32 %v738
      %vm1020 = vweird.f32 %v1013
      %vm1021 = vmor %vm1019, %vm1020
      %v1022 = vsel %vm1021, %v1013, %v1018
      %v1023 = vrsqrt.pop %v739
      %v1024 = vmul.f32 %v1023, %v739
      %v1025 = vmul.f32 %v1024, %v1023
      %v1026 = vmul.f32 0.5, %v1025
      %v1027 = vsub.f32 1.5, %v1026
      %v1028 = vmul.f32 %v1023, %v1027
      %vm1029 = vweird.f32 %v739
      %vm1030 = vweird.f32 %v1023
      %vm1031 = vmor %vm1029, %vm1030
      %v1032 = vsel %vm1031, %v1023, %v1028
      %v1033 = vrsqrt.pop %v740
      %v1034 = vmul.f32 %v1033, %v740
      %v1035 = vmul.f32 %v1034, %v1033
      %v1036 = vmul.f32 0.5, %v1035
      %v1037 = vsub.f32 1.5, %v1036
      %v1038 = vmul.f32 %v1033, %v1037
      %vm1039 = vweird.f32 %v740
      %vm1040 = vweird.f32 %v1033
      %vm1041 = vmor %vm1039, %vm1040
      %v1042 = vsel %vm1041, %v1033, %v1038
      %v1043 = vrsqrt.pop %v741
      %v1044 = vmul.f32 %v1043, %v741
      %v1045 = vmul.f32 %v1044, %v1043
      %v1046 = vmul.f32 0.5, %v1045
      %v1047 = vsub.f32 1.5, %v1046
      %v1048 = vmul.f32 %v1043, %v1047
      %vm1049 = vweird.f32 %v741
      %vm1050 = vweird.f32 %v1043
      %vm1051 = vmor %vm1049, %vm1050
      %v1052 = vsel %vm1051, %v1043, %v1048
      %v1053 = vrsqrt.pop %v742
      %v1054 = vmul.f32 %v1053, %v742
      %v1055 = vmul.f32 %v1054, %v1053
      %v1056 = vmul.f32 0.5, %v1055
      %v1057 = vsub.f32 1.5, %v1056
      %v1058 = vmul.f32 %v1053, %v1057
      %vm1059 = vweird.f32 %v742
      %vm1060 = vweird.f32 %v1053
      %vm1061 = vmor %vm1059, %vm1060
      %v1062 = vsel %vm1061, %v1053, %v1058
      %v1063 = vmul.f32 %v422, %v752
      %v1064 = vmul.f32 %v423, %v762
      %v1065 = vmul.f32 %v424, %v772
      %v1066 = vmul.f32 %v425, %v782
      %v1067 = vmul.f32 %v426, %v792
      %v1068 = vmul.f32 %v427, %v802
      %v1069 = vmul.f32 %v428, %v812
      %v1070 = vmul.f32 %v429, %v822
      %v1071 = vmul.f32 %v430, %v832
      %v1072 = vmul.f32 %v431, %v842
      %v1073 = vmul.f32 %v432, %v852
      %v1074 = vmul.f32 %v433, %v862
      %v1075 = vmul.f32 %v434, %v872
      %v1076 = vmul.f32 %v435, %v882
      %v1077 = vmul.f32 %v436, %v892
      %v1078 = vmul.f32 %v437, %v902
      %v1079 = vmul.f32 %v438, %v912
      %v1080 = vmul.f32 %v439, %v922
      %v1081 = vmul.f32 %v440, %v932
      %v1082 = vmul.f32 %v441, %v942
      %v1083 = vmul.f32 %v442, %v952
      %v1084 = vmul.f32 %v443, %v962
      %v1085 = vmul.f32 %v444, %v972
      %v1086 = vmul.f32 %v445, %v982
      %v1087 = vmul.f32 %v446, %v992
      %v1088 = vmul.f32 %v447, %v1002
      %v1089 = vmul.f32 %v448, %v1012
      %v1090 = vmul.f32 %v449, %v1022
      %v1091 = vmul.f32 %v450, %v1032
      %v1092 = vmul.f32 %v451, %v1042
      %v1093 = vmul.f32 %v452, %v1052
      %v1094 = vmul.f32 %v453, %v1062
      %v1095 = vpack.c.bf16 %v1063, %v1063
      %v1096 = vpack.c.bf16 %v1064, %v1064
      %v1097 = vpack.c.bf16 %v1065, %v1065
      %v1098 = vpack.c.bf16 %v1066, %v1066
      %v1099 = vpack.c.bf16 %v1067, %v1067
      %v1100 = vpack.c.bf16 %v1068, %v1068
      %v1101 = vpack.c.bf16 %v1069, %v1069
      %v1102 = vpack.c.bf16 %v1070, %v1070
      %v1103 = vpack.c.bf16 %v1071, %v1071
      %v1104 = vpack.c.bf16 %v1072, %v1072
      %v1105 = vpack.c.bf16 %v1073, %v1073
      %v1106 = vpack.c.bf16 %v1074, %v1074
      %v1107 = vpack.c.bf16 %v1075, %v1075
      %v1108 = vpack.c.bf16 %v1076, %v1076
      %v1109 = vpack.c.bf16 %v1077, %v1077
      %v1110 = vpack.c.bf16 %v1078, %v1078
      %v1111 = vpack.c.bf16 %v1079, %v1079
      %v1112 = vpack.c.bf16 %v1080, %v1080
      %v1113 = vpack.c.bf16 %v1081, %v1081
      %v1114 = vpack.c.bf16 %v1082, %v1082
      %v1115 = vpack.c.bf16 %v1083, %v1083
      %v1116 = vpack.c.bf16 %v1084, %v1084
      %v1117 = vpack.c.bf16 %v1085, %v1085
      %v1118 = vpack.c.bf16 %v1086, %v1086
      %v1119 = vpack.c.bf16 %v1087, %v1087
      %v1120 = vpack.c.bf16 %v1088, %v1088
      %v1121 = vpack.c.bf16 %v1089, %v1089
      %v1122 = vpack.c.bf16 %v1090, %v1090
      %v1123 = vpack.c.bf16 %v1091, %v1091
      %v1124 = vpack.c.bf16 %v1092, %v1092
      %v1125 = vpack.c.bf16 %v1093, %v1093
      %v1126 = vpack.c.bf16 %v1094, %v1094
      %v1128 = vsel %vm486, %v390, 0
      %vm1130 = vcmask 1043456
      %v1132 = vsel %vm1130, %v1095, 0
      %1134 = vmatpush.bf16.msra.mxu0 0
      %1135 = vmatpush.bf16.msra.mxu0 0
      %1136 = vmatpush.bf16.msra.mxu0 0
      %1137 = vmatpush.bf16.msra.mxu0 0
      %1138 = vmatpush.bf16.msra.mxu0 0
      %1139 = vmatpush.bf16.msra.mxu0 0
      %1140 = vmatpush.bf16.msra.mxu0 0
      %1141 = vmatpush.bf16.msra.mxu0 %v1132
      %1142 = vmatmul.bf16.gmra.mxu0 %v1128
      %v1143 = vpop.f32.mrf.mxu0
      %v1144 = vadd.f32 0.0, %v1143
      %v1145 = vpop.f32.mrf.mxu0
      %1146 = vdwg.mxu0
      %v1148 = vsel %vm486, %v391, 0
      %v1151 = vsel %vm1130, %v1096, 0
      %1153 = vmatpush.bf16.msra.mxu0 0
      %1154 = vmatpush.bf16.msra.mxu0 0
      %1155 = vmatpush.bf16.msra.mxu0 0
      %1156 = vmatpush.bf16.msra.mxu0 0
      %1157 = vmatpush.bf16.msra.mxu0 0
      %1158 = vmatpush.bf16.msra.mxu0 0
      %1159 = vmatpush.bf16.msra.mxu0 0
      %1160 = vmatpush.bf16.msra.mxu0 %v1151
      %1161 = vmatmul.bf16.gmra.mxu0 %v1148
      %v1162 = vpop.f32.mrf.mxu0
      %v1163 = vadd.f32 0.0, %v1162
      %v1164 = vpop.f32.mrf.mxu0
      %1165 = vdwg.mxu0
      %v1167 = vsel %vm486, %v392, 0
      %v1170 = vsel %vm1130, %v1097, 0
      %1172 = vmatpush.bf16.msra.mxu0 0
      %1173 = vmatpush.bf16.msra.mxu0 0
      %1174 = vmatpush.bf16.msra.mxu0 0
      %1175 = vmatpush.bf16.msra.mxu0 0
      %1176 = vmatpush.bf16.msra.mxu0 0
      %1177 = vmatpush.bf16.msra.mxu0 0
      %1178 = vmatpush.bf16.msra.mxu0 0
      %1179 = vmatpush.bf16.msra.mxu0 %v1170
      %1180 = vmatmul.bf16.gmra.mxu0 %v1167
      %v1181 = vpop.f32.mrf.mxu0
      %v1182 = vadd.f32 0.0, %v1181
      %v1183 = vpop.f32.mrf.mxu0
      %1184 = vdwg.mxu0
      %v1186 = vsel %vm486, %v393, 0
      %v1189 = vsel %vm1130, %v1098, 0
      %1191 = vmatpush.bf16.msra.mxu0 0
      %1192 = vmatpush.bf16.msra.mxu0 0
      %1193 = vmatpush.bf16.msra.mxu0 0
      %1194 = vmatpush.bf16.msra.mxu0 0
      %1195 = vmatpush.bf16.msra.mxu0 0
      %1196 = vmatpush.bf16.msra.mxu0 0
      %1197 = vmatpush.bf16.msra.mxu0 0
      %1198 = vmatpush.bf16.msra.mxu0 %v1189
      %1199 = vmatmul.bf16.gmra.mxu0 %v1186
      %v1200 = vpop.f32.mrf.mxu0
      %v1201 = vadd.f32 0.0, %v1200
      %v1202 = vpop.f32.mrf.mxu0
      %1203 = vdwg.mxu0
      %v1205 = vsel %vm486, %v394, 0
      %v1208 = vsel %vm1130, %v1099, 0
      %1210 = vmatpush.bf16.msra.mxu0 0
      %1211 = vmatpush.bf16.msra.mxu0 0
      %1212 = vmatpush.bf16.msra.mxu0 0
      %1213 = vmatpush.bf16.msra.mxu0 0
      %1214 = vmatpush.bf16.msra.mxu0 0
      %1215 = vmatpush.bf16.msra.mxu0 0
      %1216 = vmatpush.bf16.msra.mxu0 0
      %1217 = vmatpush.bf16.msra.mxu0 %v1208
      %1218 = vmatmul.bf16.gmra.mxu0 %v1205
      %v1219 = vpop.f32.mrf.mxu0
      %v1220 = vadd.f32 0.0, %v1219
      %v1221 = vpop.f32.mrf.mxu0
      %1222 = vdwg.mxu0
      %v1224 = vsel %vm486, %v395, 0
      %v1227 = vsel %vm1130, %v1100, 0
      %1229 = vmatpush.bf16.msra.mxu0 0
      %1230 = vmatpush.bf16.msra.mxu0 0
      %1231 = vmatpush.bf16.msra.mxu0 0
      %1232 = vmatpush.bf16.msra.mxu0 0
      %1233 = vmatpush.bf16.msra.mxu0 0
      %1234 = vmatpush.bf16.msra.mxu0 0
      %1235 = vmatpush.bf16.msra.mxu0 0
      %1236 = vmatpush.bf16.msra.mxu0 %v1227
      %1237 = vmatmul.bf16.gmra.mxu0 %v1224
      %v1238 = vpop.f32.mrf.mxu0
      %v1239 = vadd.f32 0.0, %v1238
      %v1240 = vpop.f32.mrf.mxu0
      %1241 = vdwg.mxu0
      %v1243 = vsel %vm486, %v396, 0
      %v1246 = vsel %vm1130, %v1101, 0
      %1248 = vmatpush.bf16.msra.mxu0 0
      %1249 = vmatpush.bf16.msra.mxu0 0
      %1250 = vmatpush.bf16.msra.mxu0 0
      %1251 = vmatpush.bf16.msra.mxu0 0
      %1252 = vmatpush.bf16.msra.mxu0 0
      %1253 = vmatpush.bf16.msra.mxu0 0
      %1254 = vmatpush.bf16.msra.mxu0 0
      %1255 = vmatpush.bf16.msra.mxu0 %v1246
      %1256 = vmatmul.bf16.gmra.mxu0 %v1243
      %v1257 = vpop.f32.mrf.mxu0
      %v1258 = vadd.f32 0.0, %v1257
      %v1259 = vpop.f32.mrf.mxu0
      %1260 = vdwg.mxu0
      %v1262 = vsel %vm486, %v397, 0
      %v1265 = vsel %vm1130, %v1102, 0
      %1267 = vmatpush.bf16.msra.mxu0 0
      %1268 = vmatpush.bf16.msra.mxu0 0
      %1269 = vmatpush.bf16.msra.mxu0 0
      %1270 = vmatpush.bf16.msra.mxu0 0
      %1271 = vmatpush.bf16.msra.mxu0 0
      %1272 = vmatpush.bf16.msra.mxu0 0
      %1273 = vmatpush.bf16.msra.mxu0 0
      %1274 = vmatpush.bf16.msra.mxu0 %v1265
      %1275 = vmatmul.bf16.gmra.mxu0 %v1262
      %v1276 = vpop.f32.mrf.mxu0
      %v1277 = vadd.f32 0.0, %v1276
      %v1278 = vpop.f32.mrf.mxu0
      %1279 = vdwg.mxu0
      %v1281 = vsel %vm486, %v398, 0
      %v1284 = vsel %vm1130, %v1103, 0
      %1286 = vmatpush.bf16.msra.mxu0 0
      %1287 = vmatpush.bf16.msra.mxu0 0
      %1288 = vmatpush.bf16.msra.mxu0 0
      %1289 = vmatpush.bf16.msra.mxu0 0
      %1290 = vmatpush.bf16.msra.mxu0 0
      %1291 = vmatpush.bf16.msra.mxu0 0
      %1292 = vmatpush.bf16.msra.mxu0 0
      %1293 = vmatpush.bf16.msra.mxu0 %v1284
      %1294 = vmatmul.bf16.gmra.mxu0 %v1281
      %v1295 = vpop.f32.mrf.mxu0
      %v1296 = vadd.f32 0.0, %v1295
      %v1297 = vpop.f32.mrf.mxu0
      %1298 = vdwg.mxu0
      %v1300 = vsel %vm486, %v399, 0
      %v1303 = vsel %vm1130, %v1104, 0
      %1305 = vmatpush.bf16.msra.mxu0 0
      %1306 = vmatpush.bf16.msra.mxu0 0
      %1307 = vmatpush.bf16.msra.mxu0 0
      %1308 = vmatpush.bf16.msra.mxu0 0
      %1309 = vmatpush.bf16.msra.mxu0 0
      %1310 = vmatpush.bf16.msra.mxu0 0
      %1311 = vmatpush.bf16.msra.mxu0 0
      %1312 = vmatpush.bf16.msra.mxu0 %v1303
      %1313 = vmatmul.bf16.gmra.mxu0 %v1300
      %v1314 = vpop.f32.mrf.mxu0
      %v1315 = vadd.f32 0.0, %v1314
      %v1316 = vpop.f32.mrf.mxu0
      %1317 = vdwg.mxu0
      %v1319 = vsel %vm486, %v400, 0
      %v1322 = vsel %vm1130, %v1105, 0
      %1324 = vmatpush.bf16.msra.mxu0 0
      %1325 = vmatpush.bf16.msra.mxu0 0
      %1326 = vmatpush.bf16.msra.mxu0 0
      %1327 = vmatpush.bf16.msra.mxu0 0
      %1328 = vmatpush.bf16.msra.mxu0 0
      %1329 = vmatpush.bf16.msra.mxu0 0
      %1330 = vmatpush.bf16.msra.mxu0 0
      %1331 = vmatpush.bf16.msra.mxu0 %v1322
      %1332 = vmatmul.bf16.gmra.mxu0 %v1319
      %v1333 = vpop.f32.mrf.mxu0
      %v1334 = vadd.f32 0.0, %v1333
      %v1335 = vpop.f32.mrf.mxu0
      %1336 = vdwg.mxu0
      %v1338 = vsel %vm486, %v401, 0
      %v1341 = vsel %vm1130, %v1106, 0
      %1343 = vmatpush.bf16.msra.mxu0 0
      %1344 = vmatpush.bf16.msra.mxu0 0
      %1345 = vmatpush.bf16.msra.mxu0 0
      %1346 = vmatpush.bf16.msra.mxu0 0
      %1347 = vmatpush.bf16.msra.mxu0 0
      %1348 = vmatpush.bf16.msra.mxu0 0
      %1349 = vmatpush.bf16.msra.mxu0 0
      %1350 = vmatpush.bf16.msra.mxu0 %v1341
      %1351 = vmatmul.bf16.gmra.mxu0 %v1338
      %v1352 = vpop.f32.mrf.mxu0
      %v1353 = vadd.f32 0.0, %v1352
      %v1354 = vpop.f32.mrf.mxu0
      %1355 = vdwg.mxu0
      %v1357 = vsel %vm486, %v402, 0
      %v1360 = vsel %vm1130, %v1107, 0
      %1362 = vmatpush.bf16.msra.mxu0 0
      %1363 = vmatpush.bf16.msra.mxu0 0
      %1364 = vmatpush.bf16.msra.mxu0 0
      %1365 = vmatpush.bf16.msra.mxu0 0
      %1366 = vmatpush.bf16.msra.mxu0 0
      %1367 = vmatpush.bf16.msra.mxu0 0
      %1368 = vmatpush.bf16.msra.mxu0 0
      %1369 = vmatpush.bf16.msra.mxu0 %v1360
      %1370 = vmatmul.bf16.gmra.mxu0 %v1357
      %v1371 = vpop.f32.mrf.mxu0
      %v1372 = vadd.f32 0.0, %v1371
      %v1373 = vpop.f32.mrf.mxu0
      %1374 = vdwg.mxu0
      %v1376 = vsel %vm486, %v403, 0
      %v1379 = vsel %vm1130, %v1108, 0
      %1381 = vmatpush.bf16.msra.mxu0 0
      %1382 = vmatpush.bf16.msra.mxu0 0
      %1383 = vmatpush.bf16.msra.mxu0 0
      %1384 = vmatpush.bf16.msra.mxu0 0
      %1385 = vmatpush.bf16.msra.mxu0 0
      %1386 = vmatpush.bf16.msra.mxu0 0
      %1387 = vmatpush.bf16.msra.mxu0 0
      %1388 = vmatpush.bf16.msra.mxu0 %v1379
      %1389 = vmatmul.bf16.gmra.mxu0 %v1376
      %v1390 = vpop.f32.mrf.mxu0
      %v1391 = vadd.f32 0.0, %v1390
      %v1392 = vpop.f32.mrf.mxu0
      %1393 = vdwg.mxu0
      %v1395 = vsel %vm486, %v404, 0
      %v1398 = vsel %vm1130, %v1109, 0
      %1400 = vmatpush.bf16.msra.mxu0 0
      %1401 = vmatpush.bf16.msra.mxu0 0
      %1402 = vmatpush.bf16.msra.mxu0 0
      %1403 = vmatpush.bf16.msra.mxu0 0
      %1404 = vmatpush.bf16.msra.mxu0 0
      %1405 = vmatpush.bf16.msra.mxu0 0
      %1406 = vmatpush.bf16.msra.mxu0 0
      %1407 = vmatpush.bf16.msra.mxu0 %v1398
      %1408 = vmatmul.bf16.gmra.mxu0 %v1395
      %v1409 = vpop.f32.mrf.mxu0
      %v1410 = vadd.f32 0.0, %v1409
      %v1411 = vpop.f32.mrf.mxu0
      %1412 = vdwg.mxu0
      %v1414 = vsel %vm486, %v405, 0
      %v1417 = vsel %vm1130, %v1110, 0
      %1419 = vmatpush.bf16.msra.mxu0 0
      %1420 = vmatpush.bf16.msra.mxu0 0
      %1421 = vmatpush.bf16.msra.mxu0 0
      %1422 = vmatpush.bf16.msra.mxu0 0
      %1423 = vmatpush.bf16.msra.mxu0 0
      %1424 = vmatpush.bf16.msra.mxu0 0
      %1425 = vmatpush.bf16.msra.mxu0 0
      %1426 = vmatpush.bf16.msra.mxu0 %v1417
      %1427 = vmatmul.bf16.gmra.mxu0 %v1414
      %v1428 = vpop.f32.mrf.mxu0
      %v1429 = vadd.f32 0.0, %v1428
      %v1430 = vpop.f32.mrf.mxu0
      %1431 = vdwg.mxu0
      %v1433 = vsel %vm486, %v406, 0
      %v1436 = vsel %vm1130, %v1111, 0
      %1438 = vmatpush.bf16.msra.mxu0 0
      %1439 = vmatpush.bf16.msra.mxu0 0
      %1440 = vmatpush.bf16.msra.mxu0 0
      %1441 = vmatpush.bf16.msra.mxu0 0
      %1442 = vmatpush.bf16.msra.mxu0 0
      %1443 = vmatpush.bf16.msra.mxu0 0
      %1444 = vmatpush.bf16.msra.mxu0 0
      %1445 = vmatpush.bf16.msra.mxu0 %v1436
      %1446 = vmatmul.bf16.gmra.mxu0 %v1433
      %v1447 = vpop.f32.mrf.mxu0
      %v1448 = vadd.f32 0.0, %v1447
      %v1449 = vpop.f32.mrf.mxu0
      %1450 = vdwg.mxu0
      %v1452 = vsel %vm486, %v407, 0
      %v1455 = vsel %vm1130, %v1112, 0
      %1457 = vmatpush.bf16.msra.mxu0 0
      %1458 = vmatpush.bf16.msra.mxu0 0
      %1459 = vmatpush.bf16.msra.mxu0 0
      %1460 = vmatpush.bf16.msra.mxu0 0
      %1461 = vmatpush.bf16.msra.mxu0 0
      %1462 = vmatpush.bf16.msra.mxu0 0
      %1463 = vmatpush.bf16.msra.mxu0 0
      %1464 = vmatpush.bf16.msra.mxu0 %v1455
      %1465 = vmatmul.bf16.gmra.mxu0 %v1452
      %v1466 = vpop.f32.mrf.mxu0
      %v1467 = vadd.f32 0.0, %v1466
      %v1468 = vpop.f32.mrf.mxu0
      %1469 = vdwg.mxu0
      %v1471 = vsel %vm486, %v408, 0
      %v1474 = vsel %vm1130, %v1113, 0
      %1476 = vmatpush.bf16.msra.mxu0 0
      %1477 = vmatpush.bf16.msra.mxu0 0
      %1478 = vmatpush.bf16.msra.mxu0 0
      %1479 = vmatpush.bf16.msra.mxu0 0
      %1480 = vmatpush.bf16.msra.mxu0 0
      %1481 = vmatpush.bf16.msra.mxu0 0
      %1482 = vmatpush.bf16.msra.mxu0 0
      %1483 = vmatpush.bf16.msra.mxu0 %v1474
      %1484 = vmatmul.bf16.gmra.mxu0 %v1471
      %v1485 = vpop.f32.mrf.mxu0
      %v1486 = vadd.f32 0.0, %v1485
      %v1487 = vpop.f32.mrf.mxu0
      %1488 = vdwg.mxu0
      %v1490 = vsel %vm486, %v409, 0
      %v1493 = vsel %vm1130, %v1114, 0
      %1495 = vmatpush.bf16.msra.mxu0 0
      %1496 = vmatpush.bf16.msra.mxu0 0
      %1497 = vmatpush.bf16.msra.mxu0 0
      %1498 = vmatpush.bf16.msra.mxu0 0
      %1499 = vmatpush.bf16.msra.mxu0 0
      %1500 = vmatpush.bf16.msra.mxu0 0
      %1501 = vmatpush.bf16.msra.mxu0 0
      %1502 = vmatpush.bf16.msra.mxu0 %v1493
      %1503 = vmatmul.bf16.gmra.mxu0 %v1490
      %v1504 = vpop.f32.mrf.mxu0
      %v1505 = vadd.f32 0.0, %v1504
      %v1506 = vpop.f32.mrf.mxu0
      %1507 = vdwg.mxu0
      %v1509 = vsel %vm486, %v410, 0
      %v1512 = vsel %vm1130, %v1115, 0
      %1514 = vmatpush.bf16.msra.mxu0 0
      %1515 = vmatpush.bf16.msra.mxu0 0
      %1516 = vmatpush.bf16.msra.mxu0 0
      %1517 = vmatpush.bf16.msra.mxu0 0
      %1518 = vmatpush.bf16.msra.mxu0 0
      %1519 = vmatpush.bf16.msra.mxu0 0
      %1520 = vmatpush.bf16.msra.mxu0 0
      %1521 = vmatpush.bf16.msra.mxu0 %v1512
      %1522 = vmatmul.bf16.gmra.mxu0 %v1509
      %v1523 = vpop.f32.mrf.mxu0
      %v1524 = vadd.f32 0.0, %v1523
      %v1525 = vpop.f32.mrf.mxu0
      %1526 = vdwg.mxu0
      %v1528 = vsel %vm486, %v411, 0
      %v1531 = vsel %vm1130, %v1116, 0
      %1533 = vmatpush.bf16.msra.mxu0 0
      %1534 = vmatpush.bf16.msra.mxu0 0
      %1535 = vmatpush.bf16.msra.mxu0 0
      %1536 = vmatpush.bf16.msra.mxu0 0
      %1537 = vmatpush.bf16.msra.mxu0 0
      %1538 = vmatpush.bf16.msra.mxu0 0
      %1539 = vmatpush.bf16.msra.mxu0 0
      %1540 = vmatpush.bf16.msra.mxu0 %v1531
      %1541 = vmatmul.bf16.gmra.mxu0 %v1528
      %v1542 = vpop.f32.mrf.mxu0
      %v1543 = vadd.f32 0.0, %v1542
      %v1544 = vpop.f32.mrf.mxu0
      %1545 = vdwg.mxu0
      %v1547 = vsel %vm486, %v412, 0
      %v1550 = vsel %vm1130, %v1117, 0
      %1552 = vmatpush.bf16.msra.mxu0 0
      %1553 = vmatpush.bf16.msra.mxu0 0
      %1554 = vmatpush.bf16.msra.mxu0 0
      %1555 = vmatpush.bf16.msra.mxu0 0
      %1556 = vmatpush.bf16.msra.mxu0 0
      %1557 = vmatpush.bf16.msra.mxu0 0
      %1558 = vmatpush.bf16.msra.mxu0 0
      %1559 = vmatpush.bf16.msra.mxu0 %v1550
      %1560 = vmatmul.bf16.gmra.mxu0 %v1547
      %v1561 = vpop.f32.mrf.mxu0
      %v1562 = vadd.f32 0.0, %v1561
      %v1563 = vpop.f32.mrf.mxu0
      %1564 = vdwg.mxu0
      %v1566 = vsel %vm486, %v413, 0
      %v1569 = vsel %vm1130, %v1118, 0
      %1571 = vmatpush.bf16.msra.mxu0 0
      %1572 = vmatpush.bf16.msra.mxu0 0
      %1573 = vmatpush.bf16.msra.mxu0 0
      %1574 = vmatpush.bf16.msra.mxu0 0
      %1575 = vmatpush.bf16.msra.mxu0 0
      %1576 = vmatpush.bf16.msra.mxu0 0
      %1577 = vmatpush.bf16.msra.mxu0 0
      %1578 = vmatpush.bf16.msra.mxu0 %v1569
      %1579 = vmatmul.bf16.gmra.mxu0 %v1566
      %v1580 = vpop.f32.mrf.mxu0
      %v1581 = vadd.f32 0.0, %v1580
      %v1582 = vpop.f32.mrf.mxu0
      %1583 = vdwg.mxu0
      %v1585 = vsel %vm486, %v414, 0
      %v1588 = vsel %vm1130, %v1119, 0
      %1590 = vmatpush.bf16.msra.mxu0 0
      %1591 = vmatpush.bf16.msra.mxu0 0
      %1592 = vmatpush.bf16.msra.mxu0 0
      %1593 = vmatpush.bf16.msra.mxu0 0
      %1594 = vmatpush.bf16.msra.mxu0 0
      %1595 = vmatpush.bf16.msra.mxu0 0
      %1596 = vmatpush.bf16.msra.mxu0 0
      %1597 = vmatpush.bf16.msra.mxu0 %v1588
      %1598 = vmatmul.bf16.gmra.mxu0 %v1585
      %v1599 = vpop.f32.mrf.mxu0
      %v1600 = vadd.f32 0.0, %v1599
      %v1601 = vpop.f32.mrf.mxu0
      %1602 = vdwg.mxu0
      %v1604 = vsel %vm486, %v415, 0
      %v1607 = vsel %vm1130, %v1120, 0
      %1609 = vmatpush.bf16.msra.mxu0 0
      %1610 = vmatpush.bf16.msra.mxu0 0
      %1611 = vmatpush.bf16.msra.mxu0 0
      %1612 = vmatpush.bf16.msra.mxu0 0
      %1613 = vmatpush.bf16.msra.mxu0 0
      %1614 = vmatpush.bf16.msra.mxu0 0
      %1615 = vmatpush.bf16.msra.mxu0 0
      %1616 = vmatpush.bf16.msra.mxu0 %v1607
      %1617 = vmatmul.bf16.gmra.mxu0 %v1604
      %v1618 = vpop.f32.mrf.mxu0
      %v1619 = vadd.f32 0.0, %v1618
      %v1620 = vpop.f32.mrf.mxu0
      %1621 = vdwg.mxu0
      %v1623 = vsel %vm486, %v416, 0
      %v1626 = vsel %vm1130, %v1121, 0
      %1628 = vmatpush.bf16.msra.mxu0 0
      %1629 = vmatpush.bf16.msra.mxu0 0
      %1630 = vmatpush.bf16.msra.mxu0 0
      %1631 = vmatpush.bf16.msra.mxu0 0
      %1632 = vmatpush.bf16.msra.mxu0 0
      %1633 = vmatpush.bf16.msra.mxu0 0
      %1634 = vmatpush.bf16.msra.mxu0 0
      %1635 = vmatpush.bf16.msra.mxu0 %v1626
      %1636 = vmatmul.bf16.gmra.mxu0 %v1623
      %v1637 = vpop.f32.mrf.mxu0
      %v1638 = vadd.f32 0.0, %v1637
      %v1639 = vpop.f32.mrf.mxu0
      %1640 = vdwg.mxu0
      %v1642 = vsel %vm486, %v417, 0
      %v1645 = vsel %vm1130, %v1122, 0
      %1647 = vmatpush.bf16.msra.mxu0 0
      %1648 = vmatpush.bf16.msra.mxu0 0
      %1649 = vmatpush.bf16.msra.mxu0 0
      %1650 = vmatpush.bf16.msra.mxu0 0
      %1651 = vmatpush.bf16.msra.mxu0 0
      %1652 = vmatpush.bf16.msra.mxu0 0
      %1653 = vmatpush.bf16.msra.mxu0 0
      %1654 = vmatpush.bf16.msra.mxu0 %v1645
      %1655 = vmatmul.bf16.gmra.mxu0 %v1642
      %v1656 = vpop.f32.mrf.mxu0
      %v1657 = vadd.f32 0.0, %v1656
      %v1658 = vpop.f32.mrf.mxu0
      %1659 = vdwg.mxu0
      %v1661 = vsel %vm486, %v418, 0
      %v1664 = vsel %vm1130, %v1123, 0
      %1666 = vmatpush.bf16.msra.mxu0 0
      %1667 = vmatpush.bf16.msra.mxu0 0
      %1668 = vmatpush.bf16.msra.mxu0 0
      %1669 = vmatpush.bf16.msra.mxu0 0
      %1670 = vmatpush.bf16.msra.mxu0 0
      %1671 = vmatpush.bf16.msra.mxu0 0
      %1672 = vmatpush.bf16.msra.mxu0 0
      %1673 = vmatpush.bf16.msra.mxu0 %v1664
      %1674 = vmatmul.bf16.gmra.mxu0 %v1661
      %v1675 = vpop.f32.mrf.mxu0
      %v1676 = vadd.f32 0.0, %v1675
      %v1677 = vpop.f32.mrf.mxu0
      %1678 = vdwg.mxu0
      %v1680 = vsel %vm486, %v419, 0
      %v1683 = vsel %vm1130, %v1124, 0
      %1685 = vmatpush.bf16.msra.mxu0 0
      %1686 = vmatpush.bf16.msra.mxu0 0
      %1687 = vmatpush.bf16.msra.mxu0 0
      %1688 = vmatpush.bf16.msra.mxu0 0
      %1689 = vmatpush.bf16.msra.mxu0 0
      %1690 = vmatpush.bf16.msra.mxu0 0
      %1691 = vmatpush.bf16.msra.mxu0 0
      %1692 = vmatpush.bf16.msra.mxu0 %v1683
      %1693 = vmatmul.bf16.gmra.mxu0 %v1680
      %v1694 = vpop.f32.mrf.mxu0
      %v1695 = vadd.f32 0.0, %v1694
      %v1696 = vpop.f32.mrf.mxu0
      %1697 = vdwg.mxu0
      %v1699 = vsel %vm486, %v420, 0
      %v1702 = vsel %vm1130, %v1125, 0
      %1704 = vmatpush.bf16.msra.mxu0 0
      %1705 = vmatpush.bf16.msra.mxu0 0
      %1706 = vmatpush.bf16.msra.mxu0 0
      %1707 = vmatpush.bf16.msra.mxu0 0
      %1708 = vmatpush.bf16.msra.mxu0 0
      %1709 = vmatpush.bf16.msra.mxu0 0
      %1710 = vmatpush.bf16.msra.mxu0 0
      %1711 = vmatpush.bf16.msra.mxu0 %v1702
      %1712 = vmatmul.bf16.gmra.mxu0 %v1699
      %v1713 = vpop.f32.mrf.mxu0
      %v1714 = vadd.f32 0.0, %v1713
      %v1715 = vpop.f32.mrf.mxu0
      %1716 = vdwg.mxu0
      %v1718 = vsel %vm486, %v421, 0
      %v1721 = vsel %vm1130, %v1126, 0
      %1723 = vmatpush.bf16.msra.mxu0 0
      %1724 = vmatpush.bf16.msra.mxu0 0
      %1725 = vmatpush.bf16.msra.mxu0 0
      %1726 = vmatpush.bf16.msra.mxu0 0
      %1727 = vmatpush.bf16.msra.mxu0 0
      %1728 = vmatpush.bf16.msra.mxu0 0
      %1729 = vmatpush.bf16.msra.mxu0 0
      %1730 = vmatpush.bf16.msra.mxu0 %v1721
      %1731 = vmatmul.bf16.gmra.mxu0 %v1718
      %v1732 = vpop.f32.mrf.mxu0
      %v1733 = vadd.f32 0.0, %v1732
      %v1734 = vpop.f32.mrf.mxu0
      %1735 = vdwg.mxu0
      %v1736 = vmul.f32 %v1144, 0.35355338
      %v1737 = vmul.f32 %v1163, 0.35355338
      %v1738 = vmul.f32 %v1182, 0.35355338
      %v1739 = vmul.f32 %v1201, 0.35355338
      %v1740 = vmul.f32 %v1220, 0.35355338
      %v1741 = vmul.f32 %v1239, 0.35355338
      %v1742 = vmul.f32 %v1258, 0.35355338
      %v1743 = vmul.f32 %v1277, 0.35355338
      %v1744 = vmul.f32 %v1296, 0.35355338
      %v1745 = vmul.f32 %v1315, 0.35355338
      %v1746 = vmul.f32 %v1334, 0.35355338
      %v1747 = vmul.f32 %v1353, 0.35355338
      %v1748 = vmul.f32 %v1372, 0.35355338
      %v1749 = vmul.f32 %v1391, 0.35355338
      %v1750 = vmul.f32 %v1410, 0.35355338
      %v1751 = vmul.f32 %v1429, 0.35355338
      %v1752 = vmul.f32 %v1448, 0.35355338
      %v1753 = vmul.f32 %v1467, 0.35355338
      %v1754 = vmul.f32 %v1486, 0.35355338
      %v1755 = vmul.f32 %v1505, 0.35355338
      %v1756 = vmul.f32 %v1524, 0.35355338
      %v1757 = vmul.f32 %v1543, 0.35355338
      %v1758 = vmul.f32 %v1562, 0.35355338
      %v1759 = vmul.f32 %v1581, 0.35355338
      %v1760 = vmul.f32 %v1600, 0.35355338
      %v1761 = vmul.f32 %v1619, 0.35355338
      %v1762 = vmul.f32 %v1638, 0.35355338
      %v1763 = vmul.f32 %v1657, 0.35355338
      %v1764 = vmul.f32 %v1676, 0.35355338
      %v1765 = vmul.f32 %v1695, 0.35355338
      %v1766 = vmul.f32 %v1714, 0.35355338
      %v1767 = vmul.f32 %v1733, 0.35355338
      %v1768 = vld [vmem:[%s337] sm:$0xff]
      %v1769 = vld [vmem:[%s337 + $0x8] sm:$0xff]
      %v1770 = vld [vmem:[%s337 + $0x10] sm:$0xff]
      %v1771 = vld [vmem:[%s337 + $0x18] sm:$0xff]
      %v1772 = vld [vmem:[%s343] sm:$0xff]
      %v1773 = vld [vmem:[%s343 + $0x8] sm:$0xff]
      %v1774 = vld [vmem:[%s343 + $0x10] sm:$0xff]
      %v1775 = vld [vmem:[%s343 + $0x18] sm:$0xff]
      %v1776 = vperm.slane %v1768, 0
      %v1777 = vlaneseq
      %v1778 = vshrl.u32 %v1777, 7
      %1780 = vset.pattern.permute.xlu0 %v1778
      %1781 = vperm.xlu0 %1780, %v1776
      %v1782 = vpop.permute.xlu0 %1781
      %v1783 = vperm.slane %v1768, 1
      %v1784 = vlaneseq
      %v1785 = vshrl.u32 %v1784, 7
      %1787 = vset.pattern.permute.xlu0 %v1785
      %1788 = vperm.xlu0 %1787, %v1783
      %v1789 = vpop.permute.xlu0 %1788
      %v1790 = vperm.slane %v1768, 2
      %v1791 = vlaneseq
      %v1792 = vshrl.u32 %v1791, 7
      %1794 = vset.pattern.permute.xlu0 %v1792
      %1795 = vperm.xlu0 %1794, %v1790
      %v1796 = vpop.permute.xlu0 %1795
      %v1797 = vperm.slane %v1768, 3
      %v1798 = vlaneseq
      %v1799 = vshrl.u32 %v1798, 7
      %1801 = vset.pattern.permute.xlu0 %v1799
      %1802 = vperm.xlu0 %1801, %v1797
      %v1803 = vpop.permute.xlu0 %1802
      %v1804 = vperm.slane %v1768, 4
      %v1805 = vlaneseq
      %v1806 = vshrl.u32 %v1805, 7
      %1808 = vset.pattern.permute.xlu0 %v1806
      %1809 = vperm.xlu0 %1808, %v1804
      %v1810 = vpop.permute.xlu0 %1809
      %v1811 = vperm.slane %v1768, 5
      %v1812 = vlaneseq
      %v1813 = vshrl.u32 %v1812, 7
      %1815 = vset.pattern.permute.xlu0 %v1813
      %1816 = vperm.xlu0 %1815, %v1811
      %v1817 = vpop.permute.xlu0 %1816
      %v1818 = vperm.slane %v1768, 6
      %v1819 = vlaneseq
      %v1820 = vshrl.u32 %v1819, 7
      %1822 = vset.pattern.permute.xlu0 %v1820
      %1823 = vperm.xlu0 %1822, %v1818
      %v1824 = vpop.permute.xlu0 %1823
      %v1825 = vperm.slane %v1768, 7
      %v1826 = vlaneseq
      %v1827 = vshrl.u32 %v1826, 7
      %1829 = vset.pattern.permute.xlu0 %v1827
      %1830 = vperm.xlu0 %1829, %v1825
      %v1831 = vpop.permute.xlu0 %1830
      %v1832 = vperm.slane %v1769, 0
      %v1833 = vlaneseq
      %v1834 = vshrl.u32 %v1833, 7
      %1836 = vset.pattern.permute.xlu0 %v1834
      %1837 = vperm.xlu0 %1836, %v1832
      %v1838 = vpop.permute.xlu0 %1837
      %v1839 = vperm.slane %v1769, 1
      %v1840 = vlaneseq
      %v1841 = vshrl.u32 %v1840, 7
      %1843 = vset.pattern.permute.xlu0 %v1841
      %1844 = vperm.xlu0 %1843, %v1839
      %v1845 = vpop.permute.xlu0 %1844
      %v1846 = vperm.slane %v1769, 2
      %v1847 = vlaneseq
      %v1848 = vshrl.u32 %v1847, 7
      %1850 = vset.pattern.permute.xlu0 %v1848
      %1851 = vperm.xlu0 %1850, %v1846
      %v1852 = vpop.permute.xlu0 %1851
      %v1853 = vperm.slane %v1769, 3
      %v1854 = vlaneseq
      %v1855 = vshrl.u32 %v1854, 7
      %1857 = vset.pattern.permute.xlu0 %v1855
      %1858 = vperm.xlu0 %1857, %v1853
      %v1859 = vpop.permute.xlu0 %1858
      %v1860 = vperm.slane %v1769, 4
      %v1861 = vlaneseq
      %v1862 = vshrl.u32 %v1861, 7
      %1864 = vset.pattern.permute.xlu0 %v1862
      %1865 = vperm.xlu0 %1864, %v1860
      %v1866 = vpop.permute.xlu0 %1865
      %v1867 = vperm.slane %v1769, 5
      %v1868 = vlaneseq
      %v1869 = vshrl.u32 %v1868, 7
      %1871 = vset.pattern.permute.xlu0 %v1869
      %1872 = vperm.xlu0 %1871, %v1867
      %v1873 = vpop.permute.xlu0 %1872
      %v1874 = vperm.slane %v1769, 6
      %v1875 = vlaneseq
      %v1876 = vshrl.u32 %v1875, 7
      %1878 = vset.pattern.permute.xlu0 %v1876
      %1879 = vperm.xlu0 %1878, %v1874
      %v1880 = vpop.permute.xlu0 %1879
      %v1881 = vperm.slane %v1769, 7
      %v1882 = vlaneseq
      %v1883 = vshrl.u32 %v1882, 7
      %1885 = vset.pattern.permute.xlu0 %v1883
      %1886 = vperm.xlu0 %1885, %v1881
      %v1887 = vpop.permute.xlu0 %1886
      %v1888 = vperm.slane %v1770, 0
      %v1889 = vlaneseq
      %v1890 = vshrl.u32 %v1889, 7
      %1892 = vset.pattern.permute.xlu0 %v1890
      %1893 = vperm.xlu0 %1892, %v1888
      %v1894 = vpop.permute.xlu0 %1893
      %v1895 = vperm.slane %v1770, 1
      %v1896 = vlaneseq
      %v1897 = vshrl.u32 %v1896, 7
      %1899 = vset.pattern.permute.xlu0 %v1897
      %1900 = vperm.xlu0 %1899, %v1895
      %v1901 = vpop.permute.xlu0 %1900
      %v1902 = vperm.slane %v1770, 2
      %v1903 = vlaneseq
      %v1904 = vshrl.u32 %v1903, 7
      %1906 = vset.pattern.permute.xlu0 %v1904
      %1907 = vperm.xlu0 %1906, %v1902
      %v1908 = vpop.permute.xlu0 %1907
      %v1909 = vperm.slane %v1770, 3
      %v1910 = vlaneseq
      %v1911 = vshrl.u32 %v1910, 7
      %1913 = vset.pattern.permute.xlu0 %v1911
      %1914 = vperm.xlu0 %1913, %v1909
      %v1915 = vpop.permute.xlu0 %1914
      %v1916 = vperm.slane %v1770, 4
      %v1917 = vlaneseq
      %v1918 = vshrl.u32 %v1917, 7
      %1920 = vset.pattern.permute.xlu0 %v1918
      %1921 = vperm.xlu0 %1920, %v1916
      %v1922 = vpop.permute.xlu0 %1921
      %v1923 = vperm.slane %v1770, 5
      %v1924 = vlaneseq
      %v1925 = vshrl.u32 %v1924, 7
      %1927 = vset.pattern.permute.xlu0 %v1925
      %1928 = vperm.xlu0 %1927, %v1923
      %v1929 = vpop.permute.xlu0 %1928
      %v1930 = vperm.slane %v1770, 6
      %v1931 = vlaneseq
      %v1932 = vshrl.u32 %v1931, 7
      %1934 = vset.pattern.permute.xlu0 %v1932
      %1935 = vperm.xlu0 %1934, %v1930
      %v1936 = vpop.permute.xlu0 %1935
      %v1937 = vperm.slane %v1770, 7
      %v1938 = vlaneseq
      %v1939 = vshrl.u32 %v1938, 7
      %1941 = vset.pattern.permute.xlu0 %v1939
      %1942 = vperm.xlu0 %1941, %v1937
      %v1943 = vpop.permute.xlu0 %1942
      %v1944 = vperm.slane %v1771, 0
      %v1945 = vlaneseq
      %v1946 = vshrl.u32 %v1945, 7
      %1948 = vset.pattern.permute.xlu0 %v1946
      %1949 = vperm.xlu0 %1948, %v1944
      %v1950 = vpop.permute.xlu0 %1949
      %v1951 = vperm.slane %v1771, 1
      %v1952 = vlaneseq
      %v1953 = vshrl.u32 %v1952, 7
      %1955 = vset.pattern.permute.xlu0 %v1953
      %1956 = vperm.xlu0 %1955, %v1951
      %v1957 = vpop.permute.xlu0 %1956
      %v1958 = vperm.slane %v1771, 2
      %v1959 = vlaneseq
      %v1960 = vshrl.u32 %v1959, 7
      %1962 = vset.pattern.permute.xlu0 %v1960
      %1963 = vperm.xlu0 %1962, %v1958
      %v1964 = vpop.permute.xlu0 %1963
      %v1965 = vperm.slane %v1771, 3
      %v1966 = vlaneseq
      %v1967 = vshrl.u32 %v1966, 7
      %1969 = vset.pattern.permute.xlu0 %v1967
      %1970 = vperm.xlu0 %1969, %v1965
      %v1971 = vpop.permute.xlu0 %1970
      %v1972 = vperm.slane %v1771, 4
      %v1973 = vlaneseq
      %v1974 = vshrl.u32 %v1973, 7
      %1976 = vset.pattern.permute.xlu0 %v1974
      %1977 = vperm.xlu0 %1976, %v1972
      %v1978 = vpop.permute.xlu0 %1977
      %v1979 = vperm.slane %v1771, 5
      %v1980 = vlaneseq
      %v1981 = vshrl.u32 %v1980, 7
      %1983 = vset.pattern.permute.xlu0 %v1981
      %1984 = vperm.xlu0 %1983, %v1979
      %v1985 = vpop.permute.xlu0 %1984
      %v1986 = vperm.slane %v1771, 6
      %v1987 = vlaneseq
      %v1988 = vshrl.u32 %v1987, 7
      %1990 = vset.pattern.permute.xlu0 %v1988
      %1991 = vperm.xlu0 %1990, %v1986
      %v1992 = vpop.permute.xlu0 %1991
      %v1993 = vperm.slane %v1771, 7
      %v1994 = vlaneseq
      %v1995 = vshrl.u32 %v1994, 7
      %1997 = vset.pattern.permute.xlu0 %v1995
      %1998 = vperm.xlu0 %1997, %v1993
      %v1999 = vpop.permute.xlu0 %1998
      %v2000 = vrot.slane %v1772, 1
      %v2001 = vrot.slane %v1772, 2
      %v2002 = vrot.slane %v1772, 3
      %v2003 = vrot.slane %v1772, 4
      %v2004 = vrot.slane %v1772, 5
      %v2005 = vrot.slane %v1772, 6
      %v2006 = vrot.slane %v1772, 7
      %v2007 = vrot.slane %v1773, 1
      %v2008 = vrot.slane %v1773, 2
      %v2009 = vrot.slane %v1773, 3
      %v2010 = vrot.slane %v1773, 4
      %v2011 = vrot.slane %v1773, 5
      %v2012 = vrot.slane %v1773, 6
      %v2013 = vrot.slane %v1773, 7
      %v2014 = vrot.slane %v1774, 1
      %v2015 = vrot.slane %v1774, 2
      %v2016 = vrot.slane %v1774, 3
      %v2017 = vrot.slane %v1774, 4
      %v2018 = vrot.slane %v1774, 5
      %v2019 = vrot.slane %v1774, 6
      %v2020 = vrot.slane %v1774, 7
      %v2021 = vrot.slane %v1775, 1
      %v2022 = vrot.slane %v1775, 2
      %v2023 = vrot.slane %v1775, 3
      %v2024 = vrot.slane %v1775, 4
      %v2025 = vrot.slane %v1775, 5
      %v2026 = vrot.slane %v1775, 6
      %v2027 = vrot.slane %v1775, 7
      %v2028 = vperm.slane %v1772, 0
      %v2029 = vperm.slane %v2000, 0
      %v2030 = vperm.slane %v2001, 0
      %v2031 = vperm.slane %v2002, 0
      %v2032 = vperm.slane %v2003, 0
      %v2033 = vperm.slane %v2004, 0
      %v2034 = vperm.slane %v2005, 0
      %v2035 = vperm.slane %v2006, 0
      %v2036 = vperm.slane %v1773, 0
      %v2037 = vperm.slane %v2007, 0
      %v2038 = vperm.slane %v2008, 0
      %v2039 = vperm.slane %v2009, 0
      %v2040 = vperm.slane %v2010, 0
      %v2041 = vperm.slane %v2011, 0
      %v2042 = vperm.slane %v2012, 0
      %v2043 = vperm.slane %v2013, 0
      %v2044 = vperm.slane %v1774, 0
      %v2045 = vperm.slane %v2014, 0
      %v2046 = vperm.slane %v2015, 0
      %v2047 = vperm.slane %v2016, 0
      %v2048 = vperm.slane %v2017, 0
      %v2049 = vperm.slane %v2018, 0
      %v2050 = vperm.slane %v2019, 0
      %v2051 = vperm.slane %v2020, 0
      %v2052 = vperm.slane %v1775, 0
      %v2053 = vperm.slane %v2021, 0
      %v2054 = vperm.slane %v2022, 0
      %v2055 = vperm.slane %v2023, 0
      %v2056 = vperm.slane %v2024, 0
      %v2057 = vperm.slane %v2025, 0
      %v2058 = vperm.slane %v2026, 0
      %v2059 = vperm.slane %v2027, 0
      %vm2060 = vcmp.eq.s32.totalorder %v1782, %v2028
      %vm2061 = vcmp.eq.s32.totalorder %v1789, %v2029
      %vm2062 = vcmp.eq.s32.totalorder %v1796, %v2030
      %vm2063 = vcmp.eq.s32.totalorder %v1803, %v2031
      %vm2064 = vcmp.eq.s32.totalorder %v1810, %v2032
      %vm2065 = vcmp.eq.s32.totalorder %v1817, %v2033
      %vm2066 = vcmp.eq.s32.totalorder %v1824, %v2034
      %vm2067 = vcmp.eq.s32.totalorder %v1831, %v2035
      %vm2068 = vcmp.eq.s32.totalorder %v1838, %v2036
      %vm2069 = vcmp.eq.s32.totalorder %v1845, %v2037
      %vm2070 = vcmp.eq.s32.totalorder %v1852, %v2038
      %vm2071 = vcmp.eq.s32.totalorder %v1859, %v2039
      %vm2072 = vcmp.eq.s32.totalorder %v1866, %v2040
      %vm2073 = vcmp.eq.s32.totalorder %v1873, %v2041
      %vm2074 = vcmp.eq.s32.totalorder %v1880, %v2042
      %vm2075 = vcmp.eq.s32.totalorder %v1887, %v2043
      %vm2076 = vcmp.eq.s32.totalorder %v1894, %v2044
      %vm2077 = vcmp.eq.s32.totalorder %v1901, %v2045
      %vm2078 = vcmp.eq.s32.totalorder %v1908, %v2046
      %vm2079 = vcmp.eq.s32.totalorder %v1915, %v2047
      %vm2080 = vcmp.eq.s32.totalorder %v1922, %v2048
      %vm2081 = vcmp.eq.s32.totalorder %v1929, %v2049
      %vm2082 = vcmp.eq.s32.totalorder %v1936, %v2050
      %vm2083 = vcmp.eq.s32.totalorder %v1943, %v2051
      %vm2084 = vcmp.eq.s32.totalorder %v1950, %v2052
      %vm2085 = vcmp.eq.s32.totalorder %v1957, %v2053
      %vm2086 = vcmp.eq.s32.totalorder %v1964, %v2054
      %vm2087 = vcmp.eq.s32.totalorder %v1971, %v2055
      %vm2088 = vcmp.eq.s32.totalorder %v1978, %v2056
      %vm2089 = vcmp.eq.s32.totalorder %v1985, %v2057
      %vm2090 = vcmp.eq.s32.totalorder %v1992, %v2058
      %vm2091 = vcmp.eq.s32.totalorder %v1999, %v2059
      %v2092 = vsel %vm2060, -50000.0, %v1736
      %v2093 = vsel %vm2061, -50000.0, %v1737
      %v2094 = vsel %vm2062, -50000.0, %v1738
      %v2095 = vsel %vm2063, -50000.0, %v1739
      %v2096 = vsel %vm2064, -50000.0, %v1740
      %v2097 = vsel %vm2065, -50000.0, %v1741
      %v2098 = vsel %vm2066, -50000.0, %v1742
      %v2099 = vsel %vm2067, -50000.0, %v1743
      %v2100 = vsel %vm2068, -50000.0, %v1744
      %v2101 = vsel %vm2069, -50000.0, %v1745
      %v2102 = vsel %vm2070, -50000.0, %v1746
      %v2103 = vsel %vm2071, -50000.0, %v1747
      %v2104 = vsel %vm2072, -50000.0, %v1748
      %v2105 = vsel %vm2073, -50000.0, %v1749
      %v2106 = vsel %vm2074, -50000.0, %v1750
      %v2107 = vsel %vm2075, -50000.0, %v1751
      %v2108 = vsel %vm2076, -50000.0, %v1752
      %v2109 = vsel %vm2077, -50000.0, %v1753
      %v2110 = vsel %vm2078, -50000.0, %v1754
      %v2111 = vsel %vm2079, -50000.0, %v1755
      %v2112 = vsel %vm2080, -50000.0, %v1756
      %v2113 = vsel %vm2081, -50000.0, %v1757
      %v2114 = vsel %vm2082, -50000.0, %v1758
      %v2115 = vsel %vm2083, -50000.0, %v1759
      %v2116 = vsel %vm2084, -50000.0, %v1760
      %v2117 = vsel %vm2085, -50000.0, %v1761
      %v2118 = vsel %vm2086, -50000.0, %v1762
      %v2119 = vsel %vm2087, -50000.0, %v1763
      %v2120 = vsel %vm2088, -50000.0, %v1764
      %v2121 = vsel %vm2089, -50000.0, %v1765
      %v2122 = vsel %vm2090, -50000.0, %v1766
      %v2123 = vsel %vm2091, -50000.0, %v1767
      %vm2124 = vcmask 60416
      %v2125 = vsel %vm2124, %v2092, -inf
      %2126 = vmax.xlane.f32.xlu0 %v2125
      %v2127 = vpop.xlane.xlu0 %2126
      %v2128 = vsel %vm2124, %v2093, -inf
      %2129 = vmax.xlane.f32.xlu0 %v2128
      %v2130 = vpop.xlane.xlu0 %2129
      %v2131 = vsel %vm2124, %v2094, -inf
      %2132 = vmax.xlane.f32.xlu0 %v2131
      %v2133 = vpop.xlane.xlu0 %2132
      %v2134 = vsel %vm2124, %v2095, -inf
      %2135 = vmax.xlane.f32.xlu0 %v2134
      %v2136 = vpop.xlane.xlu0 %2135
      %v2137 = vsel %vm2124, %v2096, -inf
      %2138 = vmax.xlane.f32.xlu0 %v2137
      %v2139 = vpop.xlane.xlu0 %2138
      %v2140 = vsel %vm2124, %v2097, -inf
      %2141 = vmax.xlane.f32.xlu0 %v2140
      %v2142 = vpop.xlane.xlu0 %2141
      %v2143 = vsel %vm2124, %v2098, -inf
      %2144 = vmax.xlane.f32.xlu0 %v2143
      %v2145 = vpop.xlane.xlu0 %2144
      %v2146 = vsel %vm2124, %v2099, -inf
      %2147 = vmax.xlane.f32.xlu0 %v2146
      %v2148 = vpop.xlane.xlu0 %2147
      %v2149 = vsel %vm2124, %v2100, -inf
      %2150 = vmax.xlane.f32.xlu0 %v2149
      %v2151 = vpop.xlane.xlu0 %2150
      %v2152 = vsel %vm2124, %v2101, -inf
      %2153 = vmax.xlane.f32.xlu0 %v2152
      %v2154 = vpop.xlane.xlu0 %2153
      %v2155 = vsel %vm2124, %v2102, -inf
      %2156 = vmax.xlane.f32.xlu0 %v2155
      %v2157 = vpop.xlane.xlu0 %2156
      %v2158 = vsel %vm2124, %v2103, -inf
      %2159 = vmax.xlane.f32.xlu0 %v2158
      %v2160 = vpop.xlane.xlu0 %2159
      %v2161 = vsel %vm2124, %v2104, -inf
      %2162 = vmax.xlane.f32.xlu0 %v2161
      %v2163 = vpop.xlane.xlu0 %2162
      %v2164 = vsel %vm2124, %v2105, -inf
      %2165 = vmax.xlane.f32.xlu0 %v2164
      %v2166 = vpop.xlane.xlu0 %2165
      %v2167 = vsel %vm2124, %v2106, -inf
      %2168 = vmax.xlane.f32.xlu0 %v2167
      %v2169 = vpop.xlane.xlu0 %2168
      %v2170 = vsel %vm2124, %v2107, -inf
      %2171 = vmax.xlane.f32.xlu0 %v2170
      %v2172 = vpop.xlane.xlu0 %2171
      %v2173 = vsel %vm2124, %v2108, -inf
      %2174 = vmax.xlane.f32.xlu0 %v2173
      %v2175 = vpop.xlane.xlu0 %2174
      %v2176 = vsel %vm2124, %v2109, -inf
      %2177 = vmax.xlane.f32.xlu0 %v2176
      %v2178 = vpop.xlane.xlu0 %2177
      %v2179 = vsel %vm2124, %v2110, -inf
      %2180 = vmax.xlane.f32.xlu0 %v2179
      %v2181 = vpop.xlane.xlu0 %2180
      %v2182 = vsel %vm2124, %v2111, -inf
      %2183 = vmax.xlane.f32.xlu0 %v2182
      %v2184 = vpop.xlane.xlu0 %2183
      %v2185 = vsel %vm2124, %v2112, -inf
      %2186 = vmax.xlane.f32.xlu0 %v2185
      %v2187 = vpop.xlane.xlu0 %2186
      %v2188 = vsel %vm2124, %v2113, -inf
      %2189 = vmax.xlane.f32.xlu0 %v2188
      %v2190 = vpop.xlane.xlu0 %2189
      %v2191 = vsel %vm2124, %v2114, -inf
      %2192 = vmax.xlane.f32.xlu0 %v2191
      %v2193 = vpop.xlane.xlu0 %2192
      %v2194 = vsel %vm2124, %v2115, -inf
      %2195 = vmax.xlane.f32.xlu0 %v2194
      %v2196 = vpop.xlane.xlu0 %2195
      %v2197 = vsel %vm2124, %v2116, -inf
      %2198 = vmax.xlane.f32.xlu0 %v2197
      %v2199 = vpop.xlane.xlu0 %2198
      %v2200 = vsel %vm2124, %v2117, -inf
      %2201 = vmax.xlane.f32.xlu0 %v2200
      %v2202 = vpop.xlane.xlu0 %2201
      %v2203 = vsel %vm2124, %v2118, -inf
      %2204 = vmax.xlane.f32.xlu0 %v2203
      %v2205 = vpop.xlane.xlu0 %2204
      %v2206 = vsel %vm2124, %v2119, -inf
      %2207 = vmax.xlane.f32.xlu0 %v2206
      %v2208 = vpop.xlane.xlu0 %2207
      %v2209 = vsel %vm2124, %v2120, -inf
      %2210 = vmax.xlane.f32.xlu0 %v2209
      %v2211 = vpop.xlane.xlu0 %2210
      %v2212 = vsel %vm2124, %v2121, -inf
      %2213 = vmax.xlane.f32.xlu0 %v2212
      %v2214 = vpop.xlane.xlu0 %2213
      %v2215 = vsel %vm2124, %v2122, -inf
      %2216 = vmax.xlane.f32.xlu0 %v2215
      %v2217 = vpop.xlane.xlu0 %2216
      %v2218 = vsel %vm2124, %v2123, -inf
      %2219 = vmax.xlane.f32.xlu0 %v2218
      %v2220 = vpop.xlane.xlu0 %2219
      %v2221 = vsub.f32 %v2092, %v2127
      %v2222 = vsub.f32 %v2093, %v2130
      %v2223 = vsub.f32 %v2094, %v2133
      %v2224 = vsub.f32 %v2095, %v2136
      %v2225 = vsub.f32 %v2096, %v2139
      %v2226 = vsub.f32 %v2097, %v2142
      %v2227 = vsub.f32 %v2098, %v2145
      %v2228 = vsub.f32 %v2099, %v2148
      %v2229 = vsub.f32 %v2100, %v2151
      %v2230 = vsub.f32 %v2101, %v2154
      %v2231 = vsub.f32 %v2102, %v2157
      %v2232 = vsub.f32 %v2103, %v2160
      %v2233 = vsub.f32 %v2104, %v2163
      %v2234 = vsub.f32 %v2105, %v2166
      %v2235 = vsub.f32 %v2106, %v2169
      %v2236 = vsub.f32 %v2107, %v2172
      %v2237 = vsub.f32 %v2108, %v2175
      %v2238 = vsub.f32 %v2109, %v2178
      %v2239 = vsub.f32 %v2110, %v2181
      %v2240 = vsub.f32 %v2111, %v2184
      %v2241 = vsub.f32 %v2112, %v2187
      %v2242 = vsub.f32 %v2113, %v2190
      %v2243 = vsub.f32 %v2114, %v2193
      %v2244 = vsub.f32 %v2115, %v2196
      %v2245 = vsub.f32 %v2116, %v2199
      %v2246 = vsub.f32 %v2117, %v2202
      %v2247 = vsub.f32 %v2118, %v2205
      %v2248 = vsub.f32 %v2119, %v2208
      %v2249 = vsub.f32 %v2120, %v2211
      %v2250 = vsub.f32 %v2121, %v2214
      %v2251 = vsub.f32 %v2122, %v2217
      %v2252 = vsub.f32 %v2123, %v2220
      %v2253 = vmul.f32 %v2221, 1.442695
      %v2254 = vpow.pop %v2253
      %v2255 = vmul.f32 %v2222, 1.442695
      %v2256 = vpow.pop %v2255
      %v2257 = vmul.f32 %v2223, 1.442695
      %v2258 = vpow.pop %v2257
      %v2259 = vmul.f32 %v2224, 1.442695
      %v2260 = vpow.pop %v2259
      %v2261 = vmul.f32 %v2225, 1.442695
      %v2262 = vpow.pop %v2261
      %v2263 = vmul.f32 %v2226, 1.442695
      %v2264 = vpow.pop %v2263
      %v2265 = vmul.f32 %v2227, 1.442695
      %v2266 = vpow.pop %v2265
      %v2267 = vmul.f32 %v2228, 1.442695
      %v2268 = vpow.pop %v2267
      %v2269 = vmul.f32 %v2229, 1.442695
      %v2270 = vpow.pop %v2269
      %v2271 = vmul.f32 %v2230, 1.442695
      %v2272 = vpow.pop %v2271
      %v2273 = vmul.f32 %v2231, 1.442695
      %v2274 = vpow.pop %v2273
      %v2275 = vmul.f32 %v2232, 1.442695
      %v2276 = vpow.pop %v2275
      %v2277 = vmul.f32 %v2233, 1.442695
      %v2278 = vpow.pop %v2277
      %v2279 = vmul.f32 %v2234, 1.442695
      %v2280 = vpow.pop %v2279
      %v2281 = vmul.f32 %v2235, 1.442695
      %v2282 = vpow.pop %v2281
      %v2283 = vmul.f32 %v2236, 1.442695
      %v2284 = vpow.pop %v2283
      %v2285 = vmul.f32 %v2237, 1.442695
      %v2286 = vpow.pop %v2285
      %v2287 = vmul.f32 %v2238, 1.442695
      %v2288 = vpow.pop %v2287
      %v2289 = vmul.f32 %v2239, 1.442695
      %v2290 = vpow.pop %v2289
      %v2291 = vmul.f32 %v2240, 1.442695
      %v2292 = vpow.pop %v2291
      %v2293 = vmul.f32 %v2241, 1.442695
      %v2294 = vpow.pop %v2293
      %v2295 = vmul.f32 %v2242, 1.442695
      %v2296 = vpow.pop %v2295
      %v2297 = vmul.f32 %v2243, 1.442695
      %v2298 = vpow.pop %v2297
      %v2299 = vmul.f32 %v2244, 1.442695
      %v2300 = vpow.pop %v2299
      %v2301 = vmul.f32 %v2245, 1.442695
      %v2302 = vpow.pop %v2301
      %v2303 = vmul.f32 %v2246, 1.442695
      %v2304 = vpow.pop %v2303
      %v2305 = vmul.f32 %v2247, 1.442695
      %v2306 = vpow.pop %v2305
      %v2307 = vmul.f32 %v2248, 1.442695
      %v2308 = vpow.pop %v2307
      %v2309 = vmul.f32 %v2249, 1.442695
      %v2310 = vpow.pop %v2309
      %v2311 = vmul.f32 %v2250, 1.442695
      %v2312 = vpow.pop %v2311
      %v2313 = vmul.f32 %v2251, 1.442695
      %v2314 = vpow.pop %v2313
      %v2315 = vmul.f32 %v2252, 1.442695
      %v2316 = vpow.pop %v2315
      %v2317 = vsel %vm2124, %v2254, 0.0
      %2318 = vadd.xlane.f32.xlu0 %v2317
      %v2319 = vpop.xlane.xlu0 %2318
      %v2320 = vsel %vm2124, %v2256, 0.0
      %2321 = vadd.xlane.f32.xlu0 %v2320
      %v2322 = vpop.xlane.xlu0 %2321
      %v2323 = vsel %vm2124, %v2258, 0.0
      %2324 = vadd.xlane.f32.xlu0 %v2323
      %v2325 = vpop.xlane.xlu0 %2324
      %v2326 = vsel %vm2124, %v2260, 0.0
      %2327 = vadd.xlane.f32.xlu0 %v2326
      %v2328 = vpop.xlane.xlu0 %2327
      %v2329 = vsel %vm2124, %v2262, 0.0
      %2330 = vadd.xlane.f32.xlu0 %v2329
      %v2331 = vpop.xlane.xlu0 %2330
      %v2332 = vsel %vm2124, %v2264, 0.0
      %2333 = vadd.xlane.f32.xlu0 %v2332
      %v2334 = vpop.xlane.xlu0 %2333
      %v2335 = vsel %vm2124, %v2266, 0.0
      %2336 = vadd.xlane.f32.xlu0 %v2335
      %v2337 = vpop.xlane.xlu0 %2336
      %v2338 = vsel %vm2124, %v2268, 0.0
      %2339 = vadd.xlane.f32.xlu0 %v2338
      %v2340 = vpop.xlane.xlu0 %2339
      %v2341 = vsel %vm2124, %v2270, 0.0
      %2342 = vadd.xlane.f32.xlu0 %v2341
      %v2343 = vpop.xlane.xlu0 %2342
      %v2344 = vsel %vm2124, %v2272, 0.0
      %2345 = vadd.xlane.f32.xlu0 %v2344
      %v2346 = vpop.xlane.xlu0 %2345
      %v2347 = vsel %vm2124, %v2274, 0.0
      %2348 = vadd.xlane.f32.xlu0 %v2347
      %v2349 = vpop.xlane.xlu0 %2348
      %v2350 = vsel %vm2124, %v2276, 0.0
      %2351 = vadd.xlane.f32.xlu0 %v2350
      %v2352 = vpop.xlane.xlu0 %2351
      %v2353 = vsel %vm2124, %v2278, 0.0
      %2354 = vadd.xlane.f32.xlu0 %v2353
      %v2355 = vpop.xlane.xlu0 %2354
      %v2356 = vsel %vm2124, %v2280, 0.0
      %2357 = vadd.xlane.f32.xlu0 %v2356
      %v2358 = vpop.xlane.xlu0 %2357
      %v2359 = vsel %vm2124, %v2282, 0.0
      %2360 = vadd.xlane.f32.xlu0 %v2359
      %v2361 = vpop.xlane.xlu0 %2360
      %v2362 = vsel %vm2124, %v2284, 0.0
      %2363 = vadd.xlane.f32.xlu0 %v2362
      %v2364 = vpop.xlane.xlu0 %2363
      %v2365 = vsel %vm2124, %v2286, 0.0
      %2366 = vadd.xlane.f32.xlu0 %v2365
      %v2367 = vpop.xlane.xlu0 %2366
      %v2368 = vsel %vm2124, %v2288, 0.0
      %2369 = vadd.xlane.f32.xlu0 %v2368
      %v2370 = vpop.xlane.xlu0 %2369
      %v2371 = vsel %vm2124, %v2290, 0.0
      %2372 = vadd.xlane.f32.xlu0 %v2371
      %v2373 = vpop.xlane.xlu0 %2372
      %v2374 = vsel %vm2124, %v2292, 0.0
      %2375 = vadd.xlane.f32.xlu0 %v2374
      %v2376 = vpop.xlane.xlu0 %2375
      %v2377 = vsel %vm2124, %v2294, 0.0
      %2378 = vadd.xlane.f32.xlu0 %v2377
      %v2379 = vpop.xlane.xlu0 %2378
      %v2380 = vsel %vm2124, %v2296, 0.0
      %2381 = vadd.xlane.f32.xlu0 %v2380
      %v2382 = vpop.xlane.xlu0 %2381
      %v2383 = vsel %vm2124, %v2298, 0.0
      %2384 = vadd.xlane.f32.xlu0 %v2383
      %v2385 = vpop.xlane.xlu0 %2384
      %v2386 = vsel %vm2124, %v2300, 0.0
      %2387 = vadd.xlane.f32.xlu0 %v2386
      %v2388 = vpop.xlane.xlu0 %2387
      %v2389 = vsel %vm2124, %v2302, 0.0
      %2390 = vadd.xlane.f32.xlu0 %v2389
      %v2391 = vpop.xlane.xlu0 %2390
      %v2392 = vsel %vm2124, %v2304, 0.0
      %2393 = vadd.xlane.f32.xlu0 %v2392
      %v2394 = vpop.xlane.xlu0 %2393
      %v2395 = vsel %vm2124, %v2306, 0.0
      %2396 = vadd.xlane.f32.xlu0 %v2395
      %v2397 = vpop.xlane.xlu0 %2396
      %v2398 = vsel %vm2124, %v2308, 0.0
      %2399 = vadd.xlane.f32.xlu0 %v2398
      %v2400 = vpop.xlane.xlu0 %2399
      %v2401 = vsel %vm2124, %v2310, 0.0
      %2402 = vadd.xlane.f32.xlu0 %v2401
      %v2403 = vpop.xlane.xlu0 %2402
      %v2404 = vsel %vm2124, %v2312, 0.0
      %2405 = vadd.xlane.f32.xlu0 %v2404
      %v2406 = vpop.xlane.xlu0 %2405
      %v2407 = vsel %vm2124, %v2314, 0.0
      %2408 = vadd.xlane.f32.xlu0 %v2407
      %v2409 = vpop.xlane.xlu0 %2408
      %v2410 = vsel %vm2124, %v2316, 0.0
      %2411 = vadd.xlane.f32.xlu0 %v2410
      %v2412 = vpop.xlane.xlu0 %2411
      %v2413 = vrcp.pop %v2319
      %v2414 = vrcp.pop %v2322
      %v2415 = vrcp.pop %v2325
      %v2416 = vrcp.pop %v2328
      %v2417 = vrcp.pop %v2331
      %v2418 = vrcp.pop %v2334
      %v2419 = vrcp.pop %v2337
      %v2420 = vrcp.pop %v2340
      %v2421 = vrcp.pop %v2343
      %v2422 = vrcp.pop %v2346
      %v2423 = vrcp.pop %v2349
      %v2424 = vrcp.pop %v2352
      %v2425 = vrcp.pop %v2355
      %v2426 = vrcp.pop %v2358
      %v2427 = vrcp.pop %v2361
      %v2428 = vrcp.pop %v2364
      %v2429 = vrcp.pop %v2367
      %v2430 = vrcp.pop %v2370
      %v2431 = vrcp.pop %v2373
      %v2432 = vrcp.pop %v2376
      %v2433 = vrcp.pop %v2379
      %v2434 = vrcp.pop %v2382
      %v2435 = vrcp.pop %v2385
      %v2436 = vrcp.pop %v2388
      %v2437 = vrcp.pop %v2391
      %v2438 = vrcp.pop %v2394
      %v2439 = vrcp.pop %v2397
      %v2440 = vrcp.pop %v2400
      %v2441 = vrcp.pop %v2403
      %v2442 = vrcp.pop %v2406
      %v2443 = vrcp.pop %v2409
      %v2444 = vrcp.pop %v2412
      %v2445 = vmul.f32 %v2254, %v2413
      %v2446 = vmul.f32 %v2256, %v2414
      %v2447 = vmul.f32 %v2258, %v2415
      %v2448 = vmul.f32 %v2260, %v2416
      %v2449 = vmul.f32 %v2262, %v2417
      %v2450 = vmul.f32 %v2264, %v2418
      %v2451 = vmul.f32 %v2266, %v2419
      %v2452 = vmul.f32 %v2268, %v2420
      %v2453 = vmul.f32 %v2270, %v2421
      %v2454 = vmul.f32 %v2272, %v2422
      %v2455 = vmul.f32 %v2274, %v2423
      %v2456 = vmul.f32 %v2276, %v2424
      %v2457 = vmul.f32 %v2278, %v2425
      %v2458 = vmul.f32 %v2280, %v2426
      %v2459 = vmul.f32 %v2282, %v2427
      %v2460 = vmul.f32 %v2284, %v2428
      %v2461 = vmul.f32 %v2286, %v2429
      %v2462 = vmul.f32 %v2288, %v2430
      %v2463 = vmul.f32 %v2290, %v2431
      %v2464 = vmul.f32 %v2292, %v2432
      %v2465 = vmul.f32 %v2294, %v2433
      %v2466 = vmul.f32 %v2296, %v2434
      %v2467 = vmul.f32 %v2298, %v2435
      %v2468 = vmul.f32 %v2300, %v2436
      %v2469 = vmul.f32 %v2302, %v2437
      %v2470 = vmul.f32 %v2304, %v2438
      %v2471 = vmul.f32 %v2306, %v2439
      %v2472 = vmul.f32 %v2308, %v2440
      %v2473 = vmul.f32 %v2310, %v2441
      %v2474 = vmul.f32 %v2312, %v2442
      %v2475 = vmul.f32 %v2314, %v2443
      %v2476 = vmul.f32 %v2316, %v2444
      %v2477 = vpack.c.bf16 %v2445, %v2445
      %v2478 = vpack.c.bf16 %v2446, %v2446
      %v2479 = vpack.c.bf16 %v2447, %v2447
      %v2480 = vpack.c.bf16 %v2448, %v2448
      %v2481 = vpack.c.bf16 %v2449, %v2449
      %v2482 = vpack.c.bf16 %v2450, %v2450
      %v2483 = vpack.c.bf16 %v2451, %v2451
      %v2484 = vpack.c.bf16 %v2452, %v2452
      %v2485 = vpack.c.bf16 %v2453, %v2453
      %v2486 = vpack.c.bf16 %v2454, %v2454
      %v2487 = vpack.c.bf16 %v2455, %v2455
      %v2488 = vpack.c.bf16 %v2456, %v2456
      %v2489 = vpack.c.bf16 %v2457, %v2457
      %v2490 = vpack.c.bf16 %v2458, %v2458
      %v2491 = vpack.c.bf16 %v2459, %v2459
      %v2492 = vpack.c.bf16 %v2460, %v2460
      %v2493 = vpack.c.bf16 %v2461, %v2461
      %v2494 = vpack.c.bf16 %v2462, %v2462
      %v2495 = vpack.c.bf16 %v2463, %v2463
      %v2496 = vpack.c.bf16 %v2464, %v2464
      %v2497 = vpack.c.bf16 %v2465, %v2465
      %v2498 = vpack.c.bf16 %v2466, %v2466
      %v2499 = vpack.c.bf16 %v2467, %v2467
      %v2500 = vpack.c.bf16 %v2468, %v2468
      %v2501 = vpack.c.bf16 %v2469, %v2469
      %v2502 = vpack.c.bf16 %v2470, %v2470
      %v2503 = vpack.c.bf16 %v2471, %v2471
      %v2504 = vpack.c.bf16 %v2472, %v2472
      %v2505 = vpack.c.bf16 %v2473, %v2473
      %v2506 = vpack.c.bf16 %v2474, %v2474
      %v2507 = vpack.c.bf16 %v2475, %v2475
      %v2508 = vpack.c.bf16 %v2476, %v2476
      %v2509 = vld [vmem:[%s331] sm:$0xff]
      %v2510 = vld [vmem:[%s331 + $0x8] sm:$0xff]
      %v2511 = vld [vmem:[%s331 + $0x10] sm:$0xff]
      %v2512 = vld [vmem:[%s331 + $0x18] sm:$0xff]
      %v2513 = vld [vmem:[%s331 + $0x20] sm:$0xff]
      %v2514 = vld [vmem:[%s331 + $0x28] sm:$0xff]
      %v2515 = vld [vmem:[%s331 + $0x30] sm:$0xff]
      %v2516 = vld [vmem:[%s331 + $0x38] sm:$0xff]
      %v2517 = vld [vmem:[%s331 + $0x40] sm:$0xff]
      %v2518 = vld [vmem:[%s331 + $0x48] sm:$0xff]
      %v2519 = vld [vmem:[%s331 + $0x50] sm:$0xff]
      %v2520 = vld [vmem:[%s331 + $0x58] sm:$0xff]
      %v2521 = vld [vmem:[%s331 + $0x60] sm:$0xff]
      %v2522 = vld [vmem:[%s331 + $0x68] sm:$0xff]
      %v2523 = vld [vmem:[%s331 + $0x70] sm:$0xff]
      %v2524 = vld [vmem:[%s331 + $0x78] sm:$0xff]
      %v2525 = vld [vmem:[%s331 + $0x80] sm:$0xff]
      %v2526 = vld [vmem:[%s331 + $0x88] sm:$0xff]
      %v2527 = vld [vmem:[%s331 + $0x90] sm:$0xff]
      %v2528 = vld [vmem:[%s331 + $0x98] sm:$0xff]
      %v2529 = vld [vmem:[%s331 + $0xa0] sm:$0xff]
      %v2530 = vld [vmem:[%s331 + $0xa8] sm:$0xff]
      %v2531 = vld [vmem:[%s331 + $0xb0] sm:$0xff]
      %v2532 = vld [vmem:[%s331 + $0xb8] sm:$0xff]
      %v2533 = vld [vmem:[%s331 + $0xc0] sm:$0xff]
      %v2534 = vld [vmem:[%s331 + $0xc8] sm:$0xff]
      %v2535 = vld [vmem:[%s331 + $0xd0] sm:$0xff]
      %v2536 = vld [vmem:[%s331 + $0xd8] sm:$0xff]
      %v2537 = vld [vmem:[%s331 + $0xe0] sm:$0xff]
      %v2538 = vld [vmem:[%s331 + $0xe8] sm:$0xff]
      %v2539 = vld [vmem:[%s331 + $0xf0] sm:$0xff]
      %v2540 = vld [vmem:[%s331 + $0xf8] sm:$0xff]
      %v2541 = vpack.c.bf16 %v2509, %v2509
      %v2542 = vpack.c.bf16 %v2510, %v2510
      %v2543 = vpack.c.bf16 %v2511, %v2511
      %v2544 = vpack.c.bf16 %v2512, %v2512
      %v2545 = vpack.c.bf16 %v2513, %v2513
      %v2546 = vpack.c.bf16 %v2514, %v2514
      %v2547 = vpack.c.bf16 %v2515, %v2515
      %v2548 = vpack.c.bf16 %v2516, %v2516
      %v2549 = vpack.c.bf16 %v2517, %v2517
      %v2550 = vpack.c.bf16 %v2518, %v2518
      %v2551 = vpack.c.bf16 %v2519, %v2519
      %v2552 = vpack.c.bf16 %v2520, %v2520
      %v2553 = vpack.c.bf16 %v2521, %v2521
      %v2554 = vpack.c.bf16 %v2522, %v2522
      %v2555 = vpack.c.bf16 %v2523, %v2523
      %v2556 = vpack.c.bf16 %v2524, %v2524
      %v2557 = vpack.c.bf16 %v2525, %v2525
      %v2558 = vpack.c.bf16 %v2526, %v2526
      %v2559 = vpack.c.bf16 %v2527, %v2527
      %v2560 = vpack.c.bf16 %v2528, %v2528
      %v2561 = vpack.c.bf16 %v2529, %v2529
      %v2562 = vpack.c.bf16 %v2530, %v2530
      %v2563 = vpack.c.bf16 %v2531, %v2531
      %v2564 = vpack.c.bf16 %v2532, %v2532
      %v2565 = vpack.c.bf16 %v2533, %v2533
      %v2566 = vpack.c.bf16 %v2534, %v2534
      %v2567 = vpack.c.bf16 %v2535, %v2535
      %v2568 = vpack.c.bf16 %v2536, %v2536
      %v2569 = vpack.c.bf16 %v2537, %v2537
      %v2570 = vpack.c.bf16 %v2538, %v2538
      %v2571 = vpack.c.bf16 %v2539, %v2539
      %v2572 = vpack.c.bf16 %v2540, %v2540
      %v2574 = vsel %vm486, %v2477, 0
      %v2577 = vsel %vm1130, %v2541, 0
      %2579 = vmatpush.bf16.msra.mxu0 0
      %2580 = vmatpush.bf16.msra.mxu0 0
      %2581 = vmatpush.bf16.msra.mxu0 0
      %2582 = vmatpush.bf16.msra.mxu0 0
      %2583 = vmatpush.bf16.msra.mxu0 0
      %2584 = vmatpush.bf16.msra.mxu0 0
      %2585 = vmatpush.bf16.msra.mxu0 0
      %2586 = vmatpush.bf16.msra.mxu0 %v2577
      %2587 = vmatmul.bf16.gmra.mxu0 %v2574
      %v2588 = vpop.f32.mrf.mxu0
      %v2589 = vadd.f32 0.0, %v2588
      %v2590 = vpop.f32.mrf.mxu0
      %2591 = vdwg.mxu0
      %v2593 = vsel %vm486, %v2478, 0
      %v2596 = vsel %vm1130, %v2542, 0
      %2598 = vmatpush.bf16.msra.mxu0 0
      %2599 = vmatpush.bf16.msra.mxu0 0
      %2600 = vmatpush.bf16.msra.mxu0 0
      %2601 = vmatpush.bf16.msra.mxu0 0
      %2602 = vmatpush.bf16.msra.mxu0 0
      %2603 = vmatpush.bf16.msra.mxu0 0
      %2604 = vmatpush.bf16.msra.mxu0 0
      %2605 = vmatpush.bf16.msra.mxu0 %v2596
      %2606 = vmatmul.bf16.gmra.mxu0 %v2593
      %v2607 = vpop.f32.mrf.mxu0
      %v2608 = vadd.f32 0.0, %v2607
      %v2609 = vpop.f32.mrf.mxu0
      %2610 = vdwg.mxu0
      %v2612 = vsel %vm486, %v2479, 0
      %v2615 = vsel %vm1130, %v2543, 0
      %2617 = vmatpush.bf16.msra.mxu0 0
      %2618 = vmatpush.bf16.msra.mxu0 0
      %2619 = vmatpush.bf16.msra.mxu0 0
      %2620 = vmatpush.bf16.msra.mxu0 0
      %2621 = vmatpush.bf16.msra.mxu0 0
      %2622 = vmatpush.bf16.msra.mxu0 0
      %2623 = vmatpush.bf16.msra.mxu0 0
      %2624 = vmatpush.bf16.msra.mxu0 %v2615
      %2625 = vmatmul.bf16.gmra.mxu0 %v2612
      %v2626 = vpop.f32.mrf.mxu0
      %v2627 = vadd.f32 0.0, %v2626
      %v2628 = vpop.f32.mrf.mxu0
      %2629 = vdwg.mxu0
      %v2631 = vsel %vm486, %v2480, 0
      %v2634 = vsel %vm1130, %v2544, 0
      %2636 = vmatpush.bf16.msra.mxu0 0
      %2637 = vmatpush.bf16.msra.mxu0 0
      %2638 = vmatpush.bf16.msra.mxu0 0
      %2639 = vmatpush.bf16.msra.mxu0 0
      %2640 = vmatpush.bf16.msra.mxu0 0
      %2641 = vmatpush.bf16.msra.mxu0 0
      %2642 = vmatpush.bf16.msra.mxu0 0
      %2643 = vmatpush.bf16.msra.mxu0 %v2634
      %2644 = vmatmul.bf16.gmra.mxu0 %v2631
      %v2645 = vpop.f32.mrf.mxu0
      %v2646 = vadd.f32 0.0, %v2645
      %v2647 = vpop.f32.mrf.mxu0
      %2648 = vdwg.mxu0
      %v2650 = vsel %vm486, %v2481, 0
      %v2653 = vsel %vm1130, %v2545, 0
      %2655 = vmatpush.bf16.msra.mxu0 0
      %2656 = vmatpush.bf16.msra.mxu0 0
      %2657 = vmatpush.bf16.msra.mxu0 0
      %2658 = vmatpush.bf16.msra.mxu0 0
      %2659 = vmatpush.bf16.msra.mxu0 0
      %2660 = vmatpush.bf16.msra.mxu0 0
      %2661 = vmatpush.bf16.msra.mxu0 0
      %2662 = vmatpush.bf16.msra.mxu0 %v2653
      %2663 = vmatmul.bf16.gmra.mxu0 %v2650
      %v2664 = vpop.f32.mrf.mxu0
      %v2665 = vadd.f32 0.0, %v2664
      %v2666 = vpop.f32.mrf.mxu0
      %2667 = vdwg.mxu0
      %v2669 = vsel %vm486, %v2482, 0
      %v2672 = vsel %vm1130, %v2546, 0
      %2674 = vmatpush.bf16.msra.mxu0 0
      %2675 = vmatpush.bf16.msra.mxu0 0
      %2676 = vmatpush.bf16.msra.mxu0 0
      %2677 = vmatpush.bf16.msra.mxu0 0
      %2678 = vmatpush.bf16.msra.mxu0 0
      %2679 = vmatpush.bf16.msra.mxu0 0
      %2680 = vmatpush.bf16.msra.mxu0 0
      %2681 = vmatpush.bf16.msra.mxu0 %v2672
      %2682 = vmatmul.bf16.gmra.mxu0 %v2669
      %v2683 = vpop.f32.mrf.mxu0
      %v2684 = vadd.f32 0.0, %v2683
      %v2685 = vpop.f32.mrf.mxu0
      %2686 = vdwg.mxu0
      %v2688 = vsel %vm486, %v2483, 0
      %v2691 = vsel %vm1130, %v2547, 0
      %2693 = vmatpush.bf16.msra.mxu0 0
      %2694 = vmatpush.bf16.msra.mxu0 0
      %2695 = vmatpush.bf16.msra.mxu0 0
      %2696 = vmatpush.bf16.msra.mxu0 0
      %2697 = vmatpush.bf16.msra.mxu0 0
      %2698 = vmatpush.bf16.msra.mxu0 0
      %2699 = vmatpush.bf16.msra.mxu0 0
      %2700 = vmatpush.bf16.msra.mxu0 %v2691
      %2701 = vmatmul.bf16.gmra.mxu0 %v2688
      %v2702 = vpop.f32.mrf.mxu0
      %v2703 = vadd.f32 0.0, %v2702
      %v2704 = vpop.f32.mrf.mxu0
      %2705 = vdwg.mxu0
      %v2707 = vsel %vm486, %v2484, 0
      %v2710 = vsel %vm1130, %v2548, 0
      %2712 = vmatpush.bf16.msra.mxu0 0
      %2713 = vmatpush.bf16.msra.mxu0 0
      %2714 = vmatpush.bf16.msra.mxu0 0
      %2715 = vmatpush.bf16.msra.mxu0 0
      %2716 = vmatpush.bf16.msra.mxu0 0
      %2717 = vmatpush.bf16.msra.mxu0 0
      %2718 = vmatpush.bf16.msra.mxu0 0
      %2719 = vmatpush.bf16.msra.mxu0 %v2710
      %2720 = vmatmul.bf16.gmra.mxu0 %v2707
      %v2721 = vpop.f32.mrf.mxu0
      %v2722 = vadd.f32 0.0, %v2721
      %v2723 = vpop.f32.mrf.mxu0
      %2724 = vdwg.mxu0
      %v2726 = vsel %vm486, %v2485, 0
      %v2729 = vsel %vm1130, %v2549, 0
      %2731 = vmatpush.bf16.msra.mxu0 0
      %2732 = vmatpush.bf16.msra.mxu0 0
      %2733 = vmatpush.bf16.msra.mxu0 0
      %2734 = vmatpush.bf16.msra.mxu0 0
      %2735 = vmatpush.bf16.msra.mxu0 0
      %2736 = vmatpush.bf16.msra.mxu0 0
      %2737 = vmatpush.bf16.msra.mxu0 0
      %2738 = vmatpush.bf16.msra.mxu0 %v2729
      %2739 = vmatmul.bf16.gmra.mxu0 %v2726
      %v2740 = vpop.f32.mrf.mxu0
      %v2741 = vadd.f32 0.0, %v2740
      %v2742 = vpop.f32.mrf.mxu0
      %2743 = vdwg.mxu0
      %v2745 = vsel %vm486, %v2486, 0
      %v2748 = vsel %vm1130, %v2550, 0
      %2750 = vmatpush.bf16.msra.mxu0 0
      %2751 = vmatpush.bf16.msra.mxu0 0
      %2752 = vmatpush.bf16.msra.mxu0 0
      %2753 = vmatpush.bf16.msra.mxu0 0
      %2754 = vmatpush.bf16.msra.mxu0 0
      %2755 = vmatpush.bf16.msra.mxu0 0
      %2756 = vmatpush.bf16.msra.mxu0 0
      %2757 = vmatpush.bf16.msra.mxu0 %v2748
      %2758 = vmatmul.bf16.gmra.mxu0 %v2745
      %v2759 = vpop.f32.mrf.mxu0
      %v2760 = vadd.f32 0.0, %v2759
      %v2761 = vpop.f32.mrf.mxu0
      %2762 = vdwg.mxu0
      %v2764 = vsel %vm486, %v2487, 0
      %v2767 = vsel %vm1130, %v2551, 0
      %2769 = vmatpush.bf16.msra.mxu0 0
      %2770 = vmatpush.bf16.msra.mxu0 0
      %2771 = vmatpush.bf16.msra.mxu0 0
      %2772 = vmatpush.bf16.msra.mxu0 0
      %2773 = vmatpush.bf16.msra.mxu0 0
      %2774 = vmatpush.bf16.msra.mxu0 0
      %2775 = vmatpush.bf16.msra.mxu0 0
      %2776 = vmatpush.bf16.msra.mxu0 %v2767
      %2777 = vmatmul.bf16.gmra.mxu0 %v2764
      %v2778 = vpop.f32.mrf.mxu0
      %v2779 = vadd.f32 0.0, %v2778
      %v2780 = vpop.f32.mrf.mxu0
      %2781 = vdwg.mxu0
      %v2783 = vsel %vm486, %v2488, 0
      %v2786 = vsel %vm1130, %v2552, 0
      %2788 = vmatpush.bf16.msra.mxu0 0
      %2789 = vmatpush.bf16.msra.mxu0 0
      %2790 = vmatpush.bf16.msra.mxu0 0
      %2791 = vmatpush.bf16.msra.mxu0 0
      %2792 = vmatpush.bf16.msra.mxu0 0
      %2793 = vmatpush.bf16.msra.mxu0 0
      %2794 = vmatpush.bf16.msra.mxu0 0
      %2795 = vmatpush.bf16.msra.mxu0 %v2786
      %2796 = vmatmul.bf16.gmra.mxu0 %v2783
      %v2797 = vpop.f32.mrf.mxu0
      %v2798 = vadd.f32 0.0, %v2797
      %v2799 = vpop.f32.mrf.mxu0
      %2800 = vdwg.mxu0
      %v2802 = vsel %vm486, %v2489, 0
      %v2805 = vsel %vm1130, %v2553, 0
      %2807 = vmatpush.bf16.msra.mxu0 0
      %2808 = vmatpush.bf16.msra.mxu0 0
      %2809 = vmatpush.bf16.msra.mxu0 0
      %2810 = vmatpush.bf16.msra.mxu0 0
      %2811 = vmatpush.bf16.msra.mxu0 0
      %2812 = vmatpush.bf16.msra.mxu0 0
      %2813 = vmatpush.bf16.msra.mxu0 0
      %2814 = vmatpush.bf16.msra.mxu0 %v2805
      %2815 = vmatmul.bf16.gmra.mxu0 %v2802
      %v2816 = vpop.f32.mrf.mxu0
      %v2817 = vadd.f32 0.0, %v2816
      %v2818 = vpop.f32.mrf.mxu0
      %2819 = vdwg.mxu0
      %v2821 = vsel %vm486, %v2490, 0
      %v2824 = vsel %vm1130, %v2554, 0
      %2826 = vmatpush.bf16.msra.mxu0 0
      %2827 = vmatpush.bf16.msra.mxu0 0
      %2828 = vmatpush.bf16.msra.mxu0 0
      %2829 = vmatpush.bf16.msra.mxu0 0
      %2830 = vmatpush.bf16.msra.mxu0 0
      %2831 = vmatpush.bf16.msra.mxu0 0
      %2832 = vmatpush.bf16.msra.mxu0 0
      %2833 = vmatpush.bf16.msra.mxu0 %v2824
      %2834 = vmatmul.bf16.gmra.mxu0 %v2821
      %v2835 = vpop.f32.mrf.mxu0
      %v2836 = vadd.f32 0.0, %v2835
      %v2837 = vpop.f32.mrf.mxu0
      %2838 = vdwg.mxu0
      %v2840 = vsel %vm486, %v2491, 0
      %v2843 = vsel %vm1130, %v2555, 0
      %2845 = vmatpush.bf16.msra.mxu0 0
      %2846 = vmatpush.bf16.msra.mxu0 0
      %2847 = vmatpush.bf16.msra.mxu0 0
      %2848 = vmatpush.bf16.msra.mxu0 0
      %2849 = vmatpush.bf16.msra.mxu0 0
      %2850 = vmatpush.bf16.msra.mxu0 0
      %2851 = vmatpush.bf16.msra.mxu0 0
      %2852 = vmatpush.bf16.msra.mxu0 %v2843
      %2853 = vmatmul.bf16.gmra.mxu0 %v2840
      %v2854 = vpop.f32.mrf.mxu0
      %v2855 = vadd.f32 0.0, %v2854
      %v2856 = vpop.f32.mrf.mxu0
      %2857 = vdwg.mxu0
      %v2859 = vsel %vm486, %v2492, 0
      %v2862 = vsel %vm1130, %v2556, 0
      %2864 = vmatpush.bf16.msra.mxu0 0
      %2865 = vmatpush.bf16.msra.mxu0 0
      %2866 = vmatpush.bf16.msra.mxu0 0
      %2867 = vmatpush.bf16.msra.mxu0 0
      %2868 = vmatpush.bf16.msra.mxu0 0
      %2869 = vmatpush.bf16.msra.mxu0 0
      %2870 = vmatpush.bf16.msra.mxu0 0
      %2871 = vmatpush.bf16.msra.mxu0 %v2862
      %2872 = vmatmul.bf16.gmra.mxu0 %v2859
      %v2873 = vpop.f32.mrf.mxu0
      %v2874 = vadd.f32 0.0, %v2873
      %v2875 = vpop.f32.mrf.mxu0
      %2876 = vdwg.mxu0
      %v2878 = vsel %vm486, %v2493, 0
      %v2881 = vsel %vm1130, %v2557, 0
      %2883 = vmatpush.bf16.msra.mxu0 0
      %2884 = vmatpush.bf16.msra.mxu0 0
      %2885 = vmatpush.bf16.msra.mxu0 0
      %2886 = vmatpush.bf16.msra.mxu0 0
      %2887 = vmatpush.bf16.msra.mxu0 0
      %2888 = vmatpush.bf16.msra.mxu0 0
      %2889 = vmatpush.bf16.msra.mxu0 0
      %2890 = vmatpush.bf16.msra.mxu0 %v2881
      %2891 = vmatmul.bf16.gmra.mxu0 %v2878
      %v2892 = vpop.f32.mrf.mxu0
      %v2893 = vadd.f32 0.0, %v2892
      %v2894 = vpop.f32.mrf.mxu0
      %2895 = vdwg.mxu0
      %v2897 = vsel %vm486, %v2494, 0
      %v2900 = vsel %vm1130, %v2558, 0
      %2902 = vmatpush.bf16.msra.mxu0 0
      %2903 = vmatpush.bf16.msra.mxu0 0
      %2904 = vmatpush.bf16.msra.mxu0 0
      %2905 = vmatpush.bf16.msra.mxu0 0
      %2906 = vmatpush.bf16.msra.mxu0 0
      %2907 = vmatpush.bf16.msra.mxu0 0
      %2908 = vmatpush.bf16.msra.mxu0 0
      %2909 = vmatpush.bf16.msra.mxu0 %v2900
      %2910 = vmatmul.bf16.gmra.mxu0 %v2897
      %v2911 = vpop.f32.mrf.mxu0
      %v2912 = vadd.f32 0.0, %v2911
      %v2913 = vpop.f32.mrf.mxu0
      %2914 = vdwg.mxu0
      %v2916 = vsel %vm486, %v2495, 0
      %v2919 = vsel %vm1130, %v2559, 0
      %2921 = vmatpush.bf16.msra.mxu0 0
      %2922 = vmatpush.bf16.msra.mxu0 0
      %2923 = vmatpush.bf16.msra.mxu0 0
      %2924 = vmatpush.bf16.msra.mxu0 0
      %2925 = vmatpush.bf16.msra.mxu0 0
      %2926 = vmatpush.bf16.msra.mxu0 0
      %2927 = vmatpush.bf16.msra.mxu0 0
      %2928 = vmatpush.bf16.msra.mxu0 %v2919
      %2929 = vmatmul.bf16.gmra.mxu0 %v2916
      %v2930 = vpop.f32.mrf.mxu0
      %v2931 = vadd.f32 0.0, %v2930
      %v2932 = vpop.f32.mrf.mxu0
      %2933 = vdwg.mxu0
      %v2935 = vsel %vm486, %v2496, 0
      %v2938 = vsel %vm1130, %v2560, 0
      %2940 = vmatpush.bf16.msra.mxu0 0
      %2941 = vmatpush.bf16.msra.mxu0 0
      %2942 = vmatpush.bf16.msra.mxu0 0
      %2943 = vmatpush.bf16.msra.mxu0 0
      %2944 = vmatpush.bf16.msra.mxu0 0
      %2945 = vmatpush.bf16.msra.mxu0 0
      %2946 = vmatpush.bf16.msra.mxu0 0
      %2947 = vmatpush.bf16.msra.mxu0 %v2938
      %2948 = vmatmul.bf16.gmra.mxu0 %v2935
      %v2949 = vpop.f32.mrf.mxu0
      %v2950 = vadd.f32 0.0, %v2949
      %v2951 = vpop.f32.mrf.mxu0
      %2952 = vdwg.mxu0
      %v2954 = vsel %vm486, %v2497, 0
      %v2957 = vsel %vm1130, %v2561, 0
      %2959 = vmatpush.bf16.msra.mxu0 0
      %2960 = vmatpush.bf16.msra.mxu0 0
      %2961 = vmatpush.bf16.msra.mxu0 0
      %2962 = vmatpush.bf16.msra.mxu0 0
      %2963 = vmatpush.bf16.msra.mxu0 0
      %2964 = vmatpush.bf16.msra.mxu0 0
      %2965 = vmatpush.bf16.msra.mxu0 0
      %2966 = vmatpush.bf16.msra.mxu0 %v2957
      %2967 = vmatmul.bf16.gmra.mxu0 %v2954
      %v2968 = vpop.f32.mrf.mxu0
      %v2969 = vadd.f32 0.0, %v2968
      %v2970 = vpop.f32.mrf.mxu0
      %2971 = vdwg.mxu0
      %v2973 = vsel %vm486, %v2498, 0
      %v2976 = vsel %vm1130, %v2562, 0
      %2978 = vmatpush.bf16.msra.mxu0 0
      %2979 = vmatpush.bf16.msra.mxu0 0
      %2980 = vmatpush.bf16.msra.mxu0 0
      %2981 = vmatpush.bf16.msra.mxu0 0
      %2982 = vmatpush.bf16.msra.mxu0 0
      %2983 = vmatpush.bf16.msra.mxu0 0
      %2984 = vmatpush.bf16.msra.mxu0 0
      %2985 = vmatpush.bf16.msra.mxu0 %v2976
      %2986 = vmatmul.bf16.gmra.mxu0 %v2973
      %v2987 = vpop.f32.mrf.mxu0
      %v2988 = vadd.f32 0.0, %v2987
      %v2989 = vpop.f32.mrf.mxu0
      %2990 = vdwg.mxu0
      %v2992 = vsel %vm486, %v2499, 0
      %v2995 = vsel %vm1130, %v2563, 0
      %2997 = vmatpush.bf16.msra.mxu0 0
      %2998 = vmatpush.bf16.msra.mxu0 0
      %2999 = vmatpush.bf16.msra.mxu0 0
      %3000 = vmatpush.bf16.msra.mxu0 0
      %3001 = vmatpush.bf16.msra.mxu0 0
      %3002 = vmatpush.bf16.msra.mxu0 0
      %3003 = vmatpush.bf16.msra.mxu0 0
      %3004 = vmatpush.bf16.msra.mxu0 %v2995
      %3005 = vmatmul.bf16.gmra.mxu0 %v2992
      %v3006 = vpop.f32.mrf.mxu0
      %v3007 = vadd.f32 0.0, %v3006
      %v3008 = vpop.f32.mrf.mxu0
      %3009 = vdwg.mxu0
      %v3011 = vsel %vm486, %v2500, 0
      %v3014 = vsel %vm1130, %v2564, 0
      %3016 = vmatpush.bf16.msra.mxu0 0
      %3017 = vmatpush.bf16.msra.mxu0 0
      %3018 = vmatpush.bf16.msra.mxu0 0
      %3019 = vmatpush.bf16.msra.mxu0 0
      %3020 = vmatpush.bf16.msra.mxu0 0
      %3021 = vmatpush.bf16.msra.mxu0 0
      %3022 = vmatpush.bf16.msra.mxu0 0
      %3023 = vmatpush.bf16.msra.mxu0 %v3014
      %3024 = vmatmul.bf16.gmra.mxu0 %v3011
      %v3025 = vpop.f32.mrf.mxu0
      %v3026 = vadd.f32 0.0, %v3025
      %v3027 = vpop.f32.mrf.mxu0
      %3028 = vdwg.mxu0
      %v3030 = vsel %vm486, %v2501, 0
      %v3033 = vsel %vm1130, %v2565, 0
      %3035 = vmatpush.bf16.msra.mxu0 0
      %3036 = vmatpush.bf16.msra.mxu0 0
      %3037 = vmatpush.bf16.msra.mxu0 0
      %3038 = vmatpush.bf16.msra.mxu0 0
      %3039 = vmatpush.bf16.msra.mxu0 0
      %3040 = vmatpush.bf16.msra.mxu0 0
      %3041 = vmatpush.bf16.msra.mxu0 0
      %3042 = vmatpush.bf16.msra.mxu0 %v3033
      %3043 = vmatmul.bf16.gmra.mxu0 %v3030
      %v3044 = vpop.f32.mrf.mxu0
      %v3045 = vadd.f32 0.0, %v3044
      %v3046 = vpop.f32.mrf.mxu0
      %3047 = vdwg.mxu0
      %v3049 = vsel %vm486, %v2502, 0
      %v3052 = vsel %vm1130, %v2566, 0
      %3054 = vmatpush.bf16.msra.mxu0 0
      %3055 = vmatpush.bf16.msra.mxu0 0
      %3056 = vmatpush.bf16.msra.mxu0 0
      %3057 = vmatpush.bf16.msra.mxu0 0
      %3058 = vmatpush.bf16.msra.mxu0 0
      %3059 = vmatpush.bf16.msra.mxu0 0
      %3060 = vmatpush.bf16.msra.mxu0 0
      %3061 = vmatpush.bf16.msra.mxu0 %v3052
      %3062 = vmatmul.bf16.gmra.mxu0 %v3049
      %v3063 = vpop.f32.mrf.mxu0
      %v3064 = vadd.f32 0.0, %v3063
      %v3065 = vpop.f32.mrf.mxu0
      %3066 = vdwg.mxu0
      %v3068 = vsel %vm486, %v2503, 0
      %v3071 = vsel %vm1130, %v2567, 0
      %3073 = vmatpush.bf16.msra.mxu0 0
      %3074 = vmatpush.bf16.msra.mxu0 0
      %3075 = vmatpush.bf16.msra.mxu0 0
      %3076 = vmatpush.bf16.msra.mxu0 0
      %3077 = vmatpush.bf16.msra.mxu0 0
      %3078 = vmatpush.bf16.msra.mxu0 0
      %3079 = vmatpush.bf16.msra.mxu0 0
      %3080 = vmatpush.bf16.msra.mxu0 %v3071
      %3081 = vmatmul.bf16.gmra.mxu0 %v3068
      %v3082 = vpop.f32.mrf.mxu0
      %v3083 = vadd.f32 0.0, %v3082
      %v3084 = vpop.f32.mrf.mxu0
      %3085 = vdwg.mxu0
      %v3087 = vsel %vm486, %v2504, 0
      %v3090 = vsel %vm1130, %v2568, 0
      %3092 = vmatpush.bf16.msra.mxu0 0
      %3093 = vmatpush.bf16.msra.mxu0 0
      %3094 = vmatpush.bf16.msra.mxu0 0
      %3095 = vmatpush.bf16.msra.mxu0 0
      %3096 = vmatpush.bf16.msra.mxu0 0
      %3097 = vmatpush.bf16.msra.mxu0 0
      %3098 = vmatpush.bf16.msra.mxu0 0
      %3099 = vmatpush.bf16.msra.mxu0 %v3090
      %3100 = vmatmul.bf16.gmra.mxu0 %v3087
      %v3101 = vpop.f32.mrf.mxu0
      %v3102 = vadd.f32 0.0, %v3101
      %v3103 = vpop.f32.mrf.mxu0
      %3104 = vdwg.mxu0
      %v3106 = vsel %vm486, %v2505, 0
      %v3109 = vsel %vm1130, %v2569, 0
      %3111 = vmatpush.bf16.msra.mxu0 0
      %3112 = vmatpush.bf16.msra.mxu0 0
      %3113 = vmatpush.bf16.msra.mxu0 0
      %3114 = vmatpush.bf16.msra.mxu0 0
      %3115 = vmatpush.bf16.msra.mxu0 0
      %3116 = vmatpush.bf16.msra.mxu0 0
      %3117 = vmatpush.bf16.msra.mxu0 0
      %3118 = vmatpush.bf16.msra.mxu0 %v3109
      %3119 = vmatmul.bf16.gmra.mxu0 %v3106
      %v3120 = vpop.f32.mrf.mxu0
      %v3121 = vadd.f32 0.0, %v3120
      %v3122 = vpop.f32.mrf.mxu0
      %3123 = vdwg.mxu0
      %v3125 = vsel %vm486, %v2506, 0
      %v3128 = vsel %vm1130, %v2570, 0
      %3130 = vmatpush.bf16.msra.mxu0 0
      %3131 = vmatpush.bf16.msra.mxu0 0
      %3132 = vmatpush.bf16.msra.mxu0 0
      %3133 = vmatpush.bf16.msra.mxu0 0
      %3134 = vmatpush.bf16.msra.mxu0 0
      %3135 = vmatpush.bf16.msra.mxu0 0
      %3136 = vmatpush.bf16.msra.mxu0 0
      %3137 = vmatpush.bf16.msra.mxu0 %v3128
      %3138 = vmatmul.bf16.gmra.mxu0 %v3125
      %v3139 = vpop.f32.mrf.mxu0
      %v3140 = vadd.f32 0.0, %v3139
      %v3141 = vpop.f32.mrf.mxu0
      %3142 = vdwg.mxu0
      %v3144 = vsel %vm486, %v2507, 0
      %v3147 = vsel %vm1130, %v2571, 0
      %3149 = vmatpush.bf16.msra.mxu0 0
      %3150 = vmatpush.bf16.msra.mxu0 0
      %3151 = vmatpush.bf16.msra.mxu0 0
      %3152 = vmatpush.bf16.msra.mxu0 0
      %3153 = vmatpush.bf16.msra.mxu0 0
      %3154 = vmatpush.bf16.msra.mxu0 0
      %3155 = vmatpush.bf16.msra.mxu0 0
      %3156 = vmatpush.bf16.msra.mxu0 %v3147
      %3157 = vmatmul.bf16.gmra.mxu0 %v3144
      %v3158 = vpop.f32.mrf.mxu0
      %v3159 = vadd.f32 0.0, %v3158
      %v3160 = vpop.f32.mrf.mxu0
      %3161 = vdwg.mxu0
      %v3163 = vsel %vm486, %v2508, 0
      %v3166 = vsel %vm1130, %v2572, 0
      %3168 = vmatpush.bf16.msra.mxu0 0
      %3169 = vmatpush.bf16.msra.mxu0 0
      %3170 = vmatpush.bf16.msra.mxu0 0
      %3171 = vmatpush.bf16.msra.mxu0 0
      %3172 = vmatpush.bf16.msra.mxu0 0
      %3173 = vmatpush.bf16.msra.mxu0 0
      %3174 = vmatpush.bf16.msra.mxu0 0
      %3175 = vmatpush.bf16.msra.mxu0 %v3166
      %3176 = vmatmul.bf16.gmra.mxu0 %v3163
      %v3177 = vpop.f32.mrf.mxu0
      %v3178 = vadd.f32 0.0, %v3177
      %v3179 = vpop.f32.mrf.mxu0
      %3180 = vdwg.mxu0
      %v3181 = vrot.slane %v2627, 4
      %vm3182 = vcmask 1047556
      %v3183 = vsel %vm3182, %v3181, %v2589
      %v3185 = vunpack.c.l.s4 1983009808
      %v3186 = vunpack.c.0.s8 %v3185
      %v3187 = vperm.slane %v3183, %v3186
      %v3188 = vrot.slane %v2646, 4
      %v3189 = vsel %vm3182, %v3188, %v2608
      %v3191 = vunpack.c.l.s4 1983009808
      %v3192 = vunpack.c.0.s8 %v3191
      %v3193 = vperm.slane %v3189, %v3192
      %v3194 = vrot.slane %v2703, 4
      %v3195 = vsel %vm3182, %v3194, %v2665
      %v3197 = vunpack.c.l.s4 1983009808
      %v3198 = vunpack.c.0.s8 %v3197
      %v3199 = vperm.slane %v3195, %v3198
      %v3200 = vrot.slane %v2722, 4
      %v3201 = vsel %vm3182, %v3200, %v2684
      %v3203 = vunpack.c.l.s4 1983009808
      %v3204 = vunpack.c.0.s8 %v3203
      %v3205 = vperm.slane %v3201, %v3204
      %v3206 = vrot.slane %v3193, 4
      %v3207 = vsel %vm3182, %v3206, %v3187
      %v3208 = vrot.slane %v3187, 4
      %v3209 = vsel %vm3182, %v3193, %v3208
      %v3211 = vunpack.c.l.s4 1934713408
      %v3212 = vunpack.c.0.s8 %v3211
      %v3213 = vperm.slane %v3207, %v3212
      %v3215 = vunpack.c.l.s4 1934713408
      %v3216 = vunpack.c.0.s8 %v3215
      %v3217 = vperm.slane %v3209, %v3216
      %v3218 = vrot.slane %v3205, 4
      %v3219 = vsel %vm3182, %v3218, %v3199
      %v3220 = vrot.slane %v3199, 4
      %v3221 = vsel %vm3182, %v3205, %v3220
      %v3223 = vunpack.c.l.s4 1934713408
      %v3224 = vunpack.c.0.s8 %v3223
      %v3225 = vperm.slane %v3219, %v3224
      %v3227 = vunpack.c.l.s4 1934713408
      %v3228 = vunpack.c.0.s8 %v3227
      %v3229 = vperm.slane %v3221, %v3228
      %v3230 = vrot.slane %v3225, 4
      %v3231 = vsel %vm3182, %v3230, %v3213
      %v3232 = vrot.slane %v3213, 4
      %v3233 = vsel %vm3182, %v3225, %v3232
      %v3234 = vrot.slane %v3229, 4
      %v3235 = vsel %vm3182, %v3234, %v3217
      %v3236 = vrot.slane %v3217, 4
      %v3237 = vsel %vm3182, %v3229, %v3236
      %v3238 = vrot.slane %v2779, 4
      %v3239 = vsel %vm3182, %v3238, %v2741
      %v3241 = vunpack.c.l.s4 1983009808
      %v3242 = vunpack.c.0.s8 %v3241
      %v3243 = vperm.slane %v3239, %v3242
      %v3244 = vrot.slane %v2798, 4
      %v3245 = vsel %vm3182, %v3244, %v2760
      %v3247 = vunpack.c.l.s4 1983009808
      %v3248 = vunpack.c.0.s8 %v3247
      %v3249 = vperm.slane %v3245, %v3248
      %v3250 = vrot.slane %v2855, 4
      %v3251 = vsel %vm3182, %v3250, %v2817
      %v3253 = vunpack.c.l.s4 1983009808
      %v3254 = vunpack.c.0.s8 %v3253
      %v3255 = vperm.slane %v3251, %v3254
      %v3256 = vrot.slane %v2874, 4
      %v3257 = vsel %vm3182, %v3256, %v2836
      %v3259 = vunpack.c.l.s4 1983009808
      %v3260 = vunpack.c.0.s8 %v3259
      %v3261 = vperm.slane %v3257, %v3260
      %v3262 = vrot.slane %v3249, 4
      %v3263 = vsel %vm3182, %v3262, %v3243
      %v3264 = vrot.slane %v3243, 4
      %v3265 = vsel %vm3182, %v3249, %v3264
      %v3267 = vunpack.c.l.s4 1934713408
      %v3268 = vunpack.c.0.s8 %v3267
      %v3269 = vperm.slane %v3263, %v3268
      %v3271 = vunpack.c.l.s4 1934713408
      %v3272 = vunpack.c.0.s8 %v3271
      %v3273 = vperm.slane %v3265, %v3272
      %v3274 = vrot.slane %v3261, 4
      %v3275 = vsel %vm3182, %v3274, %v3255
      %v3276 = vrot.slane %v3255, 4
      %v3277 = vsel %vm3182, %v3261, %v3276
      %v3279 = vunpack.c.l.s4 1934713408
      %v3280 = vunpack.c.0.s8 %v3279
      %v3281 = vperm.slane %v3275, %v3280
      %v3283 = vunpack.c.l.s4 1934713408
      %v3284 = vunpack.c.0.s8 %v3283
      %v3285 = vperm.slane %v3277, %v3284
      %v3286 = vrot.slane %v3281, 4
      %v3287 = vsel %vm3182, %v3286, %v3269
      %v3288 = vrot.slane %v3269, 4
      %v3289 = vsel %vm3182, %v3281, %v3288
      %v3290 = vrot.slane %v3285, 4
      %v3291 = vsel %vm3182, %v3290, %v3273
      %v3292 = vrot.slane %v3273, 4
      %v3293 = vsel %vm3182, %v3285, %v3292
      %v3294 = vrot.slane %v2931, 4
      %v3295 = vsel %vm3182, %v3294, %v2893
      %v3297 = vunpack.c.l.s4 1983009808
      %v3298 = vunpack.c.0.s8 %v3297
      %v3299 = vperm.slane %v3295, %v3298
      %v3300 = vrot.slane %v2950, 4
      %v3301 = vsel %vm3182, %v3300, %v2912
      %v3303 = vunpack.c.l.s4 1983009808
      %v3304 = vunpack.c.0.s8 %v3303
      %v3305 = vperm.slane %v3301, %v3304
      %v3306 = vrot.slane %v3007, 4
      %v3307 = vsel %vm3182, %v3306, %v2969
      %v3309 = vunpack.c.l.s4 1983009808
      %v3310 = vunpack.c.0.s8 %v3309
      %v3311 = vperm.slane %v3307, %v3310
      %v3312 = vrot.slane %v3026, 4
      %v3313 = vsel %vm3182, %v3312, %v2988
      %v3315 = vunpack.c.l.s4 1983009808
      %v3316 = vunpack.c.0.s8 %v3315
      %v3317 = vperm.slane %v3313, %v3316
      %v3318 = vrot.slane %v3305, 4
      %v3319 = vsel %vm3182, %v3318, %v3299
      %v3320 = vrot.slane %v3299, 4
      %v3321 = vsel %vm3182, %v3305, %v3320
      %v3323 = vunpack.c.l.s4 1934713408
      %v3324 = vunpack.c.0.s8 %v3323
      %v3325 = vperm.slane %v3319, %v3324
      %v3327 = vunpack.c.l.s4 1934713408
      %v3328 = vunpack.c.0.s8 %v3327
      %v3329 = vperm.slane %v3321, %v3328
      %v3330 = vrot.slane %v3317, 4
      %v3331 = vsel %vm3182, %v3330, %v3311
      %v3332 = vrot.slane %v3311, 4
      %v3333 = vsel %vm3182, %v3317, %v3332
      %v3335 = vunpack.c.l.s4 1934713408
      %v3336 = vunpack.c.0.s8 %v3335
      %v3337 = vperm.slane %v3331, %v3336
      %v3339 = vunpack.c.l.s4 1934713408
      %v3340 = vunpack.c.0.s8 %v3339
      %v3341 = vperm.slane %v3333, %v3340
      %v3342 = vrot.slane %v3337, 4
      %v3343 = vsel %vm3182, %v3342, %v3325
      %v3344 = vrot.slane %v3325, 4
      %v3345 = vsel %vm3182, %v3337, %v3344
      %v3346 = vrot.slane %v3341, 4
      %v3347 = vsel %vm3182, %v3346, %v3329
      %v3348 = vrot.slane %v3329, 4
      %v3349 = vsel %vm3182, %v3341, %v3348
      %v3350 = vrot.slane %v3083, 4
      %v3351 = vsel %vm3182, %v3350, %v3045
      %v3353 = vunpack.c.l.s4 1983009808
      %v3354 = vunpack.c.0.s8 %v3353
      %v3355 = vperm.slane %v3351, %v3354
      %v3356 = vrot.slane %v3102, 4
      %v3357 = vsel %vm3182, %v3356, %v3064
      %v3359 = vunpack.c.l.s4 1983009808
      %v3360 = vunpack.c.0.s8 %v3359
      %v3361 = vperm.slane %v3357, %v3360
      %v3362 = vrot.slane %v3159, 4
      %v3363 = vsel %vm3182, %v3362, %v3121
      %v3365 = vunpack.c.l.s4 1983009808
      %v3366 = vunpack.c.0.s8 %v3365
      %v3367 = vperm.slane %v3363, %v3366
      %v3368 = vrot.slane %v3178, 4
      %v3369 = vsel %vm3182, %v3368, %v3140
      %v3371 = vunpack.c.l.s4 1983009808
      %v3372 = vunpack.c.0.s8 %v3371
      %v3373 = vperm.slane %v3369, %v3372
      %v3374 = vrot.slane %v3361, 4
      %v3375 = vsel %vm3182, %v3374, %v3355
      %v3376 = vrot.slane %v3355, 4
      %v3377 = vsel %vm3182, %v3361, %v3376
      %v3379 = vunpack.c.l.s4 1934713408
      %v3380 = vunpack.c.0.s8 %v3379
      %v3381 = vperm.slane %v3375, %v3380
      %v3383 = vunpack.c.l.s4 1934713408
      %v3384 = vunpack.c.0.s8 %v3383
      %v3385 = vperm.slane %v3377, %v3384
      %v3386 = vrot.slane %v3373, 4
      %v3387 = vsel %vm3182, %v3386, %v3367
      %v3388 = vrot.slane %v3367, 4
      %v3389 = vsel %vm3182, %v3373, %v3388
      %v3391 = vunpack.c.l.s4 1934713408
      %v3392 = vunpack.c.0.s8 %v3391
      %v3393 = vperm.slane %v3387, %v3392
      %v3395 = vunpack.c.l.s4 1934713408
      %v3396 = vunpack.c.0.s8 %v3395
      %v3397 = vperm.slane %v3389, %v3396
      %v3398 = vrot.slane %v3393, 4
      %v3399 = vsel %vm3182, %v3398, %v3381
      %v3400 = vrot.slane %v3381, 4
      %v3401 = vsel %vm3182, %v3393, %v3400
      %v3402 = vrot.slane %v3397, 4
      %v3403 = vsel %vm3182, %v3402, %v3385
      %v3404 = vrot.slane %v3385, 4
      %v3405 = vsel %vm3182, %v3397, %v3404
      %3410 = vrot.lane.b32.xlu0 %v3233, 8
      %v3411 = vpop.permute.xlu0 %3410
      %3412 = vrot.lane.b32.xlu0 %v3289, 8
      %v3413 = vpop.permute.xlu0 %3412
      %3414 = vrot.lane.b32.xlu0 %v3345, 8
      %v3415 = vpop.permute.xlu0 %3414
      %3416 = vrot.lane.b32.xlu0 %v3401, 8
      %v3417 = vpop.permute.xlu0 %3416
      %3426 = vrot.lane.b32.xlu0 %v3235, 16
      %v3427 = vpop.permute.xlu0 %3426
      %3428 = vrot.lane.b32.xlu0 %v3291, 16
      %v3429 = vpop.permute.xlu0 %3428
      %3430 = vrot.lane.b32.xlu0 %v3347, 16
      %v3431 = vpop.permute.xlu0 %3430
      %3432 = vrot.lane.b32.xlu0 %v3403, 16
      %v3433 = vpop.permute.xlu0 %3432
      %3442 = vrot.lane.b32.xlu0 %v3237, 24
      %v3443 = vpop.permute.xlu0 %3442
      %3444 = vrot.lane.b32.xlu0 %v3293, 24
      %v3445 = vpop.permute.xlu0 %3444
      %3446 = vrot.lane.b32.xlu0 %v3349, 24
      %v3447 = vpop.permute.xlu0 %3446
      %3448 = vrot.lane.b32.xlu0 %v3405, 24
      %v3449 = vpop.permute.xlu0 %3448
      %v3454 = vsel %vm486, %v3231, %v3411
      %v3455 = vsel %vm486, %v3287, %v3413
      %v3456 = vsel %vm486, %v3343, %v3415
      %v3457 = vsel %vm486, %v3399, %v3417
      %vm3458 = vcmask 130048
      %v3459 = vsel %vm3458, %v3454, %v3427
      %v3460 = vsel %vm3458, %v3455, %v3429
      %v3461 = vsel %vm3458, %v3456, %v3431
      %v3462 = vsel %vm3458, %v3457, %v3433
      %vm3463 = vcmask 195584
      %v3464 = vsel %vm3463, %v3459, %v3443
      %v3465 = vsel %vm3463, %v3460, %v3445
      %v3466 = vsel %vm3463, %v3461, %v3447
      %v3467 = vsel %vm3463, %v3462, %v3449
      %vm3468 = vcmask 261120
      %3469 = vst.msk [vmem:[%s349] sm:$0xff] %vm3468, %v3464
      %3470 = vst.msk [vmem:[%s349 + $0x8] sm:$0xff] %vm3468, %v3465
      %3471 = vst.msk [vmem:[%s349 + $0x10] sm:$0xff] %vm3468, %v3466
      %3472 = vst.msk [vmem:[%s349 + $0x18] sm:$0xff] %vm3468, %v3467
      %v3473 = vlog2.pop %v2319
      %v3474 = vmul.f32 %v3473, 0.6931472
      %v3475 = vlog2.pop %v2322
      %v3476 = vmul.f32 %v3475, 0.6931472
      %v3477 = vlog2.pop %v2325
      %v3478 = vmul.f32 %v3477, 0.6931472
      %v3479 = vlog2.pop %v2328
      %v3480 = vmul.f32 %v3479, 0.6931472
      %v3481 = vlog2.pop %v2331
      %v3482 = vmul.f32 %v3481, 0.6931472
      %v3483 = vlog2.pop %v2334
      %v3484 = vmul.f32 %v3483, 0.6931472
      %v3485 = vlog2.pop %v2337
      %v3486 = vmul.f32 %v3485, 0.6931472
      %v3487 = vlog2.pop %v2340
      %v3488 = vmul.f32 %v3487, 0.6931472
      %v3489 = vlog2.pop %v2343
      %v3490 = vmul.f32 %v3489, 0.6931472
      %v3491 = vlog2.pop %v2346
      %v3492 = vmul.f32 %v3491, 0.6931472
      %v3493 = vlog2.pop %v2349
      %v3494 = vmul.f32 %v3493, 0.6931472
      %v3495 = vlog2.pop %v2352
      %v3496 = vmul.f32 %v3495, 0.6931472
      %v3497 = vlog2.pop %v2355
      %v3498 = vmul.f32 %v3497, 0.6931472
      %v3499 = vlog2.pop %v2358
      %v3500 = vmul.f32 %v3499, 0.6931472
      %v3501 = vlog2.pop %v2361
      %v3502 = vmul.f32 %v3501, 0.6931472
      %v3503 = vlog2.pop %v2364
      %v3504 = vmul.f32 %v3503, 0.6931472
      %v3505 = vlog2.pop %v2367
      %v3506 = vmul.f32 %v3505, 0.6931472
      %v3507 = vlog2.pop %v2370
      %v3508 = vmul.f32 %v3507, 0.6931472
      %v3509 = vlog2.pop %v2373
      %v3510 = vmul.f32 %v3509, 0.6931472
      %v3511 = vlog2.pop %v2376
      %v3512 = vmul.f32 %v3511, 0.6931472
      %v3513 = vlog2.pop %v2379
      %v3514 = vmul.f32 %v3513, 0.6931472
      %v3515 = vlog2.pop %v2382
      %v3516 = vmul.f32 %v3515, 0.6931472
      %v3517 = vlog2.pop %v2385
      %v3518 = vmul.f32 %v3517, 0.6931472
      %v3519 = vlog2.pop %v2388
      %v3520 = vmul.f32 %v3519, 0.6931472
      %v3521 = vlog2.pop %v2391
      %v3522 = vmul.f32 %v3521, 0.6931472
      %v3523 = vlog2.pop %v2394
      %v3524 = vmul.f32 %v3523, 0.6931472
      %v3525 = vlog2.pop %v2397
      %v3526 = vmul.f32 %v3525, 0.6931472
      %v3527 = vlog2.pop %v2400
      %v3528 = vmul.f32 %v3527, 0.6931472
      %v3529 = vlog2.pop %v2403
      %v3530 = vmul.f32 %v3529, 0.6931472
      %v3531 = vlog2.pop %v2406
      %v3532 = vmul.f32 %v3531, 0.6931472
      %v3533 = vlog2.pop %v2409
      %v3534 = vmul.f32 %v3533, 0.6931472
      %v3535 = vlog2.pop %v2412
      %v3536 = vmul.f32 %v3535, 0.6931472
      %v3537 = vadd.f32 %v2127, %v3474
      %v3538 = vadd.f32 %v2130, %v3476
      %v3539 = vadd.f32 %v2133, %v3478
      %v3540 = vadd.f32 %v2136, %v3480
      %v3541 = vadd.f32 %v2139, %v3482
      %v3542 = vadd.f32 %v2142, %v3484
      %v3543 = vadd.f32 %v2145, %v3486
      %v3544 = vadd.f32 %v2148, %v3488
      %v3545 = vadd.f32 %v2151, %v3490
      %v3546 = vadd.f32 %v2154, %v3492
      %v3547 = vadd.f32 %v2157, %v3494
      %v3548 = vadd.f32 %v2160, %v3496
      %v3549 = vadd.f32 %v2163, %v3498
      %v3550 = vadd.f32 %v2166, %v3500
      %v3551 = vadd.f32 %v2169, %v3502
      %v3552 = vadd.f32 %v2172, %v3504
      %v3553 = vadd.f32 %v2175, %v3506
      %v3554 = vadd.f32 %v2178, %v3508
      %v3555 = vadd.f32 %v2181, %v3510
      %v3556 = vadd.f32 %v2184, %v3512
      %v3557 = vadd.f32 %v2187, %v3514
      %v3558 = vadd.f32 %v2190, %v3516
      %v3559 = vadd.f32 %v2193, %v3518
      %v3560 = vadd.f32 %v2196, %v3520
      %v3561 = vadd.f32 %v2199, %v3522
      %v3562 = vadd.f32 %v2202, %v3524
      %v3563 = vadd.f32 %v2205, %v3526
      %v3564 = vadd.f32 %v2208, %v3528
      %v3565 = vadd.f32 %v2211, %v3530
      %v3566 = vadd.f32 %v2214, %v3532
      %v3567 = vadd.f32 %v2217, %v3534
      %v3568 = vadd.f32 %v2220, %v3536
      %v3601 = vlaneseq
      %v3602 = vand.u32 %v3601, 127
      %v3603 = vperm.slane %v3537, %v3602
      %v3604 = vperm.slane %v3538, %v3602
      %v3605 = vperm.slane %v3539, %v3602
      %v3606 = vperm.slane %v3540, %v3602
      %v3607 = vperm.slane %v3541, %v3602
      %v3608 = vperm.slane %v3542, %v3602
      %v3609 = vperm.slane %v3543, %v3602
      %v3610 = vperm.slane %v3544, %v3602
      %v3611 = vperm.slane %v3545, %v3602
      %v3612 = vperm.slane %v3546, %v3602
      %v3613 = vperm.slane %v3547, %v3602
      %v3614 = vperm.slane %v3548, %v3602
      %v3615 = vperm.slane %v3549, %v3602
      %v3616 = vperm.slane %v3550, %v3602
      %v3617 = vperm.slane %v3551, %v3602
      %v3618 = vperm.slane %v3552, %v3602
      %v3619 = vperm.slane %v3553, %v3602
      %v3620 = vperm.slane %v3554, %v3602
      %v3621 = vperm.slane %v3555, %v3602
      %v3622 = vperm.slane %v3556, %v3602
      %v3623 = vperm.slane %v3557, %v3602
      %v3624 = vperm.slane %v3558, %v3602
      %v3625 = vperm.slane %v3559, %v3602
      %v3626 = vperm.slane %v3560, %v3602
      %v3627 = vperm.slane %v3561, %v3602
      %v3628 = vperm.slane %v3562, %v3602
      %v3629 = vperm.slane %v3563, %v3602
      %v3630 = vperm.slane %v3564, %v3602
      %v3631 = vperm.slane %v3565, %v3602
      %v3632 = vperm.slane %v3566, %v3602
      %v3633 = vperm.slane %v3567, %v3602
      %v3634 = vperm.slane %v3568, %v3602
      %vm3635 = vcmask 1041409
      %v3636 = vsel %vm3635, %v3604, %v3603
      %vm3637 = vcmask 1042434
      %v3638 = vsel %vm3637, %v3605, %v3636
      %vm3639 = vcmask 1043459
      %v3640 = vsel %vm3639, %v3606, %v3638
      %vm3641 = vcmask 1044484
      %v3642 = vsel %vm3641, %v3607, %v3640
      %vm3643 = vcmask 1045509
      %v3644 = vsel %vm3643, %v3608, %v3642
      %vm3645 = vcmask 1046534
      %v3646 = vsel %vm3645, %v3609, %v3644
      %vm3647 = vcmask 1047559
      %v3648 = vsel %vm3647, %v3610, %v3646
      %v3649 = vsel %vm3635, %v3612, %v3611
      %v3650 = vsel %vm3637, %v3613, %v3649
      %v3651 = vsel %vm3639, %v3614, %v3650
      %v3652 = vsel %vm3641, %v3615, %v3651
      %v3653 = vsel %vm3643, %v3616, %v3652
      %v3654 = vsel %vm3645, %v3617, %v3653
      %v3655 = vsel %vm3647, %v3618, %v3654
      %v3656 = vsel %vm3635, %v3620, %v3619
      %v3657 = vsel %vm3637, %v3621, %v3656
      %v3658 = vsel %vm3639, %v3622, %v3657
      %v3659 = vsel %vm3641, %v3623, %v3658
      %v3660 = vsel %vm3643, %v3624, %v3659
      %v3661 = vsel %vm3645, %v3625, %v3660
      %v3662 = vsel %vm3647, %v3626, %v3661
      %v3663 = vsel %vm3635, %v3628, %v3627
      %v3664 = vsel %vm3637, %v3629, %v3663
      %v3665 = vsel %vm3639, %v3630, %v3664
      %v3666 = vsel %vm3641, %v3631, %v3665
      %v3667 = vsel %vm3643, %v3632, %v3666
      %v3668 = vsel %vm3645, %v3633, %v3667
      %v3669 = vsel %vm3647, %v3634, %v3668
      %vm3674 = vcmask 31744
      %3675 = vst.msk [vmem:[%s355] sm:$0xff] %vm3674, %v3648
      %3676 = vst.msk [vmem:[%s355 + $0x8] sm:$0xff] %vm3674, %v3655
      %3677 = vst.msk [vmem:[%s355 + $0x10] sm:$0xff] %vm3674, %v3662
      %3678 = vst.msk [vmem:[%s355 + $0x18] sm:$0xff] %vm3674, %v3669
      %s3679 = smul.u32 4, %s18
      %p3680 = scmp.lt.s32.totalorder %s3679, 15
      %s3681 = scalar_select %p3680, %s3679, 15
      %s3682 = smul.addr %s3681, 8
      %s3683 = scalar_lea.vmem %s5, %s3682
      %s3684 = smul.u32 4, %s18
      %p3685 = scmp.lt.s32.totalorder %s3684, 15
      %s3686 = scalar_select %p3685, %s3684, 15
      %s3687 = smul.addr %s3686, 8
      %s3688 = scalar_lea.vmem %s6, %s3687
      // Predicated region
      $region41: #{reformer_forward.10} parent=39 // pred_check
        %p3689 = pneg %p166
      $region42: #{reformer_forward.10} parent=39 // pred_check_branch
        %3691 = sbr.rel (%p3689) target = $region44
      $region43: #{reformer_forward.10} parent=39 // pred_region
        %s3692 = smul.u32 4, %s18
      $region44: #{reformer_forward.10} parent=39 // pred_fallthru
        _
      // Predicated region
      $region45: #{reformer_forward.10} parent=39 // pred_check
        %p3693 = pneg %p192
      $region46: #{reformer_forward.10} parent=39 // pred_check_branch
        %3695 = sbr.rel (%p3693) target = $region48
      $region47: #{reformer_forward.10} parent=39 // pred_region
        %s3696 = smul.u32 4, %s18
      $region48: #{reformer_forward.10} parent=39 // pred_fallthru
        _
    $region40: #{reformer_forward.10} parent=5 // pred_fallthru
      _
    %p3697 = scmp.le.s32.totalorder 2, %s13
    // Predicated region
    $region49: #{reformer_forward.10} parent=5 // pred_check
      %p3698 = pneg %p3697
    $region50: #{reformer_forward.10} parent=5 // pred_check_branch
      %3700 = sbr.rel (%p3698) target = $region52
    $region51: #{reformer_forward.10} parent=5 // pred_region
      %s3701 = ssub.s32 %s13, 2
      // Predicated region
      $region53: #{reformer_forward.10} parent=51 // pred_check
        %p3702 = pneg %p172
      $region54: #{reformer_forward.10} parent=51 // pred_check_branch
        %3704 = sbr.rel (%p3702) target = $region56
      $region55: #{reformer_forward.10} parent=51 // pred_region
        %s3705 = smul.u32 4, %s19
        %p3706 = scmp.lt.s32.totalorder %s3705, 15
        %s3707 = scalar_select %p3706, %s3705, 15
        %s3708 = smul.addr %s3707, 8
        %s3709 = scalar_lea.vmem %s5, %s3708
      $region56: #{reformer_forward.10} parent=51 // pred_fallthru
        _
      // Predicated region
      $region57: #{reformer_forward.10} parent=51 // pred_check
        %p3710 = pneg %p198
      $region58: #{reformer_forward.10} parent=51 // pred_check_branch
        %3712 = sbr.rel (%p3710) target = $region60
      $region59: #{reformer_forward.10} parent=51 // pred_region
        %s3713 = smul.u32 4, %s19
        %p3714 = scmp.lt.s32.totalorder %s3713, 15
        %s3715 = scalar_select %p3714, %s3713, 15
        %s3716 = smul.addr %s3715, 8
        %s3717 = scalar_lea.vmem %s6, %s3716
      $region60: #{reformer_forward.10} parent=51 // pred_fallthru
        _
    $region52: #{reformer_forward.10} parent=5 // pred_fallthru
      _
  $region6: #{reformer_forward.10} parent=0 // loop_footer
    %s17 = sadd.s32 1, %s13
  $region7: #{reformer_forward.10} parent=0 // loop_footer_branch
    %12 = sbr.rel target = $region3
  $region8: #{reformer_forward.10} parent=0 // loop_exit
    _

</llo_original>
